<compile_context>
chip_gen: v7x
topology: tpu7x:2x2x1
jax: 0.10.0
libtpu: 0.0.40
codegen_flags: <defaults>
</compile_context>

<pallas_src>
import functools
from math import ceil

import jax
import jax.numpy as jnp
from jax import lax
from jax.experimental import pallas as pl
from jax.experimental.pallas import tpu as pltpu


# ----------------------------------------------------------------------------
# In-kernel helpers: selection matrices from iota (everything becomes a small
# MXU matmul; no strided / padded / reshaped memory access needed).
# ----------------------------------------------------------------------------
def _tap_matrix(t_in, t_out, shift, stride):
    """M[i, j] = 1 iff input column i feeds output column j for this tap,
    i.e. i + shift == j * stride.  Output columns with j*stride < shift read
    the implicit causal zero padding and simply get no contribution."""
    rows = lax.broadcasted_iota(jnp.int32, (t_in, t_out), 0)
    cols = lax.broadcasted_iota(jnp.int32, (t_in, t_out), 1)
    return (rows + shift == cols * stride).astype(jnp.float32)


def _avgpool_matrix(t_in):
    """P[i, j] = 0.5 iff i // 2 == j   (AvgPool1d(kernel_size=2))."""
    rows = lax.broadcasted_iota(jnp.int32, (t_in, t_in // 2), 0)
    cols = lax.broadcasted_iota(jnp.int32, (t_in, t_in // 2), 1)
    return jnp.where((rows == 2 * cols) | (rows == 2 * cols + 1), 0.5, 0.0)


# ----------------------------------------------------------------------------
# The fused kernel: whole TCResNet14 forward pass.
# ----------------------------------------------------------------------------
def _fused_kernel(*refs, blk_cfgs, batch, avg_pool, out_dim):
    out_ref = refs[-1]
    it = iter(refs[:-1])
    x_ref = next(it)

    def conv_bn_act(h, w_ref, ss_ref, k, dil, stride, relu, res=None):
        """Causal Conv1d (+ folded BN / bias) (+ residual add) (+ ReLU).

        h      : (B*C_in, T_in) f32 value
        w_ref  : (k, B*C_out, B*C_in) per-tap block-diagonal weights
        ss_ref : (2, B*C_out, 1)  -- [0]=scale, [1]=shift
        """
        t_in = h.shape[1]
        t_out = (t_in - 1) // stride + 1
        bc_out = w_ref.shape[1]
        pad = (k - 1) * dil
        acc = jnp.zeros((bc_out, t_out), jnp.float32)
        for t in range(k):
            shift = pad - t * dil
            if shift > (t_out - 1) * stride:
                continue                       # tap only ever reads the causal zeros
            wh = jnp.dot(w_ref[t], h, preferred_element_type=jnp.float32)
            if stride == 1 and shift == 0:
                acc = acc + wh
            else:
                acc = acc + jnp.dot(wh, _tap_matrix(t_in, t_out, shift, stride),
                                    preferred_element_type=jnp.float32)
        y = acc * ss_ref[0] + ss_ref[1]        # folded BatchNorm (+ conv bias)
        if res is not None:
            y = y + res
        if relu:
            y = jnp.maximum(y, 0.0)
        return y

    # --- conv0: causal pad + Conv1d(k=3) + bias (scale=1, shift=bias) --------
    h = x_ref[...].astype(jnp.float32)         # (B*C_in, T)
    w_ref = next(it); ss_ref = next(it)
    h = conv_bn_act(h, w_ref, ss_ref, k=3, dil=1, stride=1, relu=False)

    # --- TempBlock2 / TempBlock1 stack ---------------------------------------
    for cfg in blk_cfgs:
        w_a = next(it); ss_a = next(it)
        w_d = next(it); ss_d = next(it)
        w_b = next(it); ss_b = next(it)
        x_in = h
        # x1 = relu(bn0(tcn0(pad0(x))))
        x1 = conv_bn_act(x_in, w_a, ss_a, k=cfg['k0'], dil=cfg['dil0'],
                         stride=cfg['stride0'], relu=True)
        # res = relu(bn_d(downsample(x)))
        res = conv_bn_act(x_in, w_d, ss_d, k=1, dil=1,
                          stride=cfg['stride_d'], relu=True)
        # out = relu(bn1(tcn1(pad1(x1))) + res)
        h = conv_bn_act(x1, w_b, ss_b, k=cfg['k1'], dil=cfg['dil1'],
                        stride=1, relu=True, res=res)

    # --- AvgPool1d(kernel_size=2) as a matmul --------------------------------
    if avg_pool:
        h = jnp.dot(h, _avgpool_matrix(h.shape[1]),
                    preferred_element_type=jnp.float32)

    # TODO(synk): nn.Dropout(p) is identity under inference semantics.

    # --- flatten(1) + Linear + log_softmax ------------------------------------
    wh_ref = next(it); bh_ref = next(it)
    t_f = h.shape[1]
    n_out = out_dim
    n_b = batch
    logit_big = bh_ref[...].astype(jnp.float32)            # (B*O, 1)
    for t in range(t_f):
        logit_big = logit_big + jnp.dot(wh_ref[t], h[:, t:t + 1],
                                        preferred_element_type=jnp.float32)
    # Unfold the block-diagonal result (B*O, 1) -> (B, O) with two selection
    # matmuls (avoids in-kernel reshapes / transposes of odd-shaped tiles).
    rk = lax.broadcasted_iota(jnp.int32, (n_b * n_out, n_out), 0)
    co = lax.broadcasted_iota(jnp.int32, (n_b * n_out, n_out), 1)
    q = jnp.zeros((n_b * n_out, n_out), jnp.float32)
    for bb in range(n_b):
        q = q + (rk == co + bb * n_out).astype(jnp.float32)
    rb = lax.broadcasted_iota(jnp.int32, (n_b, n_b * n_out), 0)
    ck = lax.broadcasted_iota(jnp.int32, (n_b, n_b * n_out), 1)
    p_sel = ((ck >= rb * n_out) & (ck < (rb + 1) * n_out)).astype(jnp.float32)
    logits = jnp.dot(p_sel, logit_big * q, preferred_element_type=jnp.float32)

    m = jnp.max(logits, axis=-1, keepdims=True)
    lse = jnp.log(jnp.sum(jnp.exp(logits - m), axis=-1, keepdims=True)) + m
    out_ref[...] = (logits - lse).astype(out_ref.dtype)


# ----------------------------------------------------------------------------
# Wrapper: one pallas_call, everything VMEM resident.
# ----------------------------------------------------------------------------
def tcresnet14_forward(x, packed_arrays, blk_cfgs, config):
    b, c_in, t = x.shape
    x2d = x.reshape(b * c_in, t)               # batch folded onto the sublane axis
    inputs = [x2d] + list(packed_arrays)
    kernel = functools.partial(
        _fused_kernel,
        blk_cfgs=tuple(blk_cfgs),
        batch=b,
        avg_pool=bool(config['avg_pool']),
        out_dim=int(config['output_size']),
    )
    vmem = pl.BlockSpec(memory_space=pltpu.MemorySpace.VMEM)
    return pl.pallas_call(
        kernel,
        out_shape=jax.ShapeDtypeStruct((b, config['output_size']), jnp.float32),
        in_specs=[vmem] * len(inputs),
        out_specs=vmem,
    )(*inputs)
    # NOTE: matmul inputs are kept f32 for fidelity with the PyTorch reference;
    # casting weights/activations to bf16 (f32 accumulation) is a free extra
    # win on v6e/v7x if looser numerics are acceptable.


# ----------------------------------------------------------------------------
# TCResNet14 structure (mirrors TempNet / TempBlock1 / TempBlock2)
# ----------------------------------------------------------------------------
def build_tcn_block_cfgs(num_inputs, num_channels, kernel_size, use_dilation):
    num_levels = len(num_channels)
    original_rf = [(kernel_size - 1) * 2 ** i + 1 for i in range(num_levels)]
    cfgs = []
    for i in range(num_levels):
        if use_dilation:
            dil = [2 ** i, 2 ** i]
            k = [ceil(original_rf[i] / dil[0]), ceil(original_rf[i] / dil[1])]
        else:
            dil = [1, 1]
            k = [original_rf[i], original_rf[i]]
        ch_in = [num_inputs, num_channels[0]] if i == 0 else [num_channels[i - 1], num_channels[i]]
        ch_out = [num_channels[i], num_channels[i]]
        if i % 2 != 0:   # TempBlock1: dilated convs, stride 1
            cfgs.append(dict(k0=k[0], k1=k[1], dil0=dil[0], dil1=dil[1],
                             stride0=1, stride_d=1,
                             ch_in0=ch_in[0], ch_in1=ch_in[1],
                             ch_out0=ch_out[0], ch_out1=ch_out[1]))
        else:            # TempBlock2: first conv stride 2 (dil 1), downsample stride 2
            cfgs.append(dict(k0=k[0], k1=k[1], dil0=1, dil1=dil[1],
                             stride0=2, stride_d=2,
                             ch_in0=ch_in[0], ch_in1=ch_in[1],
                             ch_out0=ch_out[0], ch_out1=ch_out[1]))
    return cfgs


# ----------------------------------------------------------------------------
# Host-side parameter packing (done once, outside the forward pass).
# ----------------------------------------------------------------------------
def pack_params(params, config, batch):
    def blockdiag_taps(w):                      # (C_out, C_in, K) -> (K, B*C_out, B*C_in)
        c_out, c_in, k = w.shape
        wt = jnp.transpose(w, (2, 0, 1))        # (K, C_out, C_in)
        eye = jnp.eye(batch, dtype=w.dtype)
        big = jnp.einsum('ab,kij->kaibj', eye, wt)
        return big.reshape(k, batch * c_out, batch * c_in)

    def pack_ss(scale, shift):                  # -> (2, B*C, 1)
        c = scale.shape[0]
        return jnp.stack([jnp.tile(scale, batch),
                          jnp.tile(shift, batch)]).reshape(2, batch * c, 1)

    arrays = [blockdiag_taps(params['conv0_w']),
              pack_ss(params['conv0_scale'], params['conv0_shift'])]
    for blk in params['blocks']:
        arrays += [blockdiag_taps(blk['w0']), pack_ss(blk['s0'], blk['sh0']),
                   blockdiag_taps(blk['wd']), pack_ss(blk['sd'], blk['shd']),
                   blockdiag_taps(blk['w1']), pack_ss(blk['s1'], blk['sh1'])]

    # Head: Linear weight indexes a (c, t)-major flatten of the (C, T) feature
    # map; regroup it per time position and make it block-diagonal over batch.
    o, f_in = params['out_w'].shape
    c_last = config['num_channels'][-1]
    t_f = f_in // c_last
    w_t = params['out_w'].reshape(o, c_last, t_f).transpose(2, 0, 1)   # (Tf, O, C)
    eye = jnp.eye(batch, dtype=w_t.dtype)
    wh_big = jnp.einsum('ab,toc->taobc', eye, w_t).reshape(t_f, batch * o, batch * c_last)
    bh_big = jnp.tile(params['out_b'], batch).reshape(batch * o, 1)
    arrays += [wh_big, bh_big]
    return arrays


# ----------------------------------------------------------------------------
# Deterministic parameter initialization (eval-mode BatchNorm folded).
# ----------------------------------------------------------------------------
def _bn_fold(key, c):
    k1, k2, k3, k4 = jax.random.split(key, 4)
    gamma = 1.0 + 0.1 * jax.random.normal(k1, (c,), jnp.float32)
    beta = 0.1 * jax.random.normal(k2, (c,), jnp.float32)
    mean = 0.1 * jax.random.normal(k3, (c,), jnp.float32)
    var = 0.5 + jax.random.uniform(k4, (c,), jnp.float32)
    scale = gamma / jnp.sqrt(var + 1e-5)
    shift = beta - mean * scale
    return scale, shift


def _conv_bn_params(key, c_in, c_out, k):
    kw, kb, kbn = jax.random.split(key, 3)
    w = 0.01 * jax.random.normal(kw, (c_out, c_in, k), jnp.float32)
    b = 0.01 * jax.random.normal(kb, (c_out,), jnp.float32)
    scale, shift = _bn_fold(kbn, c_out)
    return w, scale, shift + scale * b          # conv bias folded into shift


def init_params(key, config):
    nc = config['num_channels']
    keys = jax.random.split(key, 16)
    params = {}

    kw, kb = jax.random.split(keys[0])
    params['conv0_w'] = 0.01 * jax.random.normal(
        kw, (nc[0], config['input_channels'], 3), jnp.float32)
    params['conv0_scale'] = jnp.ones((nc[0],), jnp.float32)
    params['conv0_shift'] = 0.01 * jax.random.normal(kb, (nc[0],), jnp.float32)

    blk_cfgs = build_tcn_block_cfgs(nc[0], nc[1:], config['kernel_size'],
                                    config['use_dilation'])
    blocks = []
    for i, cfg in enumerate(blk_cfgs):
        k0, k1, kd = jax.random.split(keys[1 + i], 3)
        w0, s0, sh0 = _conv_bn_params(k0, cfg['ch_in0'], cfg['ch_out0'], cfg['k0'])
        w1, s1, sh1 = _conv_bn_params(k1, cfg['ch_in1'], cfg['ch_out1'], cfg['k1'])
        wd, sd, shd = _conv_bn_params(kd, cfg['ch_in0'], cfg['ch_out1'], 1)
        blocks.append(dict(w0=w0, s0=s0, sh0=sh0, w1=w1, s1=s1, sh1=sh1,
                           wd=wd, sd=sd, shd=shd))
    params['blocks'] = blocks

    ft_in = 3 if config['avg_pool'] else 6
    f_in = nc[-1] * ft_in
    kw, kb = jax.random.split(keys[10])
    params['out_w'] = 0.1 * jax.random.normal(
        kw, (config['output_size'], f_in), jnp.float32)
    params['out_b'] = 0.1 * jax.random.normal(
        kb, (config['output_size'],), jnp.float32)
    return params, blk_cfgs


# ----------------------------------------------------------------------------
# Pure-JAX reference (mirrors the PyTorch module, eval-mode BN folded).
# ----------------------------------------------------------------------------
def _ref_conv_affine(x, w, scale, shift, dil, stride, relu):
    b, c_in, t = x.shape
    c_out, _, k = w.shape
    pad = (k - 1) * dil
    xp = jnp.pad(x, ((0, 0), (0, 0), (pad, 0)))
    t_out = (t - 1) // stride + 1
    y = jnp.zeros((b, c_out, t_out), jnp.float32)
    for tt in range(k):
        xs = xp[:, :, tt * dil: tt * dil + (t_out - 1) * stride + 1: stride]
        y = y + jnp.einsum('oi,bit->bot', w[:, :, tt], xs)
    y = y * scale[None, :, None] + shift[None, :, None]
    return jnp.maximum(y, 0.0) if relu else y


def reference_forward(x, params, blk_cfgs, config):
    y = _ref_conv_affine(x, params['conv0_w'], params['conv0_scale'],
                         params['conv0_shift'], dil=1, stride=1, relu=False)
    for blk, cfg in zip(params['blocks'], blk_cfgs):
        x1 = _ref_conv_affine(y, blk['w0'], blk['s0'], blk['sh0'],
                              dil=cfg['dil0'], stride=cfg['stride0'], relu=True)
        res = _ref_conv_affine(y, blk['wd'], blk['sd'], blk['shd'],
                               dil=1, stride=cfg['stride_d'], relu=True)
        x2 = _ref_conv_affine(x1, blk['w1'], blk['s1'], blk['sh1'],
                              dil=cfg['dil1'], stride=1, relu=False)
        y = jnp.maximum(x2 + res, 0.0)
    if config['avg_pool']:
        b, c, t = y.shape
        y = y.reshape(b, c, t // 2, 2).mean(axis=-1)
    feats = y.reshape(y.shape[0], -1)
    logits = feats @ params['out_w'].T + params['out_b']
    return jax.nn.log_softmax(logits, axis=-1)


# ----------------------------------------------------------------------------
if __name__ == "__main__":
    config = dict(
        input_channels=4,
        num_channels=[8, 12, 12, 16],   # conv0 out + 3 TCN levels (TB2, TB1, TB2)
        kernel_size=3,
        use_bias=True,
        use_dilation=True,
        avg_pool=True,
        dropout=0.5,
        output_size=10,
    )
    B, T_in = 2, 24                     # T=24 -> /2 -> /2 -> 6 -> avgpool -> 3

    key = jax.random.PRNGKey(0)
    k_param, k_x = jax.random.split(key)
    params, blk_cfgs = init_params(k_param, config)
    packed = pack_params(params, config, batch=B)

    x = jax.random.normal(k_x, (B, config['input_channels'], T_in), jnp.float32)

    out = tcresnet14_forward(x, packed, blk_cfgs, config)
    out = jax.block_until_ready(out)

    ref = reference_forward(x, params, blk_cfgs, config)
    assert out.shape == (B, config['output_size'])
    assert bool(jnp.all(jnp.isfinite(out)))
    assert jnp.allclose(out, ref, atol=2e-3, rtol=2e-3), \
        f"max abs err {jnp.max(jnp.abs(out - ref))}"
    print("KERNEL_OK")
</pallas_src>

<mosaic_0001>
module attributes {stable_mosaic.version = 11 : i64} {
  func.func @_fused_kernel(%arg0: memref<8x24xf32, #tpu.memory_space<vmem>>, %arg1: memref<3x16x8xf32, #tpu.memory_space<vmem>>, %arg2: memref<2x16x1xf32, #tpu.memory_space<vmem>>, %arg3: memref<3x24x16xf32, #tpu.memory_space<vmem>>, %arg4: memref<2x24x1xf32, #tpu.memory_space<vmem>>, %arg5: memref<1x24x16xf32, #tpu.memory_space<vmem>>, %arg6: memref<2x24x1xf32, #tpu.memory_space<vmem>>, %arg7: memref<3x24x24xf32, #tpu.memory_space<vmem>>, %arg8: memref<2x24x1xf32, #tpu.memory_space<vmem>>, %arg9: memref<3x24x24xf32, #tpu.memory_space<vmem>>, %arg10: memref<2x24x1xf32, #tpu.memory_space<vmem>>, %arg11: memref<1x24x24xf32, #tpu.memory_space<vmem>>, %arg12: memref<2x24x1xf32, #tpu.memory_space<vmem>>, %arg13: memref<3x24x24xf32, #tpu.memory_space<vmem>>, %arg14: memref<2x24x1xf32, #tpu.memory_space<vmem>>, %arg15: memref<3x32x24xf32, #tpu.memory_space<vmem>>, %arg16: memref<2x32x1xf32, #tpu.memory_space<vmem>>, %arg17: memref<1x32x24xf32, #tpu.memory_space<vmem>>, %arg18: memref<2x32x1xf32, #tpu.memory_space<vmem>>, %arg19: memref<3x32x32xf32, #tpu.memory_space<vmem>>, %arg20: memref<2x32x1xf32, #tpu.memory_space<vmem>>, %arg21: memref<3x20x32xf32, #tpu.memory_space<vmem>>, %arg22: memref<20x1xf32, #tpu.memory_space<vmem>>, %arg23: memref<2x10xf32, #tpu.memory_space<vmem>>) attributes {dimension_semantics = [], scalar_prefetch = 0 : i64, scratch_operands = 0 : i64, tpu.core_type = #tpu.core_type<tc>} {
    %c0 = arith.constant 0 : index
    %c0_0 = arith.constant 0 : index
    %0 = vector.load %arg0[%c0, %c0_0] : memref<8x24xf32, #tpu.memory_space<vmem>>, vector<8x24xf32>
    %cst = arith.constant 0.000000e+00 : f32
    %1 = vector.broadcast %cst : f32 to vector<16x24xf32>
    %c0_1 = arith.constant 0 : index
    %c0_2 = arith.constant 0 : index
    %c0_3 = arith.constant 0 : index
    %2 = vector.load %arg1[%c0_1, %c0_2, %c0_3] : memref<3x16x8xf32, #tpu.memory_space<vmem>>, vector<1x16x8xf32>
    %3 = vector.shape_cast %2 : vector<1x16x8xf32> to vector<16x8xf32>
    %cst_4 = arith.constant dense<0.000000e+00> : vector<16x24xf32>
    %4 = tpu.matmul %3, %0, %cst_4 {dimension_numbers = #tpu.dot_dimension_numbers<[1], [0], [0], [1], [0, 0, 1, 1], [], []>} : vector<16x8xf32>, vector<8x24xf32>, vector<16x24xf32> -> vector<16x24xf32>
    %5 = tpu.iota {dimensions = array<i32: 0>} : vector<24x24xi32>
    %6 = tpu.iota {dimensions = array<i32: 1>} : vector<24x24xi32>
    %c2_i32 = arith.constant 2 : i32
    %7 = vector.broadcast %c2_i32 : i32 to vector<24x24xi32>
    %8 = arith.addi %5, %7 : vector<24x24xi32>
    %c1_i32 = arith.constant 1 : i32
    %9 = vector.broadcast %c1_i32 : i32 to vector<24x24xi32>
    %10 = arith.muli %6, %9 : vector<24x24xi32>
    %11 = arith.cmpi eq, %8, %10 : vector<24x24xi32>
    %12 = arith.extui %11 : vector<24x24xi1> to vector<24x24xi32>
    %13 = arith.sitofp %12 : vector<24x24xi32> to vector<24x24xf32>
    %cst_5 = arith.constant dense<0.000000e+00> : vector<16x24xf32>
    %14 = tpu.matmul %4, %13, %cst_5 {dimension_numbers = #tpu.dot_dimension_numbers<[1], [0], [0], [1], [0, 0, 1, 1], [], []>} : vector<16x24xf32>, vector<24x24xf32>, vector<16x24xf32> -> vector<16x24xf32>
    %15 = arith.addf %1, %14 : vector<16x24xf32>
    %c1 = arith.constant 1 : index
    %c0_6 = arith.constant 0 : index
    %c0_7 = arith.constant 0 : index
    %16 = vector.load %arg1[%c1, %c0_6, %c0_7] : memref<3x16x8xf32, #tpu.memory_space<vmem>>, vector<1x16x8xf32>
    %17 = vector.shape_cast %16 : vector<1x16x8xf32> to vector<16x8xf32>
    %cst_8 = arith.constant dense<0.000000e+00> : vector<16x24xf32>
    %18 = tpu.matmul %17, %0, %cst_8 {dimension_numbers = #tpu.dot_dimension_numbers<[1], [0], [0], [1], [0, 0, 1, 1], [], []>} : vector<16x8xf32>, vector<8x24xf32>, vector<16x24xf32> -> vector<16x24xf32>
    %19 = tpu.iota {dimensions = array<i32: 0>} : vector<24x24xi32>
    %20 = tpu.iota {dimensions = array<i32: 1>} : vector<24x24xi32>
    %c1_i32_9 = arith.constant 1 : i32
    %21 = vector.broadcast %c1_i32_9 : i32 to vector<24x24xi32>
    %22 = arith.addi %19, %21 : vector<24x24xi32>
    %c1_i32_10 = arith.constant 1 : i32
    %23 = vector.broadcast %c1_i32_10 : i32 to vector<24x24xi32>
    %24 = arith.muli %20, %23 : vector<24x24xi32>
    %25 = arith.cmpi eq, %22, %24 : vector<24x24xi32>
    %26 = arith.extui %25 : vector<24x24xi1> to vector<24x24xi32>
    %27 = arith.sitofp %26 : vector<24x24xi32> to vector<24x24xf32>
    %cst_11 = arith.constant dense<0.000000e+00> : vector<16x24xf32>
    %28 = tpu.matmul %18, %27, %cst_11 {dimension_numbers = #tpu.dot_dimension_numbers<[1], [0], [0], [1], [0, 0, 1, 1], [], []>} : vector<16x24xf32>, vector<24x24xf32>, vector<16x24xf32> -> vector<16x24xf32>
    %29 = arith.addf %15, %28 : vector<16x24xf32>
    %c2 = arith.constant 2 : index
    %c0_12 = arith.constant 0 : index
    %c0_13 = arith.constant 0 : index
    %30 = vector.load %arg1[%c2, %c0_12, %c0_13] : memref<3x16x8xf32, #tpu.memory_space<vmem>>, vector<1x16x8xf32>
    %31 = vector.shape_cast %30 : vector<1x16x8xf32> to vector<16x8xf32>
    %cst_14 = arith.constant dense<0.000000e+00> : vector<16x24xf32>
    %32 = tpu.matmul %31, %0, %cst_14 {dimension_numbers = #tpu.dot_dimension_numbers<[1], [0], [0], [1], [0, 0, 1, 1], [], []>} : vector<16x8xf32>, vector<8x24xf32>, vector<16x24xf32> -> vector<16x24xf32>
    %33 = arith.addf %29, %32 : vector<16x24xf32>
    %c0_15 = arith.constant 0 : index
    %c0_16 = arith.constant 0 : index
    %c0_17 = arith.constant 0 : index
    %34 = vector.load %arg2[%c0_15, %c0_16, %c0_17] : memref<2x16x1xf32, #tpu.memory_space<vmem>>, vector<1x16x1xf32>
    %35 = vector.shape_cast %34 : vector<1x16x1xf32> to vector<16x1xf32>
    %36 = vector.broadcast %35 : vector<16x1xf32> to vector<16x24xf32>
    %37 = arith.mulf %33, %36 : vector<16x24xf32>
    %c1_18 = arith.constant 1 : index
    %c0_19 = arith.constant 0 : index
    %c0_20 = arith.constant 0 : index
    %38 = vector.load %arg2[%c1_18, %c0_19, %c0_20] : memref<2x16x1xf32, #tpu.memory_space<vmem>>, vector<1x16x1xf32>
    %39 = vector.shape_cast %38 : vector<1x16x1xf32> to vector<16x1xf32>
    %40 = vector.broadcast %39 : vector<16x1xf32> to vector<16x24xf32>
    %41 = arith.addf %37, %40 : vector<16x24xf32>
    %cst_21 = arith.constant 0.000000e+00 : f32
    %42 = vector.broadcast %cst_21 : f32 to vector<24x12xf32>
    %c0_22 = arith.constant 0 : index
    %c0_23 = arith.constant 0 : index
    %c0_24 = arith.constant 0 : index
    %43 = vector.load %arg3[%c0_22, %c0_23, %c0_24] : memref<3x24x16xf32, #tpu.memory_space<vmem>>, vector<1x24x16xf32>
    %44 = vector.shape_cast %43 : vector<1x24x16xf32> to vector<24x16xf32>
    %cst_25 = arith.constant dense<0.000000e+00> : vector<24x24xf32>
    %45 = tpu.matmul %44, %41, %cst_25 {dimension_numbers = #tpu.dot_dimension_numbers<[1], [0], [0], [1], [0, 0, 1, 1], [], []>} : vector<24x16xf32>, vector<16x24xf32>, vector<24x24xf32> -> vector<24x24xf32>
    %46 = tpu.iota {dimensions = array<i32: 0>} : vector<24x12xi32>
    %47 = tpu.iota {dimensions = array<i32: 1>} : vector<24x12xi32>
    %c2_i32_26 = arith.constant 2 : i32
    %48 = vector.broadcast %c2_i32_26 : i32 to vector<24x12xi32>
    %49 = arith.addi %46, %48 : vector<24x12xi32>
    %c2_i32_27 = arith.constant 2 : i32
    %50 = vector.broadcast %c2_i32_27 : i32 to vector<24x12xi32>
    %51 = arith.muli %47, %50 : vector<24x12xi32>
    %52 = arith.cmpi eq, %49, %51 : vector<24x12xi32>
    %53 = arith.extui %52 : vector<24x12xi1> to vector<24x12xi32>
    %54 = arith.sitofp %53 : vector<24x12xi32> to vector<24x12xf32>
    %cst_28 = arith.constant dense<0.000000e+00> : vector<24x12xf32>
    %55 = tpu.matmul %45, %54, %cst_28 {dimension_numbers = #tpu.dot_dimension_numbers<[1], [0], [0], [1], [0, 0, 1, 1], [], []>} : vector<24x24xf32>, vector<24x12xf32>, vector<24x12xf32> -> vector<24x12xf32>
    %56 = arith.addf %42, %55 : vector<24x12xf32>
    %c1_29 = arith.constant 1 : index
    %c0_30 = arith.constant 0 : index
    %c0_31 = arith.constant 0 : index
    %57 = vector.load %arg3[%c1_29, %c0_30, %c0_31] : memref<3x24x16xf32, #tpu.memory_space<vmem>>, vector<1x24x16xf32>
    %58 = vector.shape_cast %57 : vector<1x24x16xf32> to vector<24x16xf32>
    %cst_32 = arith.constant dense<0.000000e+00> : vector<24x24xf32>
    %59 = tpu.matmul %58, %41, %cst_32 {dimension_numbers = #tpu.dot_dimension_numbers<[1], [0], [0], [1], [0, 0, 1, 1], [], []>} : vector<24x16xf32>, vector<16x24xf32>, vector<24x24xf32> -> vector<24x24xf32>
    %60 = tpu.iota {dimensions = array<i32: 0>} : vector<24x12xi32>
    %61 = tpu.iota {dimensions = array<i32: 1>} : vector<24x12xi32>
    %c1_i32_33 = arith.constant 1 : i32
    %62 = vector.broadcast %c1_i32_33 : i32 to vector<24x12xi32>
    %63 = arith.addi %60, %62 : vector<24x12xi32>
    %c2_i32_34 = arith.constant 2 : i32
    %64 = vector.broadcast %c2_i32_34 : i32 to vector<24x12xi32>
    %65 = arith.muli %61, %64 : vector<24x12xi32>
    %66 = arith.cmpi eq, %63, %65 : vector<24x12xi32>
    %67 = arith.extui %66 : vector<24x12xi1> to vector<24x12xi32>
    %68 = arith.sitofp %67 : vector<24x12xi32> to vector<24x12xf32>
    %cst_35 = arith.constant dense<0.000000e+00> : vector<24x12xf32>
    %69 = tpu.matmul %59, %68, %cst_35 {dimension_numbers = #tpu.dot_dimension_numbers<[1], [0], [0], [1], [0, 0, 1, 1], [], []>} : vector<24x24xf32>, vector<24x12xf32>, vector<24x12xf32> -> vector<24x12xf32>
    %70 = arith.addf %56, %69 : vector<24x12xf32>
    %c2_36 = arith.constant 2 : index
    %c0_37 = arith.constant 0 : index
    %c0_38 = arith.constant 0 : index
    %71 = vector.load %arg3[%c2_36, %c0_37, %c0_38] : memref<3x24x16xf32, #tpu.memory_space<vmem>>, vector<1x24x16xf32>
    %72 = vector.shape_cast %71 : vector<1x24x16xf32> to vector<24x16xf32>
    %cst_39 = arith.constant dense<0.000000e+00> : vector<24x24xf32>
    %73 = tpu.matmul %72, %41, %cst_39 {dimension_numbers = #tpu.dot_dimension_numbers<[1], [0], [0], [1], [0, 0, 1, 1], [], []>} : vector<24x16xf32>, vector<16x24xf32>, vector<24x24xf32> -> vector<24x24xf32>
    %74 = tpu.iota {dimensions = array<i32: 0>} : vector<24x12xi32>
    %75 = tpu.iota {dimensions = array<i32: 1>} : vector<24x12xi32>
    %c0_i32 = arith.constant 0 : i32
    %76 = vector.broadcast %c0_i32 : i32 to vector<24x12xi32>
    %77 = arith.addi %74, %76 : vector<24x12xi32>
    %c2_i32_40 = arith.constant 2 : i32
    %78 = vector.broadcast %c2_i32_40 : i32 to vector<24x12xi32>
    %79 = arith.muli %75, %78 : vector<24x12xi32>
    %80 = arith.cmpi eq, %77, %79 : vector<24x12xi32>
    %81 = arith.extui %80 : vector<24x12xi1> to vector<24x12xi32>
    %82 = arith.sitofp %81 : vector<24x12xi32> to vector<24x12xf32>
    %cst_41 = arith.constant dense<0.000000e+00> : vector<24x12xf32>
    %83 = tpu.matmul %73, %82, %cst_41 {dimension_numbers = #tpu.dot_dimension_numbers<[1], [0], [0], [1], [0, 0, 1, 1], [], []>} : vector<24x24xf32>, vector<24x12xf32>, vector<24x12xf32> -> vector<24x12xf32>
    %84 = arith.addf %70, %83 : vector<24x12xf32>
    %c0_42 = arith.constant 0 : index
    %c0_43 = arith.constant 0 : index
    %c0_44 = arith.constant 0 : index
    %85 = vector.load %arg4[%c0_42, %c0_43, %c0_44] : memref<2x24x1xf32, #tpu.memory_space<vmem>>, vector<1x24x1xf32>
    %86 = vector.shape_cast %85 : vector<1x24x1xf32> to vector<24x1xf32>
    %87 = vector.broadcast %86 : vector<24x1xf32> to vector<24x12xf32>
    %88 = arith.mulf %84, %87 : vector<24x12xf32>
    %c1_45 = arith.constant 1 : index
    %c0_46 = arith.constant 0 : index
    %c0_47 = arith.constant 0 : index
    %89 = vector.load %arg4[%c1_45, %c0_46, %c0_47] : memref<2x24x1xf32, #tpu.memory_space<vmem>>, vector<1x24x1xf32>
    %90 = vector.shape_cast %89 : vector<1x24x1xf32> to vector<24x1xf32>
    %91 = vector.broadcast %90 : vector<24x1xf32> to vector<24x12xf32>
    %92 = arith.addf %88, %91 : vector<24x12xf32>
    %cst_48 = arith.constant 0.000000e+00 : f32
    %93 = vector.broadcast %cst_48 : f32 to vector<24x12xf32>
    %94 = arith.maximumf %92, %93 : vector<24x12xf32>
    %cst_49 = arith.constant 0.000000e+00 : f32
    %95 = vector.broadcast %cst_49 : f32 to vector<24x12xf32>
    %c0_50 = arith.constant 0 : index
    %c0_51 = arith.constant 0 : index
    %c0_52 = arith.constant 0 : index
    %96 = vector.load %arg5[%c0_50, %c0_51, %c0_52] : memref<1x24x16xf32, #tpu.memory_space<vmem>>, vector<1x24x16xf32>
    %97 = vector.shape_cast %96 : vector<1x24x16xf32> to vector<24x16xf32>
    %cst_53 = arith.constant dense<0.000000e+00> : vector<24x24xf32>
    %98 = tpu.matmul %97, %41, %cst_53 {dimension_numbers = #tpu.dot_dimension_numbers<[1], [0], [0], [1], [0, 0, 1, 1], [], []>} : vector<24x16xf32>, vector<16x24xf32>, vector<24x24xf32> -> vector<24x24xf32>
    %99 = tpu.iota {dimensions = array<i32: 0>} : vector<24x12xi32>
    %100 = tpu.iota {dimensions = array<i32: 1>} : vector<24x12xi32>
    %c0_i32_54 = arith.constant 0 : i32
    %101 = vector.broadcast %c0_i32_54 : i32 to vector<24x12xi32>
    %102 = arith.addi %99, %101 : vector<24x12xi32>
    %c2_i32_55 = arith.constant 2 : i32
    %103 = vector.broadcast %c2_i32_55 : i32 to vector<24x12xi32>
    %104 = arith.muli %100, %103 : vector<24x12xi32>
    %105 = arith.cmpi eq, %102, %104 : vector<24x12xi32>
    %106 = arith.extui %105 : vector<24x12xi1> to vector<24x12xi32>
    %107 = arith.sitofp %106 : vector<24x12xi32> to vector<24x12xf32>
    %cst_56 = arith.constant dense<0.000000e+00> : vector<24x12xf32>
    %108 = tpu.matmul %98, %107, %cst_56 {dimension_numbers = #tpu.dot_dimension_numbers<[1], [0], [0], [1], [0, 0, 1, 1], [], []>} : vector<24x24xf32>, vector<24x12xf32>, vector<24x12xf32> -> vector<24x12xf32>
    %109 = arith.addf %95, %108 : vector<24x12xf32>
    %c0_57 = arith.constant 0 : index
    %c0_58 = arith.constant 0 : index
    %c0_59 = arith.constant 0 : index
    %110 = vector.load %arg6[%c0_57, %c0_58, %c0_59] : memref<2x24x1xf32, #tpu.memory_space<vmem>>, vector<1x24x1xf32>
    %111 = vector.shape_cast %110 : vector<1x24x1xf32> to vector<24x1xf32>
    %112 = vector.broadcast %111 : vector<24x1xf32> to vector<24x12xf32>
    %113 = arith.mulf %109, %112 : vector<24x12xf32>
    %c1_60 = arith.constant 1 : index
    %c0_61 = arith.constant 0 : index
    %c0_62 = arith.constant 0 : index
    %114 = vector.load %arg6[%c1_60, %c0_61, %c0_62] : memref<2x24x1xf32, #tpu.memory_space<vmem>>, vector<1x24x1xf32>
    %115 = vector.shape_cast %114 : vector<1x24x1xf32> to vector<24x1xf32>
    %116 = vector.broadcast %115 : vector<24x1xf32> to vector<24x12xf32>
    %117 = arith.addf %113, %116 : vector<24x12xf32>
    %cst_63 = arith.constant 0.000000e+00 : f32
    %118 = vector.broadcast %cst_63 : f32 to vector<24x12xf32>
    %119 = arith.maximumf %117, %118 : vector<24x12xf32>
    %cst_64 = arith.constant 0.000000e+00 : f32
    %120 = vector.broadcast %cst_64 : f32 to vector<24x12xf32>
    %c0_65 = arith.constant 0 : index
    %c0_66 = arith.constant 0 : index
    %c0_67 = arith.constant 0 : index
    %121 = vector.load %arg7[%c0_65, %c0_66, %c0_67] : memref<3x24x24xf32, #tpu.memory_space<vmem>>, vector<1x24x24xf32>
    %122 = vector.shape_cast %121 : vector<1x24x24xf32> to vector<24x24xf32>
    %cst_68 = arith.constant dense<0.000000e+00> : vector<24x12xf32>
    %123 = tpu.matmul %122, %94, %cst_68 {dimension_numbers = #tpu.dot_dimension_numbers<[1], [0], [0], [1], [0, 0, 1, 1], [], []>} : vector<24x24xf32>, vector<24x12xf32>, vector<24x12xf32> -> vector<24x12xf32>
    %124 = tpu.iota {dimensions = array<i32: 0>} : vector<12x12xi32>
    %125 = tpu.iota {dimensions = array<i32: 1>} : vector<12x12xi32>
    %c2_i32_69 = arith.constant 2 : i32
    %126 = vector.broadcast %c2_i32_69 : i32 to vector<12x12xi32>
    %127 = arith.addi %124, %126 : vector<12x12xi32>
    %c1_i32_70 = arith.constant 1 : i32
    %128 = vector.broadcast %c1_i32_70 : i32 to vector<12x12xi32>
    %129 = arith.muli %125, %128 : vector<12x12xi32>
    %130 = arith.cmpi eq, %127, %129 : vector<12x12xi32>
    %131 = arith.extui %130 : vector<12x12xi1> to vector<12x12xi32>
    %132 = arith.sitofp %131 : vector<12x12xi32> to vector<12x12xf32>
    %cst_71 = arith.constant dense<0.000000e+00> : vector<24x12xf32>
    %133 = tpu.matmul %123, %132, %cst_71 {dimension_numbers = #tpu.dot_dimension_numbers<[1], [0], [0], [1], [0, 0, 1, 1], [], []>} : vector<24x12xf32>, vector<12x12xf32>, vector<24x12xf32> -> vector<24x12xf32>
    %134 = arith.addf %120, %133 : vector<24x12xf32>
    %c1_72 = arith.constant 1 : index
    %c0_73 = arith.constant 0 : index
    %c0_74 = arith.constant 0 : index
    %135 = vector.load %arg7[%c1_72, %c0_73, %c0_74] : memref<3x24x24xf32, #tpu.memory_space<vmem>>, vector<1x24x24xf32>
    %136 = vector.shape_cast %135 : vector<1x24x24xf32> to vector<24x24xf32>
    %cst_75 = arith.constant dense<0.000000e+00> : vector<24x12xf32>
    %137 = tpu.matmul %136, %94, %cst_75 {dimension_numbers = #tpu.dot_dimension_numbers<[1], [0], [0], [1], [0, 0, 1, 1], [], []>} : vector<24x24xf32>, vector<24x12xf32>, vector<24x12xf32> -> vector<24x12xf32>
    %138 = tpu.iota {dimensions = array<i32: 0>} : vector<12x12xi32>
    %139 = tpu.iota {dimensions = array<i32: 1>} : vector<12x12xi32>
    %c1_i32_76 = arith.constant 1 : i32
    %140 = vector.broadcast %c1_i32_76 : i32 to vector<12x12xi32>
    %141 = arith.addi %138, %140 : vector<12x12xi32>
    %c1_i32_77 = arith.constant 1 : i32
    %142 = vector.broadcast %c1_i32_77 : i32 to vector<12x12xi32>
    %143 = arith.muli %139, %142 : vector<12x12xi32>
    %144 = arith.cmpi eq, %141, %143 : vector<12x12xi32>
    %145 = arith.extui %144 : vector<12x12xi1> to vector<12x12xi32>
    %146 = arith.sitofp %145 : vector<12x12xi32> to vector<12x12xf32>
    %cst_78 = arith.constant dense<0.000000e+00> : vector<24x12xf32>
    %147 = tpu.matmul %137, %146, %cst_78 {dimension_numbers = #tpu.dot_dimension_numbers<[1], [0], [0], [1], [0, 0, 1, 1], [], []>} : vector<24x12xf32>, vector<12x12xf32>, vector<24x12xf32> -> vector<24x12xf32>
    %148 = arith.addf %134, %147 : vector<24x12xf32>
    %c2_79 = arith.constant 2 : index
    %c0_80 = arith.constant 0 : index
    %c0_81 = arith.constant 0 : index
    %149 = vector.load %arg7[%c2_79, %c0_80, %c0_81] : memref<3x24x24xf32, #tpu.memory_space<vmem>>, vector<1x24x24xf32>
    %150 = vector.shape_cast %149 : vector<1x24x24xf32> to vector<24x24xf32>
    %cst_82 = arith.constant dense<0.000000e+00> : vector<24x12xf32>
    %151 = tpu.matmul %150, %94, %cst_82 {dimension_numbers = #tpu.dot_dimension_numbers<[1], [0], [0], [1], [0, 0, 1, 1], [], []>} : vector<24x24xf32>, vector<24x12xf32>, vector<24x12xf32> -> vector<24x12xf32>
    %152 = arith.addf %148, %151 : vector<24x12xf32>
    %c0_83 = arith.constant 0 : index
    %c0_84 = arith.constant 0 : index
    %c0_85 = arith.constant 0 : index
    %153 = vector.load %arg8[%c0_83, %c0_84, %c0_85] : memref<2x24x1xf32, #tpu.memory_space<vmem>>, vector<1x24x1xf32>
    %154 = vector.shape_cast %153 : vector<1x24x1xf32> to vector<24x1xf32>
    %155 = vector.broadcast %154 : vector<24x1xf32> to vector<24x12xf32>
    %156 = arith.mulf %152, %155 : vector<24x12xf32>
    %c1_86 = arith.constant 1 : index
    %c0_87 = arith.constant 0 : index
    %c0_88 = arith.constant 0 : index
    %157 = vector.load %arg8[%c1_86, %c0_87, %c0_88] : memref<2x24x1xf32, #tpu.memory_space<vmem>>, vector<1x24x1xf32>
    %158 = vector.shape_cast %157 : vector<1x24x1xf32> to vector<24x1xf32>
    %159 = vector.broadcast %158 : vector<24x1xf32> to vector<24x12xf32>
    %160 = arith.addf %156, %159 : vector<24x12xf32>
    %161 = arith.addf %160, %119 : vector<24x12xf32>
    %cst_89 = arith.constant 0.000000e+00 : f32
    %162 = vector.broadcast %cst_89 : f32 to vector<24x12xf32>
    %163 = arith.maximumf %161, %162 : vector<24x12xf32>
    %cst_90 = arith.constant 0.000000e+00 : f32
    %164 = vector.broadcast %cst_90 : f32 to vector<24x12xf32>
    %c0_91 = arith.constant 0 : index
    %c0_92 = arith.constant 0 : index
    %c0_93 = arith.constant 0 : index
    %165 = vector.load %arg9[%c0_91, %c0_92, %c0_93] : memref<3x24x24xf32, #tpu.memory_space<vmem>>, vector<1x24x24xf32>
    %166 = vector.shape_cast %165 : vector<1x24x24xf32> to vector<24x24xf32>
    %cst_94 = arith.constant dense<0.000000e+00> : vector<24x12xf32>
    %167 = tpu.matmul %166, %163, %cst_94 {dimension_numbers = #tpu.dot_dimension_numbers<[1], [0], [0], [1], [0, 0, 1, 1], [], []>} : vector<24x24xf32>, vector<24x12xf32>, vector<24x12xf32> -> vector<24x12xf32>
    %168 = tpu.iota {dimensions = array<i32: 0>} : vector<12x12xi32>
    %169 = tpu.iota {dimensions = array<i32: 1>} : vector<12x12xi32>
    %c4_i32 = arith.constant 4 : i32
    %170 = vector.broadcast %c4_i32 : i32 to vector<12x12xi32>
    %171 = arith.addi %168, %170 : vector<12x12xi32>
    %c1_i32_95 = arith.constant 1 : i32
    %172 = vector.broadcast %c1_i32_95 : i32 to vector<12x12xi32>
    %173 = arith.muli %169, %172 : vector<12x12xi32>
    %174 = arith.cmpi eq, %171, %173 : vector<12x12xi32>
    %175 = arith.extui %174 : vector<12x12xi1> to vector<12x12xi32>
    %176 = arith.sitofp %175 : vector<12x12xi32> to vector<12x12xf32>
    %cst_96 = arith.constant dense<0.000000e+00> : vector<24x12xf32>
    %177 = tpu.matmul %167, %176, %cst_96 {dimension_numbers = #tpu.dot_dimension_numbers<[1], [0], [0], [1], [0, 0, 1, 1], [], []>} : vector<24x12xf32>, vector<12x12xf32>, vector<24x12xf32> -> vector<24x12xf32>
    %178 = arith.addf %164, %177 : vector<24x12xf32>
    %c1_97 = arith.constant 1 : index
    %c0_98 = arith.constant 0 : index
    %c0_99 = arith.constant 0 : index
    %179 = vector.load %arg9[%c1_97, %c0_98, %c0_99] : memref<3x24x24xf32, #tpu.memory_space<vmem>>, vector<1x24x24xf32>
    %180 = vector.shape_cast %179 : vector<1x24x24xf32> to vector<24x24xf32>
    %cst_100 = arith.constant dense<0.000000e+00> : vector<24x12xf32>
    %181 = tpu.matmul %180, %163, %cst_100 {dimension_numbers = #tpu.dot_dimension_numbers<[1], [0], [0], [1], [0, 0, 1, 1], [], []>} : vector<24x24xf32>, vector<24x12xf32>, vector<24x12xf32> -> vector<24x12xf32>
    %182 = tpu.iota {dimensions = array<i32: 0>} : vector<12x12xi32>
    %183 = tpu.iota {dimensions = array<i32: 1>} : vector<12x12xi32>
    %c2_i32_101 = arith.constant 2 : i32
    %184 = vector.broadcast %c2_i32_101 : i32 to vector<12x12xi32>
    %185 = arith.addi %182, %184 : vector<12x12xi32>
    %c1_i32_102 = arith.constant 1 : i32
    %186 = vector.broadcast %c1_i32_102 : i32 to vector<12x12xi32>
    %187 = arith.muli %183, %186 : vector<12x12xi32>
    %188 = arith.cmpi eq, %185, %187 : vector<12x12xi32>
    %189 = arith.extui %188 : vector<12x12xi1> to vector<12x12xi32>
    %190 = arith.sitofp %189 : vector<12x12xi32> to vector<12x12xf32>
    %cst_103 = arith.constant dense<0.000000e+00> : vector<24x12xf32>
    %191 = tpu.matmul %181, %190, %cst_103 {dimension_numbers = #tpu.dot_dimension_numbers<[1], [0], [0], [1], [0, 0, 1, 1], [], []>} : vector<24x12xf32>, vector<12x12xf32>, vector<24x12xf32> -> vector<24x12xf32>
    %192 = arith.addf %178, %191 : vector<24x12xf32>
    %c2_104 = arith.constant 2 : index
    %c0_105 = arith.constant 0 : index
    %c0_106 = arith.constant 0 : index
    %193 = vector.load %arg9[%c2_104, %c0_105, %c0_106] : memref<3x24x24xf32, #tpu.memory_space<vmem>>, vector<1x24x24xf32>
    %194 = vector.shape_cast %193 : vector<1x24x24xf32> to vector<24x24xf32>
    %cst_107 = arith.constant dense<0.000000e+00> : vector<24x12xf32>
    %195 = tpu.matmul %194, %163, %cst_107 {dimension_numbers = #tpu.dot_dimension_numbers<[1], [0], [0], [1], [0, 0, 1, 1], [], []>} : vector<24x24xf32>, vector<24x12xf32>, vector<24x12xf32> -> vector<24x12xf32>
    %196 = arith.addf %192, %195 : vector<24x12xf32>
    %c0_108 = arith.constant 0 : index
    %c0_109 = arith.constant 0 : index
    %c0_110 = arith.constant 0 : index
    %197 = vector.load %arg10[%c0_108, %c0_109, %c0_110] : memref<2x24x1xf32, #tpu.memory_space<vmem>>, vector<1x24x1xf32>
    %198 = vector.shape_cast %197 : vector<1x24x1xf32> to vector<24x1xf32>
    %199 = vector.broadcast %198 : vector<24x1xf32> to vector<24x12xf32>
    %200 = arith.mulf %196, %199 : vector<24x12xf32>
    %c1_111 = arith.constant 1 : index
    %c0_112 = arith.constant 0 : index
    %c0_113 = arith.constant 0 : index
    %201 = vector.load %arg10[%c1_111, %c0_112, %c0_113] : memref<2x24x1xf32, #tpu.memory_space<vmem>>, vector<1x24x1xf32>
    %202 = vector.shape_cast %201 : vector<1x24x1xf32> to vector<24x1xf32>
    %203 = vector.broadcast %202 : vector<24x1xf32> to vector<24x12xf32>
    %204 = arith.addf %200, %203 : vector<24x12xf32>
    %cst_114 = arith.constant 0.000000e+00 : f32
    %205 = vector.broadcast %cst_114 : f32 to vector<24x12xf32>
    %206 = arith.maximumf %204, %205 : vector<24x12xf32>
    %cst_115 = arith.constant 0.000000e+00 : f32
    %207 = vector.broadcast %cst_115 : f32 to vector<24x12xf32>
    %c0_116 = arith.constant 0 : index
    %c0_117 = arith.constant 0 : index
    %c0_118 = arith.constant 0 : index
    %208 = vector.load %arg11[%c0_116, %c0_117, %c0_118] : memref<1x24x24xf32, #tpu.memory_space<vmem>>, vector<1x24x24xf32>
    %209 = vector.shape_cast %208 : vector<1x24x24xf32> to vector<24x24xf32>
    %cst_119 = arith.constant dense<0.000000e+00> : vector<24x12xf32>
    %210 = tpu.matmul %209, %163, %cst_119 {dimension_numbers = #tpu.dot_dimension_numbers<[1], [0], [0], [1], [0, 0, 1, 1], [], []>} : vector<24x24xf32>, vector<24x12xf32>, vector<24x12xf32> -> vector<24x12xf32>
    %211 = arith.addf %207, %210 : vector<24x12xf32>
    %c0_120 = arith.constant 0 : index
    %c0_121 = arith.constant 0 : index
    %c0_122 = arith.constant 0 : index
    %212 = vector.load %arg12[%c0_120, %c0_121, %c0_122] : memref<2x24x1xf32, #tpu.memory_space<vmem>>, vector<1x24x1xf32>
    %213 = vector.shape_cast %212 : vector<1x24x1xf32> to vector<24x1xf32>
    %214 = vector.broadcast %213 : vector<24x1xf32> to vector<24x12xf32>
    %215 = arith.mulf %211, %214 : vector<24x12xf32>
    %c1_123 = arith.constant 1 : index
    %c0_124 = arith.constant 0 : index
    %c0_125 = arith.constant 0 : index
    %216 = vector.load %arg12[%c1_123, %c0_124, %c0_125] : memref<2x24x1xf32, #tpu.memory_space<vmem>>, vector<1x24x1xf32>
    %217 = vector.shape_cast %216 : vector<1x24x1xf32> to vector<24x1xf32>
    %218 = vector.broadcast %217 : vector<24x1xf32> to vector<24x12xf32>
    %219 = arith.addf %215, %218 : vector<24x12xf32>
    %cst_126 = arith.constant 0.000000e+00 : f32
    %220 = vector.broadcast %cst_126 : f32 to vector<24x12xf32>
    %221 = arith.maximumf %219, %220 : vector<24x12xf32>
    %cst_127 = arith.constant 0.000000e+00 : f32
    %222 = vector.broadcast %cst_127 : f32 to vector<24x12xf32>
    %c0_128 = arith.constant 0 : index
    %c0_129 = arith.constant 0 : index
    %c0_130 = arith.constant 0 : index
    %223 = vector.load %arg13[%c0_128, %c0_129, %c0_130] : memref<3x24x24xf32, #tpu.memory_space<vmem>>, vector<1x24x24xf32>
    %224 = vector.shape_cast %223 : vector<1x24x24xf32> to vector<24x24xf32>
    %cst_131 = arith.constant dense<0.000000e+00> : vector<24x12xf32>
    %225 = tpu.matmul %224, %206, %cst_131 {dimension_numbers = #tpu.dot_dimension_numbers<[1], [0], [0], [1], [0, 0, 1, 1], [], []>} : vector<24x24xf32>, vector<24x12xf32>, vector<24x12xf32> -> vector<24x12xf32>
    %226 = tpu.iota {dimensions = array<i32: 0>} : vector<12x12xi32>
    %227 = tpu.iota {dimensions = array<i32: 1>} : vector<12x12xi32>
    %c4_i32_132 = arith.constant 4 : i32
    %228 = vector.broadcast %c4_i32_132 : i32 to vector<12x12xi32>
    %229 = arith.addi %226, %228 : vector<12x12xi32>
    %c1_i32_133 = arith.constant 1 : i32
    %230 = vector.broadcast %c1_i32_133 : i32 to vector<12x12xi32>
    %231 = arith.muli %227, %230 : vector<12x12xi32>
    %232 = arith.cmpi eq, %229, %231 : vector<12x12xi32>
    %233 = arith.extui %232 : vector<12x12xi1> to vector<12x12xi32>
    %234 = arith.sitofp %233 : vector<12x12xi32> to vector<12x12xf32>
    %cst_134 = arith.constant dense<0.000000e+00> : vector<24x12xf32>
    %235 = tpu.matmul %225, %234, %cst_134 {dimension_numbers = #tpu.dot_dimension_numbers<[1], [0], [0], [1], [0, 0, 1, 1], [], []>} : vector<24x12xf32>, vector<12x12xf32>, vector<24x12xf32> -> vector<24x12xf32>
    %236 = arith.addf %222, %235 : vector<24x12xf32>
    %c1_135 = arith.constant 1 : index
    %c0_136 = arith.constant 0 : index
    %c0_137 = arith.constant 0 : index
    %237 = vector.load %arg13[%c1_135, %c0_136, %c0_137] : memref<3x24x24xf32, #tpu.memory_space<vmem>>, vector<1x24x24xf32>
    %238 = vector.shape_cast %237 : vector<1x24x24xf32> to vector<24x24xf32>
    %cst_138 = arith.constant dense<0.000000e+00> : vector<24x12xf32>
    %239 = tpu.matmul %238, %206, %cst_138 {dimension_numbers = #tpu.dot_dimension_numbers<[1], [0], [0], [1], [0, 0, 1, 1], [], []>} : vector<24x24xf32>, vector<24x12xf32>, vector<24x12xf32> -> vector<24x12xf32>
    %240 = tpu.iota {dimensions = array<i32: 0>} : vector<12x12xi32>
    %241 = tpu.iota {dimensions = array<i32: 1>} : vector<12x12xi32>
    %c2_i32_139 = arith.constant 2 : i32
    %242 = vector.broadcast %c2_i32_139 : i32 to vector<12x12xi32>
    %243 = arith.addi %240, %242 : vector<12x12xi32>
    %c1_i32_140 = arith.constant 1 : i32
    %244 = vector.broadcast %c1_i32_140 : i32 to vector<12x12xi32>
    %245 = arith.muli %241, %244 : vector<12x12xi32>
    %246 = arith.cmpi eq, %243, %245 : vector<12x12xi32>
    %247 = arith.extui %246 : vector<12x12xi1> to vector<12x12xi32>
    %248 = arith.sitofp %247 : vector<12x12xi32> to vector<12x12xf32>
    %cst_141 = arith.constant dense<0.000000e+00> : vector<24x12xf32>
    %249 = tpu.matmul %239, %248, %cst_141 {dimension_numbers = #tpu.dot_dimension_numbers<[1], [0], [0], [1], [0, 0, 1, 1], [], []>} : vector<24x12xf32>, vector<12x12xf32>, vector<24x12xf32> -> vector<24x12xf32>
    %250 = arith.addf %236, %249 : vector<24x12xf32>
    %c2_142 = arith.constant 2 : index
    %c0_143 = arith.constant 0 : index
    %c0_144 = arith.constant 0 : index
    %251 = vector.load %arg13[%c2_142, %c0_143, %c0_144] : memref<3x24x24xf32, #tpu.memory_space<vmem>>, vector<1x24x24xf32>
    %252 = vector.shape_cast %251 : vector<1x24x24xf32> to vector<24x24xf32>
    %cst_145 = arith.constant dense<0.000000e+00> : vector<24x12xf32>
    %253 = tpu.matmul %252, %206, %cst_145 {dimension_numbers = #tpu.dot_dimension_numbers<[1], [0], [0], [1], [0, 0, 1, 1], [], []>} : vector<24x24xf32>, vector<24x12xf32>, vector<24x12xf32> -> vector<24x12xf32>
    %254 = arith.addf %250, %253 : vector<24x12xf32>
    %c0_146 = arith.constant 0 : index
    %c0_147 = arith.constant 0 : index
    %c0_148 = arith.constant 0 : index
    %255 = vector.load %arg14[%c0_146, %c0_147, %c0_148] : memref<2x24x1xf32, #tpu.memory_space<vmem>>, vector<1x24x1xf32>
    %256 = vector.shape_cast %255 : vector<1x24x1xf32> to vector<24x1xf32>
    %257 = vector.broadcast %256 : vector<24x1xf32> to vector<24x12xf32>
    %258 = arith.mulf %254, %257 : vector<24x12xf32>
    %c1_149 = arith.constant 1 : index
    %c0_150 = arith.constant 0 : index
    %c0_151 = arith.constant 0 : index
    %259 = vector.load %arg14[%c1_149, %c0_150, %c0_151] : memref<2x24x1xf32, #tpu.memory_space<vmem>>, vector<1x24x1xf32>
    %260 = vector.shape_cast %259 : vector<1x24x1xf32> to vector<24x1xf32>
    %261 = vector.broadcast %260 : vector<24x1xf32> to vector<24x12xf32>
    %262 = arith.addf %258, %261 : vector<24x12xf32>
    %263 = arith.addf %262, %221 : vector<24x12xf32>
    %cst_152 = arith.constant 0.000000e+00 : f32
    %264 = vector.broadcast %cst_152 : f32 to vector<24x12xf32>
    %265 = arith.maximumf %263, %264 : vector<24x12xf32>
    %cst_153 = arith.constant 0.000000e+00 : f32
    %266 = vector.broadcast %cst_153 : f32 to vector<32x6xf32>
    %c0_154 = arith.constant 0 : index
    %c0_155 = arith.constant 0 : index
    %c0_156 = arith.constant 0 : index
    %267 = vector.load %arg15[%c0_154, %c0_155, %c0_156] : memref<3x32x24xf32, #tpu.memory_space<vmem>>, vector<1x32x24xf32>
    %268 = vector.shape_cast %267 : vector<1x32x24xf32> to vector<32x24xf32>
    %cst_157 = arith.constant dense<0.000000e+00> : vector<32x12xf32>
    %269 = tpu.matmul %268, %265, %cst_157 {dimension_numbers = #tpu.dot_dimension_numbers<[1], [0], [0], [1], [0, 0, 1, 1], [], []>} : vector<32x24xf32>, vector<24x12xf32>, vector<32x12xf32> -> vector<32x12xf32>
    %270 = tpu.iota {dimensions = array<i32: 0>} : vector<12x6xi32>
    %271 = tpu.iota {dimensions = array<i32: 1>} : vector<12x6xi32>
    %c2_i32_158 = arith.constant 2 : i32
    %272 = vector.broadcast %c2_i32_158 : i32 to vector<12x6xi32>
    %273 = arith.addi %270, %272 : vector<12x6xi32>
    %c2_i32_159 = arith.constant 2 : i32
    %274 = vector.broadcast %c2_i32_159 : i32 to vector<12x6xi32>
    %275 = arith.muli %271, %274 : vector<12x6xi32>
    %276 = arith.cmpi eq, %273, %275 : vector<12x6xi32>
    %277 = arith.extui %276 : vector<12x6xi1> to vector<12x6xi32>
    %278 = arith.sitofp %277 : vector<12x6xi32> to vector<12x6xf32>
    %cst_160 = arith.constant dense<0.000000e+00> : vector<32x6xf32>
    %279 = tpu.matmul %269, %278, %cst_160 {dimension_numbers = #tpu.dot_dimension_numbers<[1], [0], [0], [1], [0, 0, 1, 1], [], []>} : vector<32x12xf32>, vector<12x6xf32>, vector<32x6xf32> -> vector<32x6xf32>
    %280 = arith.addf %266, %279 : vector<32x6xf32>
    %c1_161 = arith.constant 1 : index
    %c0_162 = arith.constant 0 : index
    %c0_163 = arith.constant 0 : index
    %281 = vector.load %arg15[%c1_161, %c0_162, %c0_163] : memref<3x32x24xf32, #tpu.memory_space<vmem>>, vector<1x32x24xf32>
    %282 = vector.shape_cast %281 : vector<1x32x24xf32> to vector<32x24xf32>
    %cst_164 = arith.constant dense<0.000000e+00> : vector<32x12xf32>
    %283 = tpu.matmul %282, %265, %cst_164 {dimension_numbers = #tpu.dot_dimension_numbers<[1], [0], [0], [1], [0, 0, 1, 1], [], []>} : vector<32x24xf32>, vector<24x12xf32>, vector<32x12xf32> -> vector<32x12xf32>
    %284 = tpu.iota {dimensions = array<i32: 0>} : vector<12x6xi32>
    %285 = tpu.iota {dimensions = array<i32: 1>} : vector<12x6xi32>
    %c1_i32_165 = arith.constant 1 : i32
    %286 = vector.broadcast %c1_i32_165 : i32 to vector<12x6xi32>
    %287 = arith.addi %284, %286 : vector<12x6xi32>
    %c2_i32_166 = arith.constant 2 : i32
    %288 = vector.broadcast %c2_i32_166 : i32 to vector<12x6xi32>
    %289 = arith.muli %285, %288 : vector<12x6xi32>
    %290 = arith.cmpi eq, %287, %289 : vector<12x6xi32>
    %291 = arith.extui %290 : vector<12x6xi1> to vector<12x6xi32>
    %292 = arith.sitofp %291 : vector<12x6xi32> to vector<12x6xf32>
    %cst_167 = arith.constant dense<0.000000e+00> : vector<32x6xf32>
    %293 = tpu.matmul %283, %292, %cst_167 {dimension_numbers = #tpu.dot_dimension_numbers<[1], [0], [0], [1], [0, 0, 1, 1], [], []>} : vector<32x12xf32>, vector<12x6xf32>, vector<32x6xf32> -> vector<32x6xf32>
    %294 = arith.addf %280, %293 : vector<32x6xf32>
    %c2_168 = arith.constant 2 : index
    %c0_169 = arith.constant 0 : index
    %c0_170 = arith.constant 0 : index
    %295 = vector.load %arg15[%c2_168, %c0_169, %c0_170] : memref<3x32x24xf32, #tpu.memory_space<vmem>>, vector<1x32x24xf32>
    %296 = vector.shape_cast %295 : vector<1x32x24xf32> to vector<32x24xf32>
    %cst_171 = arith.constant dense<0.000000e+00> : vector<32x12xf32>
    %297 = tpu.matmul %296, %265, %cst_171 {dimension_numbers = #tpu.dot_dimension_numbers<[1], [0], [0], [1], [0, 0, 1, 1], [], []>} : vector<32x24xf32>, vector<24x12xf32>, vector<32x12xf32> -> vector<32x12xf32>
    %298 = tpu.iota {dimensions = array<i32: 0>} : vector<12x6xi32>
    %299 = tpu.iota {dimensions = array<i32: 1>} : vector<12x6xi32>
    %c0_i32_172 = arith.constant 0 : i32
    %300 = vector.broadcast %c0_i32_172 : i32 to vector<12x6xi32>
    %301 = arith.addi %298, %300 : vector<12x6xi32>
    %c2_i32_173 = arith.constant 2 : i32
    %302 = vector.broadcast %c2_i32_173 : i32 to vector<12x6xi32>
    %303 = arith.muli %299, %302 : vector<12x6xi32>
    %304 = arith.cmpi eq, %301, %303 : vector<12x6xi32>
    %305 = arith.extui %304 : vector<12x6xi1> to vector<12x6xi32>
    %306 = arith.sitofp %305 : vector<12x6xi32> to vector<12x6xf32>
    %cst_174 = arith.constant dense<0.000000e+00> : vector<32x6xf32>
    %307 = tpu.matmul %297, %306, %cst_174 {dimension_numbers = #tpu.dot_dimension_numbers<[1], [0], [0], [1], [0, 0, 1, 1], [], []>} : vector<32x12xf32>, vector<12x6xf32>, vector<32x6xf32> -> vector<32x6xf32>
    %308 = arith.addf %294, %307 : vector<32x6xf32>
    %c0_175 = arith.constant 0 : index
    %c0_176 = arith.constant 0 : index
    %c0_177 = arith.constant 0 : index
    %309 = vector.load %arg16[%c0_175, %c0_176, %c0_177] : memref<2x32x1xf32, #tpu.memory_space<vmem>>, vector<1x32x1xf32>
    %310 = vector.shape_cast %309 : vector<1x32x1xf32> to vector<32x1xf32>
    %311 = vector.broadcast %310 : vector<32x1xf32> to vector<32x6xf32>
    %312 = arith.mulf %308, %311 : vector<32x6xf32>
    %c1_178 = arith.constant 1 : index
    %c0_179 = arith.constant 0 : index
    %c0_180 = arith.constant 0 : index
    %313 = vector.load %arg16[%c1_178, %c0_179, %c0_180] : memref<2x32x1xf32, #tpu.memory_space<vmem>>, vector<1x32x1xf32>
    %314 = vector.shape_cast %313 : vector<1x32x1xf32> to vector<32x1xf32>
    %315 = vector.broadcast %314 : vector<32x1xf32> to vector<32x6xf32>
    %316 = arith.addf %312, %315 : vector<32x6xf32>
    %cst_181 = arith.constant 0.000000e+00 : f32
    %317 = vector.broadcast %cst_181 : f32 to vector<32x6xf32>
    %318 = arith.maximumf %316, %317 : vector<32x6xf32>
    %cst_182 = arith.constant 0.000000e+00 : f32
    %319 = vector.broadcast %cst_182 : f32 to vector<32x6xf32>
    %c0_183 = arith.constant 0 : index
    %c0_184 = arith.constant 0 : index
    %c0_185 = arith.constant 0 : index
    %320 = vector.load %arg17[%c0_183, %c0_184, %c0_185] : memref<1x32x24xf32, #tpu.memory_space<vmem>>, vector<1x32x24xf32>
    %321 = vector.shape_cast %320 : vector<1x32x24xf32> to vector<32x24xf32>
    %cst_186 = arith.constant dense<0.000000e+00> : vector<32x12xf32>
    %322 = tpu.matmul %321, %265, %cst_186 {dimension_numbers = #tpu.dot_dimension_numbers<[1], [0], [0], [1], [0, 0, 1, 1], [], []>} : vector<32x24xf32>, vector<24x12xf32>, vector<32x12xf32> -> vector<32x12xf32>
    %323 = tpu.iota {dimensions = array<i32: 0>} : vector<12x6xi32>
    %324 = tpu.iota {dimensions = array<i32: 1>} : vector<12x6xi32>
    %c0_i32_187 = arith.constant 0 : i32
    %325 = vector.broadcast %c0_i32_187 : i32 to vector<12x6xi32>
    %326 = arith.addi %323, %325 : vector<12x6xi32>
    %c2_i32_188 = arith.constant 2 : i32
    %327 = vector.broadcast %c2_i32_188 : i32 to vector<12x6xi32>
    %328 = arith.muli %324, %327 : vector<12x6xi32>
    %329 = arith.cmpi eq, %326, %328 : vector<12x6xi32>
    %330 = arith.extui %329 : vector<12x6xi1> to vector<12x6xi32>
    %331 = arith.sitofp %330 : vector<12x6xi32> to vector<12x6xf32>
    %cst_189 = arith.constant dense<0.000000e+00> : vector<32x6xf32>
    %332 = tpu.matmul %322, %331, %cst_189 {dimension_numbers = #tpu.dot_dimension_numbers<[1], [0], [0], [1], [0, 0, 1, 1], [], []>} : vector<32x12xf32>, vector<12x6xf32>, vector<32x6xf32> -> vector<32x6xf32>
    %333 = arith.addf %319, %332 : vector<32x6xf32>
    %c0_190 = arith.constant 0 : index
    %c0_191 = arith.constant 0 : index
    %c0_192 = arith.constant 0 : index
    %334 = vector.load %arg18[%c0_190, %c0_191, %c0_192] : memref<2x32x1xf32, #tpu.memory_space<vmem>>, vector<1x32x1xf32>
    %335 = vector.shape_cast %334 : vector<1x32x1xf32> to vector<32x1xf32>
    %336 = vector.broadcast %335 : vector<32x1xf32> to vector<32x6xf32>
    %337 = arith.mulf %333, %336 : vector<32x6xf32>
    %c1_193 = arith.constant 1 : index
    %c0_194 = arith.constant 0 : index
    %c0_195 = arith.constant 0 : index
    %338 = vector.load %arg18[%c1_193, %c0_194, %c0_195] : memref<2x32x1xf32, #tpu.memory_space<vmem>>, vector<1x32x1xf32>
    %339 = vector.shape_cast %338 : vector<1x32x1xf32> to vector<32x1xf32>
    %340 = vector.broadcast %339 : vector<32x1xf32> to vector<32x6xf32>
    %341 = arith.addf %337, %340 : vector<32x6xf32>
    %cst_196 = arith.constant 0.000000e+00 : f32
    %342 = vector.broadcast %cst_196 : f32 to vector<32x6xf32>
    %343 = arith.maximumf %341, %342 : vector<32x6xf32>
    %cst_197 = arith.constant 0.000000e+00 : f32
    %344 = vector.broadcast %cst_197 : f32 to vector<32x6xf32>
    %c1_198 = arith.constant 1 : index
    %c0_199 = arith.constant 0 : index
    %c0_200 = arith.constant 0 : index
    %345 = vector.load %arg19[%c1_198, %c0_199, %c0_200] : memref<3x32x32xf32, #tpu.memory_space<vmem>>, vector<1x32x32xf32>
    %346 = vector.shape_cast %345 : vector<1x32x32xf32> to vector<32x32xf32>
    %cst_201 = arith.constant dense<0.000000e+00> : vector<32x6xf32>
    %347 = tpu.matmul %346, %318, %cst_201 {dimension_numbers = #tpu.dot_dimension_numbers<[1], [0], [0], [1], [0, 0, 1, 1], [], []>} : vector<32x32xf32>, vector<32x6xf32>, vector<32x6xf32> -> vector<32x6xf32>
    %348 = tpu.iota {dimensions = array<i32: 0>} : vector<6x6xi32>
    %349 = tpu.iota {dimensions = array<i32: 1>} : vector<6x6xi32>
    %c4_i32_202 = arith.constant 4 : i32
    %350 = vector.broadcast %c4_i32_202 : i32 to vector<6x6xi32>
    %351 = arith.addi %348, %350 : vector<6x6xi32>
    %c1_i32_203 = arith.constant 1 : i32
    %352 = vector.broadcast %c1_i32_203 : i32 to vector<6x6xi32>
    %353 = arith.muli %349, %352 : vector<6x6xi32>
    %354 = arith.cmpi eq, %351, %353 : vector<6x6xi32>
    %355 = arith.extui %354 : vector<6x6xi1> to vector<6x6xi32>
    %356 = arith.sitofp %355 : vector<6x6xi32> to vector<6x6xf32>
    %cst_204 = arith.constant dense<0.000000e+00> : vector<32x6xf32>
    %357 = tpu.matmul %347, %356, %cst_204 {dimension_numbers = #tpu.dot_dimension_numbers<[1], [0], [0], [1], [0, 0, 1, 1], [], []>} : vector<32x6xf32>, vector<6x6xf32>, vector<32x6xf32> -> vector<32x6xf32>
    %358 = arith.addf %344, %357 : vector<32x6xf32>
    %c2_205 = arith.constant 2 : index
    %c0_206 = arith.constant 0 : index
    %c0_207 = arith.constant 0 : index
    %359 = vector.load %arg19[%c2_205, %c0_206, %c0_207] : memref<3x32x32xf32, #tpu.memory_space<vmem>>, vector<1x32x32xf32>
    %360 = vector.shape_cast %359 : vector<1x32x32xf32> to vector<32x32xf32>
    %cst_208 = arith.constant dense<0.000000e+00> : vector<32x6xf32>
    %361 = tpu.matmul %360, %318, %cst_208 {dimension_numbers = #tpu.dot_dimension_numbers<[1], [0], [0], [1], [0, 0, 1, 1], [], []>} : vector<32x32xf32>, vector<32x6xf32>, vector<32x6xf32> -> vector<32x6xf32>
    %362 = arith.addf %358, %361 : vector<32x6xf32>
    %c0_209 = arith.constant 0 : index
    %c0_210 = arith.constant 0 : index
    %c0_211 = arith.constant 0 : index
    %363 = vector.load %arg20[%c0_209, %c0_210, %c0_211] : memref<2x32x1xf32, #tpu.memory_space<vmem>>, vector<1x32x1xf32>
    %364 = vector.shape_cast %363 : vector<1x32x1xf32> to vector<32x1xf32>
    %365 = vector.broadcast %364 : vector<32x1xf32> to vector<32x6xf32>
    %366 = arith.mulf %362, %365 : vector<32x6xf32>
    %c1_212 = arith.constant 1 : index
    %c0_213 = arith.constant 0 : index
    %c0_214 = arith.constant 0 : index
    %367 = vector.load %arg20[%c1_212, %c0_213, %c0_214] : memref<2x32x1xf32, #tpu.memory_space<vmem>>, vector<1x32x1xf32>
    %368 = vector.shape_cast %367 : vector<1x32x1xf32> to vector<32x1xf32>
    %369 = vector.broadcast %368 : vector<32x1xf32> to vector<32x6xf32>
    %370 = arith.addf %366, %369 : vector<32x6xf32>
    %371 = arith.addf %370, %343 : vector<32x6xf32>
    %cst_215 = arith.constant 0.000000e+00 : f32
    %372 = vector.broadcast %cst_215 : f32 to vector<32x6xf32>
    %373 = arith.maximumf %371, %372 : vector<32x6xf32>
    %374 = tpu.iota {dimensions = array<i32: 0>} : vector<6x3xi32>
    %375 = tpu.iota {dimensions = array<i32: 1>} : vector<6x3xi32>
    %c2_i32_216 = arith.constant 2 : i32
    %376 = vector.broadcast %c2_i32_216 : i32 to vector<6x3xi32>
    %377 = arith.muli %376, %375 : vector<6x3xi32>
    %378 = arith.cmpi eq, %374, %377 : vector<6x3xi32>
    %c2_i32_217 = arith.constant 2 : i32
    %379 = vector.broadcast %c2_i32_217 : i32 to vector<6x3xi32>
    %380 = arith.muli %379, %375 : vector<6x3xi32>
    %c1_i32_218 = arith.constant 1 : i32
    %381 = vector.broadcast %c1_i32_218 : i32 to vector<6x3xi32>
    %382 = arith.addi %380, %381 : vector<6x3xi32>
    %383 = arith.cmpi eq, %374, %382 : vector<6x3xi32>
    %384 = arith.ori %378, %383 : vector<6x3xi1>
    %cst_219 = arith.constant 5.000000e-01 : f32
    %cst_220 = arith.constant 0.000000e+00 : f32
    %385 = vector.broadcast %cst_219 : f32 to vector<6x3xf32>
    %386 = vector.broadcast %cst_220 : f32 to vector<6x3xf32>
    %387 = arith.select %384, %385, %386 : vector<6x3xi1>, vector<6x3xf32>
    %cst_221 = arith.constant dense<0.000000e+00> : vector<32x3xf32>
    %388 = tpu.matmul %373, %387, %cst_221 {dimension_numbers = #tpu.dot_dimension_numbers<[1], [0], [0], [1], [0, 0, 1, 1], [], []>} : vector<32x6xf32>, vector<6x3xf32>, vector<32x3xf32> -> vector<32x3xf32>
    %c0_222 = arith.constant 0 : index
    %c0_223 = arith.constant 0 : index
    %389 = vector.load %arg22[%c0_222, %c0_223] : memref<20x1xf32, #tpu.memory_space<vmem>>, vector<20x1xf32>
    %c0_224 = arith.constant 0 : index
    %c0_225 = arith.constant 0 : index
    %c0_226 = arith.constant 0 : index
    %390 = vector.load %arg21[%c0_224, %c0_225, %c0_226] : memref<3x20x32xf32, #tpu.memory_space<vmem>>, vector<1x20x32xf32>
    %391 = vector.shape_cast %390 : vector<1x20x32xf32> to vector<20x32xf32>
    %392 = vector.extract_strided_slice %388 {offsets = [0, 0], sizes = [32, 1], strides = [1, 1]} : vector<32x3xf32> to vector<32x1xf32>
    %cst_227 = arith.constant dense<0.000000e+00> : vector<20x1xf32>
    %393 = tpu.matmul %391, %392, %cst_227 {dimension_numbers = #tpu.dot_dimension_numbers<[1], [0], [0], [1], [0, 0, 1, 1], [], []>} : vector<20x32xf32>, vector<32x1xf32>, vector<20x1xf32> -> vector<20x1xf32>
    %394 = arith.addf %389, %393 : vector<20x1xf32>
    %c1_228 = arith.constant 1 : index
    %c0_229 = arith.constant 0 : index
    %c0_230 = arith.constant 0 : index
    %395 = vector.load %arg21[%c1_228, %c0_229, %c0_230] : memref<3x20x32xf32, #tpu.memory_space<vmem>>, vector<1x20x32xf32>
    %396 = vector.shape_cast %395 : vector<1x20x32xf32> to vector<20x32xf32>
    %397 = vector.extract_strided_slice %388 {offsets = [0, 1], sizes = [32, 1], strides = [1, 1]} : vector<32x3xf32> to vector<32x1xf32>
    %cst_231 = arith.constant dense<0.000000e+00> : vector<20x1xf32>
    %398 = tpu.matmul %396, %397, %cst_231 {dimension_numbers = #tpu.dot_dimension_numbers<[1], [0], [0], [1], [0, 0, 1, 1], [], []>} : vector<20x32xf32>, vector<32x1xf32>, vector<20x1xf32> -> vector<20x1xf32>
    %399 = arith.addf %394, %398 : vector<20x1xf32>
    %c2_232 = arith.constant 2 : index
    %c0_233 = arith.constant 0 : index
    %c0_234 = arith.constant 0 : index
    %400 = vector.load %arg21[%c2_232, %c0_233, %c0_234] : memref<3x20x32xf32, #tpu.memory_space<vmem>>, vector<1x20x32xf32>
    %401 = vector.shape_cast %400 : vector<1x20x32xf32> to vector<20x32xf32>
    %402 = vector.extract_strided_slice %388 {offsets = [0, 2], sizes = [32, 1], strides = [1, 1]} : vector<32x3xf32> to vector<32x1xf32>
    %cst_235 = arith.constant dense<0.000000e+00> : vector<20x1xf32>
    %403 = tpu.matmul %401, %402, %cst_235 {dimension_numbers = #tpu.dot_dimension_numbers<[1], [0], [0], [1], [0, 0, 1, 1], [], []>} : vector<20x32xf32>, vector<32x1xf32>, vector<20x1xf32> -> vector<20x1xf32>
    %404 = arith.addf %399, %403 : vector<20x1xf32>
    %405 = tpu.iota {dimensions = array<i32: 0>} : vector<20x10xi32>
    %406 = tpu.iota {dimensions = array<i32: 1>} : vector<20x10xi32>
    %cst_236 = arith.constant 0.000000e+00 : f32
    %407 = vector.broadcast %cst_236 : f32 to vector<20x10xf32>
    %c0_i32_237 = arith.constant 0 : i32
    %408 = vector.broadcast %c0_i32_237 : i32 to vector<20x10xi32>
    %409 = arith.addi %406, %408 : vector<20x10xi32>
    %410 = arith.cmpi eq, %405, %409 : vector<20x10xi32>
    %411 = arith.extui %410 : vector<20x10xi1> to vector<20x10xi32>
    %412 = arith.sitofp %411 : vector<20x10xi32> to vector<20x10xf32>
    %413 = arith.addf %407, %412 : vector<20x10xf32>
    %c10_i32 = arith.constant 10 : i32
    %414 = vector.broadcast %c10_i32 : i32 to vector<20x10xi32>
    %415 = arith.addi %406, %414 : vector<20x10xi32>
    %416 = arith.cmpi eq, %405, %415 : vector<20x10xi32>
    %417 = arith.extui %416 : vector<20x10xi1> to vector<20x10xi32>
    %418 = arith.sitofp %417 : vector<20x10xi32> to vector<20x10xf32>
    %419 = arith.addf %413, %418 : vector<20x10xf32>
    %420 = tpu.iota {dimensions = array<i32: 0>} : vector<2x20xi32>
    %421 = tpu.iota {dimensions = array<i32: 1>} : vector<2x20xi32>
    %c10_i32_238 = arith.constant 10 : i32
    %422 = vector.broadcast %c10_i32_238 : i32 to vector<2x20xi32>
    %423 = arith.muli %420, %422 : vector<2x20xi32>
    %424 = arith.cmpi sge, %421, %423 : vector<2x20xi32>
    %c1_i32_239 = arith.constant 1 : i32
    %425 = vector.broadcast %c1_i32_239 : i32 to vector<2x20xi32>
    %426 = arith.addi %420, %425 : vector<2x20xi32>
    %c10_i32_240 = arith.constant 10 : i32
    %427 = vector.broadcast %c10_i32_240 : i32 to vector<2x20xi32>
    %428 = arith.muli %426, %427 : vector<2x20xi32>
    %429 = arith.cmpi slt, %421, %428 : vector<2x20xi32>
    %430 = arith.andi %424, %429 : vector<2x20xi1>
    %431 = arith.extui %430 : vector<2x20xi1> to vector<2x20xi32>
    %432 = arith.sitofp %431 : vector<2x20xi32> to vector<2x20xf32>
    %433 = vector.broadcast %404 : vector<20x1xf32> to vector<20x10xf32>
    %434 = arith.mulf %433, %419 : vector<20x10xf32>
    %cst_241 = arith.constant dense<0.000000e+00> : vector<2x10xf32>
    %435 = tpu.matmul %432, %434, %cst_241 {dimension_numbers = #tpu.dot_dimension_numbers<[1], [0], [0], [1], [0, 0, 1, 1], [], []>} : vector<2x20xf32>, vector<20x10xf32>, vector<2x10xf32> -> vector<2x10xf32>
    %cst_242 = arith.constant dense<0xFF800000> : vector<2xf32>
    %436 = vector.multi_reduction <maximumf>, %435, %cst_242 [1] : vector<2x10xf32> to vector<2xf32>
    %437 = vector.shape_cast %436 : vector<2xf32> to vector<2x1xf32>
    %438 = vector.broadcast %437 : vector<2x1xf32> to vector<2x10xf32>
    %439 = arith.subf %435, %438 : vector<2x10xf32>
    %440 = math.exp %439 : vector<2x10xf32>
    %cst_243 = arith.constant dense<0.000000e+00> : vector<2xf32>
    %441 = vector.multi_reduction <add>, %440, %cst_243 [1] : vector<2x10xf32> to vector<2xf32>
    %442 = vector.shape_cast %441 : vector<2xf32> to vector<2x1xf32>
    %443 = math.log %442 : vector<2x1xf32>
    %444 = arith.addf %443, %437 : vector<2x1xf32>
    %445 = vector.broadcast %444 : vector<2x1xf32> to vector<2x10xf32>
    %446 = arith.subf %435, %445 : vector<2x10xf32>
    %c0_244 = arith.constant 0 : index
    %c0_245 = arith.constant 0 : index
    %447 = vector.load %arg23[%c0_244, %c0_245] : memref<2x10xf32, #tpu.memory_space<vmem>>, vector<2x10xf32>
    tpu.vector_store %arg23[%c0_244, %c0_245], %446 {strides = array<i32>} : memref<2x10xf32, #tpu.memory_space<vmem>>, vector<2x10xf32>,
    return
  }
}

</mosaic_0001>

<llo_original>
// kernel: tpu_custom_call.1
$region0: #{tpu_custom_call.1}
  #allocation0 [shape = 'u32[]', space=smem, size = 0x4, offset = 0x4, fixed_abs, tag = 'smem constant byte address 0x4 - core index']
  #allocation1 [shape = 'u32[144,128]{1,0:T(1,128)}', space=vmem, size = 0x12000, scoped, tag = 'internal scratch']
  %s0 = inlined_call_operand.vmem [shape: f32[8,24], index: 0, kind: input, shape index: {}]
  %s1 = inlined_call_operand.vmem [shape: f32[3,16,8], index: 1, kind: input, shape index: {}]
  %s2 = inlined_call_operand.vmem [shape: f32[2,16,1], index: 2, kind: input, shape index: {}]
  %s3 = inlined_call_operand.vmem [shape: f32[3,24,16], index: 3, kind: input, shape index: {}]
  %s4 = inlined_call_operand.vmem [shape: f32[2,24,1], index: 4, kind: input, shape index: {}]
  %s5 = inlined_call_operand.vmem [shape: f32[1,24,16], index: 5, kind: input, shape index: {}]
  %s6 = inlined_call_operand.vmem [shape: f32[2,24,1], index: 6, kind: input, shape index: {}]
  %s7 = inlined_call_operand.vmem [shape: f32[3,24,24], index: 7, kind: input, shape index: {}]
  %s8 = inlined_call_operand.vmem [shape: f32[2,24,1], index: 8, kind: input, shape index: {}]
  %s9 = inlined_call_operand.vmem [shape: f32[3,24,24], index: 9, kind: input, shape index: {}]
  %s10 = inlined_call_operand.vmem [shape: f32[2,24,1], index: 10, kind: input, shape index: {}]
  %s11 = inlined_call_operand.vmem [shape: f32[1,24,24], index: 11, kind: input, shape index: {}]
  %s12 = inlined_call_operand.vmem [shape: f32[2,24,1], index: 12, kind: input, shape index: {}]
  %s13 = inlined_call_operand.vmem [shape: f32[3,24,24], index: 13, kind: input, shape index: {}]
  %s14 = inlined_call_operand.vmem [shape: f32[2,24,1], index: 14, kind: input, shape index: {}]
  %s15 = inlined_call_operand.vmem [shape: f32[3,32,24], index: 15, kind: input, shape index: {}]
  %s16 = inlined_call_operand.vmem [shape: f32[2,32,1], index: 16, kind: input, shape index: {}]
  %s17 = inlined_call_operand.vmem [shape: f32[1,32,24], index: 17, kind: input, shape index: {}]
  %s18 = inlined_call_operand.vmem [shape: f32[2,32,1], index: 18, kind: input, shape index: {}]
  %s19 = inlined_call_operand.vmem [shape: f32[3,32,32], index: 19, kind: input, shape index: {}]
  %s20 = inlined_call_operand.vmem [shape: f32[2,32,1], index: 20, kind: input, shape index: {}]
  %s21 = inlined_call_operand.vmem [shape: f32[3,20,32], index: 21, kind: input, shape index: {}]
  %s22 = inlined_call_operand.vmem [shape: f32[20,1], index: 22, kind: input, shape index: {}]
  %s23 = inlined_call_operand.hbm [shape: f32[2,10], index: 23, kind: output, shape index: {}]
  %s24 = sld [smem:[#allocation0]]
  $region102: #{tpu_custom_call.1} parent=0
    _
  %s26 = ssub.s32 1, %s24
  %s27 = scalar_select 0, %s26, %s24
  $region1: #{tpu_custom_call.1} parent=0
    #allocation2 [shape = 'u8[1024]{0}', space=vmem, size = 0x400, scoped, tag = 'output window, operand 0, single buffered']
    #allocation3 [shape = 's32[1]{0}', space=sflag, size = 0x4, scoped, tag = 'scoped memory for tpu_custom_call.1']
    %28 = vsyncpa [#allocation3], 0
    // Predicated region
    $region2: #{tpu_custom_call.1} parent=1 // pred_check
      _
    $region3: #{tpu_custom_call.1} parent=1 // pred_check_branch
      %30 = sbr.rel (0) target = $region5
    $region4: #{tpu_custom_call.1} parent=1 // pred_region
      _
    $region5: #{tpu_custom_call.1} parent=1 // pred_fallthru
      _
    // Predicated region
    $region6: #{tpu_custom_call.1} parent=1 // pred_check
      _
    $region7: #{tpu_custom_call.1} parent=1 // pred_check_branch
      %32 = sbr.rel (0) target = $region9
    $region8: #{tpu_custom_call.1} parent=1 // pred_region
      _
    $region9: #{tpu_custom_call.1} parent=1 // pred_fallthru
      _
    // Predicated region
    $region10: #{tpu_custom_call.1} parent=1 // pred_check
      _
    $region11: #{tpu_custom_call.1} parent=1 // pred_check_branch
      %34 = sbr.rel (0) target = $region13
    $region12: #{tpu_custom_call.1} parent=1 // pred_region
      _
    $region13: #{tpu_custom_call.1} parent=1 // pred_fallthru
      _
    // Predicated region
    $region14: #{tpu_custom_call.1} parent=1 // pred_check
      _
    $region15: #{tpu_custom_call.1} parent=1 // pred_check_branch
      %36 = sbr.rel (0) target = $region17
    $region16: #{tpu_custom_call.1} parent=1 // pred_region
      _
    $region17: #{tpu_custom_call.1} parent=1 // pred_fallthru
      _
    // Predicated region
    $region18: #{tpu_custom_call.1} parent=1 // pred_check
      _
    $region19: #{tpu_custom_call.1} parent=1 // pred_check_branch
      %38 = sbr.rel (0) target = $region21
    $region20: #{tpu_custom_call.1} parent=1 // pred_region
      _
    $region21: #{tpu_custom_call.1} parent=1 // pred_fallthru
      _
    // Predicated region
    $region22: #{tpu_custom_call.1} parent=1 // pred_check
      _
    $region23: #{tpu_custom_call.1} parent=1 // pred_check_branch
      %40 = sbr.rel (0) target = $region25
    $region24: #{tpu_custom_call.1} parent=1 // pred_region
      _
    $region25: #{tpu_custom_call.1} parent=1 // pred_fallthru
      _
    // Predicated region
    $region26: #{tpu_custom_call.1} parent=1 // pred_check
      _
    $region27: #{tpu_custom_call.1} parent=1 // pred_check_branch
      %42 = sbr.rel (0) target = $region29
    $region28: #{tpu_custom_call.1} parent=1 // pred_region
      _
    $region29: #{tpu_custom_call.1} parent=1 // pred_fallthru
      _
    // Predicated region
    $region30: #{tpu_custom_call.1} parent=1 // pred_check
      _
    $region31: #{tpu_custom_call.1} parent=1 // pred_check_branch
      %44 = sbr.rel (0) target = $region33
    $region32: #{tpu_custom_call.1} parent=1 // pred_region
      _
    $region33: #{tpu_custom_call.1} parent=1 // pred_fallthru
      _
    // Predicated region
    $region34: #{tpu_custom_call.1} parent=1 // pred_check
      _
    $region35: #{tpu_custom_call.1} parent=1 // pred_check_branch
      %46 = sbr.rel (0) target = $region37
    $region36: #{tpu_custom_call.1} parent=1 // pred_region
      _
    $region37: #{tpu_custom_call.1} parent=1 // pred_fallthru
      _
    // Predicated region
    $region38: #{tpu_custom_call.1} parent=1 // pred_check
      _
    $region39: #{tpu_custom_call.1} parent=1 // pred_check_branch
      %48 = sbr.rel (0) target = $region41
    $region40: #{tpu_custom_call.1} parent=1 // pred_region
      _
    $region41: #{tpu_custom_call.1} parent=1 // pred_fallthru
      _
    // Predicated region
    $region42: #{tpu_custom_call.1} parent=1 // pred_check
      _
    $region43: #{tpu_custom_call.1} parent=1 // pred_check_branch
      %50 = sbr.rel (0) target = $region45
    $region44: #{tpu_custom_call.1} parent=1 // pred_region
      _
    $region45: #{tpu_custom_call.1} parent=1 // pred_fallthru
      _
    // Predicated region
    $region46: #{tpu_custom_call.1} parent=1 // pred_check
      _
    $region47: #{tpu_custom_call.1} parent=1 // pred_check_branch
      %52 = sbr.rel (0) target = $region49
    $region48: #{tpu_custom_call.1} parent=1 // pred_region
      _
    $region49: #{tpu_custom_call.1} parent=1 // pred_fallthru
      _
    // Predicated region
    $region50: #{tpu_custom_call.1} parent=1 // pred_check
      _
    $region51: #{tpu_custom_call.1} parent=1 // pred_check_branch
      %54 = sbr.rel (0) target = $region53
    $region52: #{tpu_custom_call.1} parent=1 // pred_region
      _
    $region53: #{tpu_custom_call.1} parent=1 // pred_fallthru
      _
    // Predicated region
    $region54: #{tpu_custom_call.1} parent=1 // pred_check
      _
    $region55: #{tpu_custom_call.1} parent=1 // pred_check_branch
      %56 = sbr.rel (0) target = $region57
    $region56: #{tpu_custom_call.1} parent=1 // pred_region
      _
    $region57: #{tpu_custom_call.1} parent=1 // pred_fallthru
      _
    // Predicated region
    $region58: #{tpu_custom_call.1} parent=1 // pred_check
      _
    $region59: #{tpu_custom_call.1} parent=1 // pred_check_branch
      %58 = sbr.rel (0) target = $region61
    $region60: #{tpu_custom_call.1} parent=1 // pred_region
      _
    $region61: #{tpu_custom_call.1} parent=1 // pred_fallthru
      _
    // Predicated region
    $region62: #{tpu_custom_call.1} parent=1 // pred_check
      _
    $region63: #{tpu_custom_call.1} parent=1 // pred_check_branch
      %60 = sbr.rel (0) target = $region65
    $region64: #{tpu_custom_call.1} parent=1 // pred_region
      _
    $region65: #{tpu_custom_call.1} parent=1 // pred_fallthru
      _
    // Predicated region
    $region66: #{tpu_custom_call.1} parent=1 // pred_check
      _
    $region67: #{tpu_custom_call.1} parent=1 // pred_check_branch
      %62 = sbr.rel (0) target = $region69
    $region68: #{tpu_custom_call.1} parent=1 // pred_region
      _
    $region69: #{tpu_custom_call.1} parent=1 // pred_fallthru
      _
    // Predicated region
    $region70: #{tpu_custom_call.1} parent=1 // pred_check
      _
    $region71: #{tpu_custom_call.1} parent=1 // pred_check_branch
      %64 = sbr.rel (0) target = $region73
    $region72: #{tpu_custom_call.1} parent=1 // pred_region
      _
    $region73: #{tpu_custom_call.1} parent=1 // pred_fallthru
      _
    // Predicated region
    $region74: #{tpu_custom_call.1} parent=1 // pred_check
      _
    $region75: #{tpu_custom_call.1} parent=1 // pred_check_branch
      %66 = sbr.rel (0) target = $region77
    $region76: #{tpu_custom_call.1} parent=1 // pred_region
      _
    $region77: #{tpu_custom_call.1} parent=1 // pred_fallthru
      _
    // Predicated region
    $region78: #{tpu_custom_call.1} parent=1 // pred_check
      _
    $region79: #{tpu_custom_call.1} parent=1 // pred_check_branch
      %68 = sbr.rel (0) target = $region81
    $region80: #{tpu_custom_call.1} parent=1 // pred_region
      _
    $region81: #{tpu_custom_call.1} parent=1 // pred_fallthru
      _
    // Predicated region
    $region82: #{tpu_custom_call.1} parent=1 // pred_check
      _
    $region83: #{tpu_custom_call.1} parent=1 // pred_check_branch
      %70 = sbr.rel (0) target = $region85
    $region84: #{tpu_custom_call.1} parent=1 // pred_region
      _
    $region85: #{tpu_custom_call.1} parent=1 // pred_fallthru
      _
    // Predicated region
    $region86: #{tpu_custom_call.1} parent=1 // pred_check
      _
    $region87: #{tpu_custom_call.1} parent=1 // pred_check_branch
      %72 = sbr.rel (0) target = $region89
    $region88: #{tpu_custom_call.1} parent=1 // pred_region
      _
    $region89: #{tpu_custom_call.1} parent=1 // pred_fallthru
      _
    // Predicated region
    $region90: #{tpu_custom_call.1} parent=1 // pred_check
      _
    $region91: #{tpu_custom_call.1} parent=1 // pred_check_branch
      %74 = sbr.rel (0) target = $region93
    $region92: #{tpu_custom_call.1} parent=1 // pred_region
      _
    $region93: #{tpu_custom_call.1} parent=1 // pred_fallthru
      _
    %v75 = vld [vmem:[%s0] sm:$0xff]
    %v76 = vld [vmem:[%s1] sm:$0xff]
    %v77 = vld [vmem:[%s1 + $0x8] sm:$0xff]
    %vm78 = vcmask 64512
    %v80 = vsel %vm78, %v76, 0
    %v83 = vsel %vm78, %v77, 0
    %85 = vmatprep.subr.mxu0 0.0
    %86 = vmatpush1.msra.mxu0 %v75
    %87 = vmatprep.subr.mxu0 0.0
    %88 = vmatpush1.msra.mxu0 0.0
    %89 = vmatprep.subr.mxu0 0.0
    %90 = vmatpush1.msra.mxu0 0.0
    %91 = vmatprep.subr.mxu0 0.0
    %92 = vmatpush1.msra.mxu0 0.0
    %93 = vmatprep.subr.mxu0 0.0
    %94 = vmatpush1.msra.mxu0 0.0
    %95 = vmatprep.subr.mxu0 0.0
    %96 = vmatpush1.msra.mxu0 0.0
    %97 = vmatprep.subr.mxu0 0.0
    %98 = vmatpush1.msra.mxu0 0.0
    %99 = vmatprep.subr.mxu0 0.0
    %100 = vmatpush1.msra.mxu0 0.0
    %101 = vmatprep.subr.mxu0 0.0
    %102 = vmatpush1.msra.mxu0 0.0
    %103 = vmatprep.subr.mxu0 0.0
    %104 = vmatpush1.msra.mxu0 0.0
    %105 = vmatprep.subr.mxu0 0.0
    %106 = vmatpush1.msra.mxu0 0.0
    %107 = vmatprep.subr.mxu0 0.0
    %108 = vmatpush1.msra.mxu0 0.0
    %109 = vmatprep.subr.mxu0 0.0
    %110 = vmatpush1.msra.mxu0 0.0
    %111 = vmatprep.subr.mxu0 0.0
    %112 = vmatpush1.msra.mxu0 0.0
    %113 = vmatprep.subr.mxu0 0.0
    %114 = vmatpush1.msra.mxu0 0.0
    %115 = vmatprep.subr.mxu0 0.0
    %116 = vmatpush1.msra.mxu0 0.0
    %117 = vmatprep.subr.mxu0 0.0
    %118 = vmatpush1.msra.mxu0 0.0
    %119 = vmatprep.subr.mxu0 0.0
    %120 = vmatpush1.msra.mxu0 0.0
    %121 = vmatprep.subr.mxu0 0.0
    %122 = vmatpush1.msra.mxu0 0.0
    %123 = vmatprep.subr.mxu0 0.0
    %124 = vmatpush1.msra.mxu0 0.0
    %125 = vmatprep.subr.mxu0 0.0
    %126 = vmatpush1.msra.mxu0 0.0
    %127 = vmatprep.subr.mxu0 0.0
    %128 = vmatpush1.msra.mxu0 0.0
    %129 = vmatprep.subr.mxu0 0.0
    %130 = vmatpush1.msra.mxu0 0.0
    %131 = vmatprep.subr.mxu0 0.0
    %132 = vmatpush1.msra.mxu0 0.0
    %133 = vmatprep.subr.mxu0 0.0
    %134 = vmatpush1.msra.mxu0 0.0
    %135 = vmatprep.subr.mxu0 0.0
    %136 = vmatpush1.msra.mxu0 0.0
    %137 = vmatprep.subr.mxu0 0.0
    %138 = vmatpush1.msra.mxu0 0.0
    %139 = vmatprep.subr.mxu0 0.0
    %140 = vmatpush1.msra.mxu0 0.0
    %141 = vmatprep.subr.mxu0 0.0
    %142 = vmatpush1.msra.mxu0 0.0
    %143 = vmatprep.subr.mxu0 0.0
    %144 = vmatpush1.msra.mxu0 0.0
    %145 = vmatprep.subr.mxu0 0.0
    %146 = vmatpush1.msra.mxu0 0.0
    %147 = vmatprep.subr.mxu0 0.0
    %148 = vmatpush1.msra.mxu0 0.0
    %149 = vmatprep.mubr.f32.mxu0 0.0
    %150 = vmatmul.mubr.f32.gmra.mrb[0].mxu0 %v80
    %v151 = vpop.f32.mrb[0].mxu0
    %v152 = vadd.f32 0.0, %v151
    %v153 = vpop.f32.mrb[0].mxu0
    %154 = vmatprep.mubr.f32.mxu0 0.0
    %155 = vmatmul.mubr.f32.gmra.mrb[0].mxu0 %v83
    %v156 = vpop.f32.mrb[0].mxu0
    %v157 = vadd.f32 0.0, %v156
    %v158 = vpop.f32.mrb[0].mxu0
    %159 = vdwg.mxu0
    %v160 = vlaneseq
    %v161 = vshrl.u32 %v160, 7
    %v162 = vadd.s32 %v161, 8
    %v163 = vadd.s32 %v161, 16
    %v164 = vlaneseq
    %v165 = vand.u32 %v164, 127
    %v166 = vadd.s32 %v161, 2
    %v167 = vadd.s32 %v162, 2
    %v168 = vadd.s32 %v163, 2
    %vm169 = vcmp.eq.s32.totalorder %v166, %v165
    %vm170 = vcmp.eq.s32.totalorder %v167, %v165
    %vm171 = vcmp.eq.s32.totalorder %v168, %v165
    %v172 = vsel %vm169, 1, 0
    %v173 = vsel %vm170, 1, 0
    %v174 = vsel %vm171, 1, 0
    %v175 = vcvt.s32.f32 %v172
    %v176 = vcvt.s32.f32 %v173
    %v177 = vcvt.s32.f32 %v174
    %s178 = scalar_lea.vmem %s1, 16
    %v179 = vld [vmem:[%s178] sm:$0xff]
    %v180 = vld [vmem:[%s178 + $0x8] sm:$0xff]
    %v182 = vsel %vm78, %v179, 0
    %v185 = vsel %vm78, %v180, 0
    %187 = vmatprep.subr.mxu0 0.0
    %188 = vmatpush1.msra.mxu0 %v75
    %189 = vmatprep.subr.mxu0 0.0
    %190 = vmatpush1.msra.mxu0 0.0
    %191 = vmatprep.subr.mxu0 0.0
    %192 = vmatpush1.msra.mxu0 0.0
    %193 = vmatprep.subr.mxu0 0.0
    %194 = vmatpush1.msra.mxu0 0.0
    %195 = vmatprep.subr.mxu0 0.0
    %196 = vmatpush1.msra.mxu0 0.0
    %197 = vmatprep.subr.mxu0 0.0
    %198 = vmatpush1.msra.mxu0 0.0
    %199 = vmatprep.subr.mxu0 0.0
    %200 = vmatpush1.msra.mxu0 0.0
    %201 = vmatprep.subr.mxu0 0.0
    %202 = vmatpush1.msra.mxu0 0.0
    %203 = vmatprep.subr.mxu0 0.0
    %204 = vmatpush1.msra.mxu0 0.0
    %205 = vmatprep.subr.mxu0 0.0
    %206 = vmatpush1.msra.mxu0 0.0
    %207 = vmatprep.subr.mxu0 0.0
    %208 = vmatpush1.msra.mxu0 0.0
    %209 = vmatprep.subr.mxu0 0.0
    %210 = vmatpush1.msra.mxu0 0.0
    %211 = vmatprep.subr.mxu0 0.0
    %212 = vmatpush1.msra.mxu0 0.0
    %213 = vmatprep.subr.mxu0 0.0
    %214 = vmatpush1.msra.mxu0 0.0
    %215 = vmatprep.subr.mxu0 0.0
    %216 = vmatpush1.msra.mxu0 0.0
    %217 = vmatprep.subr.mxu0 0.0
    %218 = vmatpush1.msra.mxu0 0.0
    %219 = vmatprep.subr.mxu0 0.0
    %220 = vmatpush1.msra.mxu0 0.0
    %221 = vmatprep.subr.mxu0 0.0
    %222 = vmatpush1.msra.mxu0 0.0
    %223 = vmatprep.subr.mxu0 0.0
    %224 = vmatpush1.msra.mxu0 0.0
    %225 = vmatprep.subr.mxu0 0.0
    %226 = vmatpush1.msra.mxu0 0.0
    %227 = vmatprep.subr.mxu0 0.0
    %228 = vmatpush1.msra.mxu0 0.0
    %229 = vmatprep.subr.mxu0 0.0
    %230 = vmatpush1.msra.mxu0 0.0
    %231 = vmatprep.subr.mxu0 0.0
    %232 = vmatpush1.msra.mxu0 0.0
    %233 = vmatprep.subr.mxu0 0.0
    %234 = vmatpush1.msra.mxu0 0.0
    %235 = vmatprep.subr.mxu0 0.0
    %236 = vmatpush1.msra.mxu0 0.0
    %237 = vmatprep.subr.mxu0 0.0
    %238 = vmatpush1.msra.mxu0 0.0
    %239 = vmatprep.subr.mxu0 0.0
    %240 = vmatpush1.msra.mxu0 0.0
    %241 = vmatprep.subr.mxu0 0.0
    %242 = vmatpush1.msra.mxu0 0.0
    %243 = vmatprep.subr.mxu0 0.0
    %244 = vmatpush1.msra.mxu0 0.0
    %245 = vmatprep.subr.mxu0 0.0
    %246 = vmatpush1.msra.mxu0 0.0
    %247 = vmatprep.subr.mxu0 0.0
    %248 = vmatpush1.msra.mxu0 0.0
    %249 = vmatprep.subr.mxu0 0.0
    %250 = vmatpush1.msra.mxu0 0.0
    %251 = vmatprep.mubr.f32.mxu0 0.0
    %252 = vmatmul.mubr.f32.gmra.mrb[0].mxu0 %v182
    %v253 = vpop.f32.mrb[0].mxu0
    %v254 = vadd.f32 0.0, %v253
    %v255 = vpop.f32.mrb[0].mxu0
    %256 = vmatprep.mubr.f32.mxu0 0.0
    %257 = vmatmul.mubr.f32.gmra.mrb[0].mxu0 %v185
    %v258 = vpop.f32.mrb[0].mxu0
    %v259 = vadd.f32 0.0, %v258
    %v260 = vpop.f32.mrb[0].mxu0
    %261 = vdwg.mxu0
    %v262 = vadd.s32 %v161, 1
    %v263 = vadd.s32 %v162, 1
    %v264 = vadd.s32 %v163, 1
    %vm265 = vcmp.eq.s32.totalorder %v262, %v165
    %vm266 = vcmp.eq.s32.totalorder %v263, %v165
    %vm267 = vcmp.eq.s32.totalorder %v264, %v165
    %v268 = vsel %vm265, 1, 0
    %v269 = vsel %vm266, 1, 0
    %v270 = vsel %vm267, 1, 0
    %v271 = vcvt.s32.f32 %v268
    %v272 = vcvt.s32.f32 %v269
    %v273 = vcvt.s32.f32 %v270
    %vm274 = vcmask 195584
    %v276 = vsel %vm274, %v254, 0
    %v279 = vsel %vm274, %v259, 0
    %281 = vmatprep.subr.mxu0 0.0
    %282 = vmatpush1.msra.mxu0 %v271
    %283 = vmatprep.subr.mxu0 0.0
    %284 = vmatpush1.msra.mxu0 %v272
    %285 = vmatprep.subr.mxu0 0.0
    %286 = vmatpush1.msra.mxu0 %v273
    %287 = vmatprep.subr.mxu0 0.0
    %288 = vmatpush1.msra.mxu0 0.0
    %289 = vmatprep.subr.mxu0 0.0
    %290 = vmatpush1.msra.mxu0 0.0
    %291 = vmatprep.subr.mxu0 0.0
    %292 = vmatpush1.msra.mxu0 0.0
    %293 = vmatprep.subr.mxu0 0.0
    %294 = vmatpush1.msra.mxu0 0.0
    %295 = vmatprep.subr.mxu0 0.0
    %296 = vmatpush1.msra.mxu0 0.0
    %297 = vmatprep.subr.mxu0 0.0
    %298 = vmatpush1.msra.mxu0 0.0
    %299 = vmatprep.subr.mxu0 0.0
    %300 = vmatpush1.msra.mxu0 0.0
    %301 = vmatprep.subr.mxu0 0.0
    %302 = vmatpush1.msra.mxu0 0.0
    %303 = vmatprep.subr.mxu0 0.0
    %304 = vmatpush1.msra.mxu0 0.0
    %305 = vmatprep.subr.mxu0 0.0
    %306 = vmatpush1.msra.mxu0 0.0
    %307 = vmatprep.subr.mxu0 0.0
    %308 = vmatpush1.msra.mxu0 0.0
    %309 = vmatprep.subr.mxu0 0.0
    %310 = vmatpush1.msra.mxu0 0.0
    %311 = vmatprep.subr.mxu0 0.0
    %312 = vmatpush1.msra.mxu0 0.0
    %313 = vmatprep.subr.mxu0 0.0
    %314 = vmatpush1.msra.mxu0 0.0
    %315 = vmatprep.subr.mxu0 0.0
    %316 = vmatpush1.msra.mxu0 0.0
    %317 = vmatprep.subr.mxu0 0.0
    %318 = vmatpush1.msra.mxu0 0.0
    %319 = vmatprep.subr.mxu0 0.0
    %320 = vmatpush1.msra.mxu0 0.0
    %321 = vmatprep.subr.mxu0 0.0
    %322 = vmatpush1.msra.mxu0 0.0
    %323 = vmatprep.subr.mxu0 0.0
    %324 = vmatpush1.msra.mxu0 0.0
    %325 = vmatprep.subr.mxu0 0.0
    %326 = vmatpush1.msra.mxu0 0.0
    %327 = vmatprep.subr.mxu0 0.0
    %328 = vmatpush1.msra.mxu0 0.0
    %329 = vmatprep.subr.mxu0 0.0
    %330 = vmatpush1.msra.mxu0 0.0
    %331 = vmatprep.subr.mxu0 0.0
    %332 = vmatpush1.msra.mxu0 0.0
    %333 = vmatprep.subr.mxu0 0.0
    %334 = vmatpush1.msra.mxu0 0.0
    %335 = vmatprep.subr.mxu0 0.0
    %336 = vmatpush1.msra.mxu0 0.0
    %337 = vmatprep.subr.mxu0 0.0
    %338 = vmatpush1.msra.mxu0 0.0
    %339 = vmatprep.subr.mxu0 0.0
    %340 = vmatpush1.msra.mxu0 0.0
    %341 = vmatprep.subr.mxu0 0.0
    %342 = vmatpush1.msra.mxu0 0.0
    %343 = vmatprep.subr.mxu0 0.0
    %344 = vmatpush1.msra.mxu0 0.0
    %345 = vmatprep.mubr.f32.mxu0 0.0
    %346 = vmatmul.mubr.f32.gmra.mrb[0].mxu0 %v276
    %v347 = vpop.f32.mrb[0].mxu0
    %v348 = vadd.f32 0.0, %v347
    %v349 = vpop.f32.mrb[0].mxu0
    %350 = vmatprep.mubr.f32.mxu0 0.0
    %351 = vmatmul.mubr.f32.gmra.mrb[0].mxu0 %v279
    %v352 = vpop.f32.mrb[0].mxu0
    %v353 = vadd.f32 0.0, %v352
    %v354 = vpop.f32.mrb[0].mxu0
    %355 = vdwg.mxu0
    %v357 = vsel %vm274, %v152, 0
    %v360 = vsel %vm274, %v157, 0
    %362 = vmatprep.subr.mxu0 0.0
    %363 = vmatpush1.msra.mxu0 %v175
    %364 = vmatprep.subr.mxu0 0.0
    %365 = vmatpush1.msra.mxu0 %v176
    %366 = vmatprep.subr.mxu0 0.0
    %367 = vmatpush1.msra.mxu0 %v177
    %368 = vmatprep.subr.mxu0 0.0
    %369 = vmatpush1.msra.mxu0 0.0
    %370 = vmatprep.subr.mxu0 0.0
    %371 = vmatpush1.msra.mxu0 0.0
    %372 = vmatprep.subr.mxu0 0.0
    %373 = vmatpush1.msra.mxu0 0.0
    %374 = vmatprep.subr.mxu0 0.0
    %375 = vmatpush1.msra.mxu0 0.0
    %376 = vmatprep.subr.mxu0 0.0
    %377 = vmatpush1.msra.mxu0 0.0
    %378 = vmatprep.subr.mxu0 0.0
    %379 = vmatpush1.msra.mxu0 0.0
    %380 = vmatprep.subr.mxu0 0.0
    %381 = vmatpush1.msra.mxu0 0.0
    %382 = vmatprep.subr.mxu0 0.0
    %383 = vmatpush1.msra.mxu0 0.0
    %384 = vmatprep.subr.mxu0 0.0
    %385 = vmatpush1.msra.mxu0 0.0
    %386 = vmatprep.subr.mxu0 0.0
    %387 = vmatpush1.msra.mxu0 0.0
    %388 = vmatprep.subr.mxu0 0.0
    %389 = vmatpush1.msra.mxu0 0.0
    %390 = vmatprep.subr.mxu0 0.0
    %391 = vmatpush1.msra.mxu0 0.0
    %392 = vmatprep.subr.mxu0 0.0
    %393 = vmatpush1.msra.mxu0 0.0
    %394 = vmatprep.subr.mxu0 0.0
    %395 = vmatpush1.msra.mxu0 0.0
    %396 = vmatprep.subr.mxu0 0.0
    %397 = vmatpush1.msra.mxu0 0.0
    %398 = vmatprep.subr.mxu0 0.0
    %399 = vmatpush1.msra.mxu0 0.0
    %400 = vmatprep.subr.mxu0 0.0
    %401 = vmatpush1.msra.mxu0 0.0
    %402 = vmatprep.subr.mxu0 0.0
    %403 = vmatpush1.msra.mxu0 0.0
    %404 = vmatprep.subr.mxu0 0.0
    %405 = vmatpush1.msra.mxu0 0.0
    %406 = vmatprep.subr.mxu0 0.0
    %407 = vmatpush1.msra.mxu0 0.0
    %408 = vmatprep.subr.mxu0 0.0
    %409 = vmatpush1.msra.mxu0 0.0
    %410 = vmatprep.subr.mxu0 0.0
    %411 = vmatpush1.msra.mxu0 0.0
    %412 = vmatprep.subr.mxu0 0.0
    %413 = vmatpush1.msra.mxu0 0.0
    %414 = vmatprep.subr.mxu0 0.0
    %415 = vmatpush1.msra.mxu0 0.0
    %416 = vmatprep.subr.mxu0 0.0
    %417 = vmatpush1.msra.mxu0 0.0
    %418 = vmatprep.subr.mxu0 0.0
    %419 = vmatpush1.msra.mxu0 0.0
    %420 = vmatprep.subr.mxu0 0.0
    %421 = vmatpush1.msra.mxu0 0.0
    %422 = vmatprep.subr.mxu0 0.0
    %423 = vmatpush1.msra.mxu0 0.0
    %424 = vmatprep.subr.mxu0 0.0
    %425 = vmatpush1.msra.mxu0 0.0
    %426 = vmatprep.mubr.f32.mxu0 0.0
    %427 = vmatmul.mubr.f32.gmra.mrb[0].mxu0 %v357
    %v428 = vpop.f32.mrb[0].mxu0
    %v429 = vadd.f32 %v348, %v428
    %v430 = vpop.f32.mrb[0].mxu0
    %431 = vmatprep.mubr.f32.mxu0 0.0
    %432 = vmatmul.mubr.f32.gmra.mrb[0].mxu0 %v360
    %v433 = vpop.f32.mrb[0].mxu0
    %v434 = vadd.f32 %v353, %v433
    %v435 = vpop.f32.mrb[0].mxu0
    %436 = vdwg.mxu0
    %s437 = scalar_lea.vmem %s1, 32
    %v438 = vld [vmem:[%s437] sm:$0xff]
    %v439 = vld [vmem:[%s437 + $0x8] sm:$0xff]
    %v441 = vsel %vm78, %v438, 0
    %v444 = vsel %vm78, %v439, 0
    %446 = vmatprep.subr.mxu0 0.0
    %447 = vmatpush1.msra.mxu0 %v75
    %448 = vmatprep.subr.mxu0 0.0
    %449 = vmatpush1.msra.mxu0 0.0
    %450 = vmatprep.subr.mxu0 0.0
    %451 = vmatpush1.msra.mxu0 0.0
    %452 = vmatprep.subr.mxu0 0.0
    %453 = vmatpush1.msra.mxu0 0.0
    %454 = vmatprep.subr.mxu0 0.0
    %455 = vmatpush1.msra.mxu0 0.0
    %456 = vmatprep.subr.mxu0 0.0
    %457 = vmatpush1.msra.mxu0 0.0
    %458 = vmatprep.subr.mxu0 0.0
    %459 = vmatpush1.msra.mxu0 0.0
    %460 = vmatprep.subr.mxu0 0.0
    %461 = vmatpush1.msra.mxu0 0.0
    %462 = vmatprep.subr.mxu0 0.0
    %463 = vmatpush1.msra.mxu0 0.0
    %464 = vmatprep.subr.mxu0 0.0
    %465 = vmatpush1.msra.mxu0 0.0
    %466 = vmatprep.subr.mxu0 0.0
    %467 = vmatpush1.msra.mxu0 0.0
    %468 = vmatprep.subr.mxu0 0.0
    %469 = vmatpush1.msra.mxu0 0.0
    %470 = vmatprep.subr.mxu0 0.0
    %471 = vmatpush1.msra.mxu0 0.0
    %472 = vmatprep.subr.mxu0 0.0
    %473 = vmatpush1.msra.mxu0 0.0
    %474 = vmatprep.subr.mxu0 0.0
    %475 = vmatpush1.msra.mxu0 0.0
    %476 = vmatprep.subr.mxu0 0.0
    %477 = vmatpush1.msra.mxu0 0.0
    %478 = vmatprep.subr.mxu0 0.0
    %479 = vmatpush1.msra.mxu0 0.0
    %480 = vmatprep.subr.mxu0 0.0
    %481 = vmatpush1.msra.mxu0 0.0
    %482 = vmatprep.subr.mxu0 0.0
    %483 = vmatpush1.msra.mxu0 0.0
    %484 = vmatprep.subr.mxu0 0.0
    %485 = vmatpush1.msra.mxu0 0.0
    %486 = vmatprep.subr.mxu0 0.0
    %487 = vmatpush1.msra.mxu0 0.0
    %488 = vmatprep.subr.mxu0 0.0
    %489 = vmatpush1.msra.mxu0 0.0
    %490 = vmatprep.subr.mxu0 0.0
    %491 = vmatpush1.msra.mxu0 0.0
    %492 = vmatprep.subr.mxu0 0.0
    %493 = vmatpush1.msra.mxu0 0.0
    %494 = vmatprep.subr.mxu0 0.0
    %495 = vmatpush1.msra.mxu0 0.0
    %496 = vmatprep.subr.mxu0 0.0
    %497 = vmatpush1.msra.mxu0 0.0
    %498 = vmatprep.subr.mxu0 0.0
    %499 = vmatpush1.msra.mxu0 0.0
    %500 = vmatprep.subr.mxu0 0.0
    %501 = vmatpush1.msra.mxu0 0.0
    %502 = vmatprep.subr.mxu0 0.0
    %503 = vmatpush1.msra.mxu0 0.0
    %504 = vmatprep.subr.mxu0 0.0
    %505 = vmatpush1.msra.mxu0 0.0
    %506 = vmatprep.subr.mxu0 0.0
    %507 = vmatpush1.msra.mxu0 0.0
    %508 = vmatprep.subr.mxu0 0.0
    %509 = vmatpush1.msra.mxu0 0.0
    %510 = vmatprep.mubr.f32.mxu0 0.0
    %511 = vmatmul.mubr.f32.gmra.mrb[0].mxu0 %v441
    %v512 = vpop.f32.mrb[0].mxu0
    %v513 = vadd.f32 0.0, %v512
    %v514 = vpop.f32.mrb[0].mxu0
    %515 = vmatprep.mubr.f32.mxu0 0.0
    %516 = vmatmul.mubr.f32.gmra.mrb[0].mxu0 %v444
    %v517 = vpop.f32.mrb[0].mxu0
    %v518 = vadd.f32 0.0, %v517
    %v519 = vpop.f32.mrb[0].mxu0
    %520 = vdwg.mxu0
    %v521 = vadd.f32 %v429, %v513
    %v522 = vadd.f32 %v434, %v518
    %v523 = vld [vmem:[%s2] sm:$0xff]
    %v524 = vld [vmem:[%s2 + $0x8] sm:$0xff]
    %526 = vset.pattern.permute.xlu0 0
    %527 = vperm.xlu0 %526, %v523
    %v528 = vpop.permute.xlu0 %527
    %531 = vset.pattern.permute.xlu0 0
    %532 = vperm.xlu0 %531, %v524
    %v533 = vpop.permute.xlu0 %532
    %v535 = vmul.f32 %v521, %v528
    %v536 = vmul.f32 %v522, %v533
    %s537 = scalar_lea.vmem %s2, 16
    %v538 = vld [vmem:[%s537] sm:$0xff]
    %v539 = vld [vmem:[%s537 + $0x8] sm:$0xff]
    %541 = vset.pattern.permute.xlu0 0
    %542 = vperm.xlu0 %541, %v538
    %v543 = vpop.permute.xlu0 %542
    %546 = vset.pattern.permute.xlu0 0
    %547 = vperm.xlu0 %546, %v539
    %v548 = vpop.permute.xlu0 %547
    %v550 = vadd.f32 %v535, %v543
    %v551 = vadd.f32 %v536, %v548
    %v552 = vld [vmem:[%s3] sm:$0xff]
    %v553 = vld [vmem:[%s3 + $0x8] sm:$0xff]
    %v554 = vld [vmem:[%s3 + $0x10] sm:$0xff]
    %vm555 = vcmask 130048
    %v557 = vsel %vm555, %v552, 0
    %v560 = vsel %vm555, %v553, 0
    %v563 = vsel %vm555, %v554, 0
    %565 = vmatprep.subr.mxu0 0.0
    %566 = vmatpush1.msra.mxu0 %v550
    %567 = vmatprep.subr.mxu0 0.0
    %568 = vmatpush1.msra.mxu0 %v551
    %569 = vmatprep.subr.mxu0 0.0
    %570 = vmatpush1.msra.mxu0 0.0
    %571 = vmatprep.subr.mxu0 0.0
    %572 = vmatpush1.msra.mxu0 0.0
    %573 = vmatprep.subr.mxu0 0.0
    %574 = vmatpush1.msra.mxu0 0.0
    %575 = vmatprep.subr.mxu0 0.0
    %576 = vmatpush1.msra.mxu0 0.0
    %577 = vmatprep.subr.mxu0 0.0
    %578 = vmatpush1.msra.mxu0 0.0
    %579 = vmatprep.subr.mxu0 0.0
    %580 = vmatpush1.msra.mxu0 0.0
    %581 = vmatprep.subr.mxu0 0.0
    %582 = vmatpush1.msra.mxu0 0.0
    %583 = vmatprep.subr.mxu0 0.0
    %584 = vmatpush1.msra.mxu0 0.0
    %585 = vmatprep.subr.mxu0 0.0
    %586 = vmatpush1.msra.mxu0 0.0
    %587 = vmatprep.subr.mxu0 0.0
    %588 = vmatpush1.msra.mxu0 0.0
    %589 = vmatprep.subr.mxu0 0.0
    %590 = vmatpush1.msra.mxu0 0.0
    %591 = vmatprep.subr.mxu0 0.0
    %592 = vmatpush1.msra.mxu0 0.0
    %593 = vmatprep.subr.mxu0 0.0
    %594 = vmatpush1.msra.mxu0 0.0
    %595 = vmatprep.subr.mxu0 0.0
    %596 = vmatpush1.msra.mxu0 0.0
    %597 = vmatprep.subr.mxu0 0.0
    %598 = vmatpush1.msra.mxu0 0.0
    %599 = vmatprep.subr.mxu0 0.0
    %600 = vmatpush1.msra.mxu0 0.0
    %601 = vmatprep.subr.mxu0 0.0
    %602 = vmatpush1.msra.mxu0 0.0
    %603 = vmatprep.subr.mxu0 0.0
    %604 = vmatpush1.msra.mxu0 0.0
    %605 = vmatprep.subr.mxu0 0.0
    %606 = vmatpush1.msra.mxu0 0.0
    %607 = vmatprep.subr.mxu0 0.0
    %608 = vmatpush1.msra.mxu0 0.0
    %609 = vmatprep.subr.mxu0 0.0
    %610 = vmatpush1.msra.mxu0 0.0
    %611 = vmatprep.subr.mxu0 0.0
    %612 = vmatpush1.msra.mxu0 0.0
    %613 = vmatprep.subr.mxu0 0.0
    %614 = vmatpush1.msra.mxu0 0.0
    %615 = vmatprep.subr.mxu0 0.0
    %616 = vmatpush1.msra.mxu0 0.0
    %617 = vmatprep.subr.mxu0 0.0
    %618 = vmatpush1.msra.mxu0 0.0
    %619 = vmatprep.subr.mxu0 0.0
    %620 = vmatpush1.msra.mxu0 0.0
    %621 = vmatprep.subr.mxu0 0.0
    %622 = vmatpush1.msra.mxu0 0.0
    %623 = vmatprep.subr.mxu0 0.0
    %624 = vmatpush1.msra.mxu0 0.0
    %625 = vmatprep.subr.mxu0 0.0
    %626 = vmatpush1.msra.mxu0 0.0
    %627 = vmatprep.subr.mxu0 0.0
    %628 = vmatpush1.msra.mxu0 0.0
    %629 = vmatprep.mubr.f32.mxu0 0.0
    %630 = vmatmul.mubr.f32.gmra.mrb[0].mxu0 %v557
    %v631 = vpop.f32.mrb[0].mxu0
    %v632 = vadd.f32 0.0, %v631
    %v633 = vpop.f32.mrb[0].mxu0
    %634 = vmatprep.mubr.f32.mxu0 0.0
    %635 = vmatmul.mubr.f32.gmra.mrb[0].mxu0 %v560
    %v636 = vpop.f32.mrb[0].mxu0
    %v637 = vadd.f32 0.0, %v636
    %v638 = vpop.f32.mrb[0].mxu0
    %639 = vmatprep.mubr.f32.mxu0 0.0
    %640 = vmatmul.mubr.f32.gmra.mrb[0].mxu0 %v563
    %v641 = vpop.f32.mrb[0].mxu0
    %v642 = vadd.f32 0.0, %v641
    %v643 = vpop.f32.mrb[0].mxu0
    %644 = vdwg.mxu0
    %v645 = vmul.u32 %v165, 2
    %vm646 = vcmp.eq.s32.totalorder %v166, %v645
    %vm647 = vcmp.eq.s32.totalorder %v167, %v645
    %vm648 = vcmp.eq.s32.totalorder %v168, %v645
    %v649 = vsel %vm646, 1, 0
    %v650 = vsel %vm647, 1, 0
    %v651 = vsel %vm648, 1, 0
    %v652 = vcvt.s32.f32 %v649
    %v653 = vcvt.s32.f32 %v650
    %v654 = vcvt.s32.f32 %v651
    %s655 = scalar_lea.vmem %s3, 24
    %v656 = vld [vmem:[%s655] sm:$0xff]
    %v657 = vld [vmem:[%s655 + $0x8] sm:$0xff]
    %v658 = vld [vmem:[%s655 + $0x10] sm:$0xff]
    %v660 = vsel %vm555, %v656, 0
    %v663 = vsel %vm555, %v657, 0
    %v666 = vsel %vm555, %v658, 0
    %668 = vmatprep.subr.mxu0 0.0
    %669 = vmatpush1.msra.mxu0 %v550
    %670 = vmatprep.subr.mxu0 0.0
    %671 = vmatpush1.msra.mxu0 %v551
    %672 = vmatprep.subr.mxu0 0.0
    %673 = vmatpush1.msra.mxu0 0.0
    %674 = vmatprep.subr.mxu0 0.0
    %675 = vmatpush1.msra.mxu0 0.0
    %676 = vmatprep.subr.mxu0 0.0
    %677 = vmatpush1.msra.mxu0 0.0
    %678 = vmatprep.subr.mxu0 0.0
    %679 = vmatpush1.msra.mxu0 0.0
    %680 = vmatprep.subr.mxu0 0.0
    %681 = vmatpush1.msra.mxu0 0.0
    %682 = vmatprep.subr.mxu0 0.0
    %683 = vmatpush1.msra.mxu0 0.0
    %684 = vmatprep.subr.mxu0 0.0
    %685 = vmatpush1.msra.mxu0 0.0
    %686 = vmatprep.subr.mxu0 0.0
    %687 = vmatpush1.msra.mxu0 0.0
    %688 = vmatprep.subr.mxu0 0.0
    %689 = vmatpush1.msra.mxu0 0.0
    %690 = vmatprep.subr.mxu0 0.0
    %691 = vmatpush1.msra.mxu0 0.0
    %692 = vmatprep.subr.mxu0 0.0
    %693 = vmatpush1.msra.mxu0 0.0
    %694 = vmatprep.subr.mxu0 0.0
    %695 = vmatpush1.msra.mxu0 0.0
    %696 = vmatprep.subr.mxu0 0.0
    %697 = vmatpush1.msra.mxu0 0.0
    %698 = vmatprep.subr.mxu0 0.0
    %699 = vmatpush1.msra.mxu0 0.0
    %700 = vmatprep.subr.mxu0 0.0
    %701 = vmatpush1.msra.mxu0 0.0
    %702 = vmatprep.subr.mxu0 0.0
    %703 = vmatpush1.msra.mxu0 0.0
    %704 = vmatprep.subr.mxu0 0.0
    %705 = vmatpush1.msra.mxu0 0.0
    %706 = vmatprep.subr.mxu0 0.0
    %707 = vmatpush1.msra.mxu0 0.0
    %708 = vmatprep.subr.mxu0 0.0
    %709 = vmatpush1.msra.mxu0 0.0
    %710 = vmatprep.subr.mxu0 0.0
    %711 = vmatpush1.msra.mxu0 0.0
    %712 = vmatprep.subr.mxu0 0.0
    %713 = vmatpush1.msra.mxu0 0.0
    %714 = vmatprep.subr.mxu0 0.0
    %715 = vmatpush1.msra.mxu0 0.0
    %716 = vmatprep.subr.mxu0 0.0
    %717 = vmatpush1.msra.mxu0 0.0
    %718 = vmatprep.subr.mxu0 0.0
    %719 = vmatpush1.msra.mxu0 0.0
    %720 = vmatprep.subr.mxu0 0.0
    %721 = vmatpush1.msra.mxu0 0.0
    %722 = vmatprep.subr.mxu0 0.0
    %723 = vmatpush1.msra.mxu0 0.0
    %724 = vmatprep.subr.mxu0 0.0
    %725 = vmatpush1.msra.mxu0 0.0
    %726 = vmatprep.subr.mxu0 0.0
    %727 = vmatpush1.msra.mxu0 0.0
    %728 = vmatprep.subr.mxu0 0.0
    %729 = vmatpush1.msra.mxu0 0.0
    %730 = vmatprep.subr.mxu0 0.0
    %731 = vmatpush1.msra.mxu0 0.0
    %732 = vmatprep.mubr.f32.mxu0 0.0
    %733 = vmatmul.mubr.f32.gmra.mrb[0].mxu0 %v660
    %v734 = vpop.f32.mrb[0].mxu0
    %v735 = vadd.f32 0.0, %v734
    %v736 = vpop.f32.mrb[0].mxu0
    %737 = vmatprep.mubr.f32.mxu0 0.0
    %738 = vmatmul.mubr.f32.gmra.mrb[0].mxu0 %v663
    %v739 = vpop.f32.mrb[0].mxu0
    %v740 = vadd.f32 0.0, %v739
    %v741 = vpop.f32.mrb[0].mxu0
    %742 = vmatprep.mubr.f32.mxu0 0.0
    %743 = vmatmul.mubr.f32.gmra.mrb[0].mxu0 %v666
    %v744 = vpop.f32.mrb[0].mxu0
    %v745 = vadd.f32 0.0, %v744
    %v746 = vpop.f32.mrb[0].mxu0
    %747 = vdwg.mxu0
    %vm748 = vcmp.eq.s32.totalorder %v262, %v645
    %vm749 = vcmp.eq.s32.totalorder %v263, %v645
    %vm750 = vcmp.eq.s32.totalorder %v264, %v645
    %v751 = vsel %vm748, 1, 0
    %v752 = vsel %vm749, 1, 0
    %v753 = vsel %vm750, 1, 0
    %v754 = vcvt.s32.f32 %v751
    %v755 = vcvt.s32.f32 %v752
    %v756 = vcvt.s32.f32 %v753
    %v758 = vsel %vm274, %v735, 0
    %v761 = vsel %vm274, %v740, 0
    %v764 = vsel %vm274, %v745, 0
    %766 = vmatprep.subr.mxu0 0.0
    %767 = vmatpush1.msra.mxu0 %v754
    %768 = vmatprep.subr.mxu0 0.0
    %769 = vmatpush1.msra.mxu0 %v755
    %770 = vmatprep.subr.mxu0 0.0
    %771 = vmatpush1.msra.mxu0 %v756
    %772 = vmatprep.subr.mxu0 0.0
    %773 = vmatpush1.msra.mxu0 0.0
    %774 = vmatprep.subr.mxu0 0.0
    %775 = vmatpush1.msra.mxu0 0.0
    %776 = vmatprep.subr.mxu0 0.0
    %777 = vmatpush1.msra.mxu0 0.0
    %778 = vmatprep.subr.mxu0 0.0
    %779 = vmatpush1.msra.mxu0 0.0
    %780 = vmatprep.subr.mxu0 0.0
    %781 = vmatpush1.msra.mxu0 0.0
    %782 = vmatprep.subr.mxu0 0.0
    %783 = vmatpush1.msra.mxu0 0.0
    %784 = vmatprep.subr.mxu0 0.0
    %785 = vmatpush1.msra.mxu0 0.0
    %786 = vmatprep.subr.mxu0 0.0
    %787 = vmatpush1.msra.mxu0 0.0
    %788 = vmatprep.subr.mxu0 0.0
    %789 = vmatpush1.msra.mxu0 0.0
    %790 = vmatprep.subr.mxu0 0.0
    %791 = vmatpush1.msra.mxu0 0.0
    %792 = vmatprep.subr.mxu0 0.0
    %793 = vmatpush1.msra.mxu0 0.0
    %794 = vmatprep.subr.mxu0 0.0
    %795 = vmatpush1.msra.mxu0 0.0
    %796 = vmatprep.subr.mxu0 0.0
    %797 = vmatpush1.msra.mxu0 0.0
    %798 = vmatprep.subr.mxu0 0.0
    %799 = vmatpush1.msra.mxu0 0.0
    %800 = vmatprep.subr.mxu0 0.0
    %801 = vmatpush1.msra.mxu0 0.0
    %802 = vmatprep.subr.mxu0 0.0
    %803 = vmatpush1.msra.mxu0 0.0
    %804 = vmatprep.subr.mxu0 0.0
    %805 = vmatpush1.msra.mxu0 0.0
    %806 = vmatprep.subr.mxu0 0.0
    %807 = vmatpush1.msra.mxu0 0.0
    %808 = vmatprep.subr.mxu0 0.0
    %809 = vmatpush1.msra.mxu0 0.0
    %810 = vmatprep.subr.mxu0 0.0
    %811 = vmatpush1.msra.mxu0 0.0
    %812 = vmatprep.subr.mxu0 0.0
    %813 = vmatpush1.msra.mxu0 0.0
    %814 = vmatprep.subr.mxu0 0.0
    %815 = vmatpush1.msra.mxu0 0.0
    %816 = vmatprep.subr.mxu0 0.0
    %817 = vmatpush1.msra.mxu0 0.0
    %818 = vmatprep.subr.mxu0 0.0
    %819 = vmatpush1.msra.mxu0 0.0
    %820 = vmatprep.subr.mxu0 0.0
    %821 = vmatpush1.msra.mxu0 0.0
    %822 = vmatprep.subr.mxu0 0.0
    %823 = vmatpush1.msra.mxu0 0.0
    %824 = vmatprep.subr.mxu0 0.0
    %825 = vmatpush1.msra.mxu0 0.0
    %826 = vmatprep.subr.mxu0 0.0
    %827 = vmatpush1.msra.mxu0 0.0
    %828 = vmatprep.subr.mxu0 0.0
    %829 = vmatpush1.msra.mxu0 0.0
    %830 = vmatprep.mubr.f32.mxu0 0.0
    %831 = vmatmul.mubr.f32.gmra.mrb[0].mxu0 %v758
    %v832 = vpop.f32.mrb[0].mxu0
    %v833 = vadd.f32 0.0, %v832
    %v834 = vpop.f32.mrb[0].mxu0
    %835 = vmatprep.mubr.f32.mxu0 0.0
    %836 = vmatmul.mubr.f32.gmra.mrb[0].mxu0 %v761
    %v837 = vpop.f32.mrb[0].mxu0
    %v838 = vadd.f32 0.0, %v837
    %v839 = vpop.f32.mrb[0].mxu0
    %840 = vmatprep.mubr.f32.mxu0 0.0
    %841 = vmatmul.mubr.f32.gmra.mrb[0].mxu0 %v764
    %v842 = vpop.f32.mrb[0].mxu0
    %v843 = vadd.f32 0.0, %v842
    %v844 = vpop.f32.mrb[0].mxu0
    %845 = vdwg.mxu0
    %v847 = vsel %vm274, %v632, 0
    %v850 = vsel %vm274, %v637, 0
    %v853 = vsel %vm274, %v642, 0
    %855 = vmatprep.subr.mxu0 0.0
    %856 = vmatpush1.msra.mxu0 %v652
    %857 = vmatprep.subr.mxu0 0.0
    %858 = vmatpush1.msra.mxu0 %v653
    %859 = vmatprep.subr.mxu0 0.0
    %860 = vmatpush1.msra.mxu0 %v654
    %861 = vmatprep.subr.mxu0 0.0
    %862 = vmatpush1.msra.mxu0 0.0
    %863 = vmatprep.subr.mxu0 0.0
    %864 = vmatpush1.msra.mxu0 0.0
    %865 = vmatprep.subr.mxu0 0.0
    %866 = vmatpush1.msra.mxu0 0.0
    %867 = vmatprep.subr.mxu0 0.0
    %868 = vmatpush1.msra.mxu0 0.0
    %869 = vmatprep.subr.mxu0 0.0
    %870 = vmatpush1.msra.mxu0 0.0
    %871 = vmatprep.subr.mxu0 0.0
    %872 = vmatpush1.msra.mxu0 0.0
    %873 = vmatprep.subr.mxu0 0.0
    %874 = vmatpush1.msra.mxu0 0.0
    %875 = vmatprep.subr.mxu0 0.0
    %876 = vmatpush1.msra.mxu0 0.0
    %877 = vmatprep.subr.mxu0 0.0
    %878 = vmatpush1.msra.mxu0 0.0
    %879 = vmatprep.subr.mxu0 0.0
    %880 = vmatpush1.msra.mxu0 0.0
    %881 = vmatprep.subr.mxu0 0.0
    %882 = vmatpush1.msra.mxu0 0.0
    %883 = vmatprep.subr.mxu0 0.0
    %884 = vmatpush1.msra.mxu0 0.0
    %885 = vmatprep.subr.mxu0 0.0
    %886 = vmatpush1.msra.mxu0 0.0
    %887 = vmatprep.subr.mxu0 0.0
    %888 = vmatpush1.msra.mxu0 0.0
    %889 = vmatprep.subr.mxu0 0.0
    %890 = vmatpush1.msra.mxu0 0.0
    %891 = vmatprep.subr.mxu0 0.0
    %892 = vmatpush1.msra.mxu0 0.0
    %893 = vmatprep.subr.mxu0 0.0
    %894 = vmatpush1.msra.mxu0 0.0
    %895 = vmatprep.subr.mxu0 0.0
    %896 = vmatpush1.msra.mxu0 0.0
    %897 = vmatprep.subr.mxu0 0.0
    %898 = vmatpush1.msra.mxu0 0.0
    %899 = vmatprep.subr.mxu0 0.0
    %900 = vmatpush1.msra.mxu0 0.0
    %901 = vmatprep.subr.mxu0 0.0
    %902 = vmatpush1.msra.mxu0 0.0
    %903 = vmatprep.subr.mxu0 0.0
    %904 = vmatpush1.msra.mxu0 0.0
    %905 = vmatprep.subr.mxu0 0.0
    %906 = vmatpush1.msra.mxu0 0.0
    %907 = vmatprep.subr.mxu0 0.0
    %908 = vmatpush1.msra.mxu0 0.0
    %909 = vmatprep.subr.mxu0 0.0
    %910 = vmatpush1.msra.mxu0 0.0
    %911 = vmatprep.subr.mxu0 0.0
    %912 = vmatpush1.msra.mxu0 0.0
    %913 = vmatprep.subr.mxu0 0.0
    %914 = vmatpush1.msra.mxu0 0.0
    %915 = vmatprep.subr.mxu0 0.0
    %916 = vmatpush1.msra.mxu0 0.0
    %917 = vmatprep.subr.mxu0 0.0
    %918 = vmatpush1.msra.mxu0 0.0
    %919 = vmatprep.mubr.f32.mxu0 0.0
    %920 = vmatmul.mubr.f32.gmra.mrb[0].mxu0 %v847
    %v921 = vpop.f32.mrb[0].mxu0
    %v922 = vadd.f32 %v833, %v921
    %v923 = vpop.f32.mrb[0].mxu0
    %924 = vmatprep.mubr.f32.mxu0 0.0
    %925 = vmatmul.mubr.f32.gmra.mrb[0].mxu0 %v850
    %v926 = vpop.f32.mrb[0].mxu0
    %v927 = vadd.f32 %v838, %v926
    %v928 = vpop.f32.mrb[0].mxu0
    %929 = vmatprep.mubr.f32.mxu0 0.0
    %930 = vmatmul.mubr.f32.gmra.mrb[0].mxu0 %v853
    %v931 = vpop.f32.mrb[0].mxu0
    %v932 = vadd.f32 %v843, %v931
    %v933 = vpop.f32.mrb[0].mxu0
    %934 = vdwg.mxu0
    %s935 = scalar_lea.vmem %s3, 48
    %v936 = vld [vmem:[%s935] sm:$0xff]
    %v937 = vld [vmem:[%s935 + $0x8] sm:$0xff]
    %v938 = vld [vmem:[%s935 + $0x10] sm:$0xff]
    %v940 = vsel %vm555, %v936, 0
    %v943 = vsel %vm555, %v937, 0
    %v946 = vsel %vm555, %v938, 0
    %948 = vmatprep.subr.mxu0 0.0
    %949 = vmatpush1.msra.mxu0 %v550
    %950 = vmatprep.subr.mxu0 0.0
    %951 = vmatpush1.msra.mxu0 %v551
    %952 = vmatprep.subr.mxu0 0.0
    %953 = vmatpush1.msra.mxu0 0.0
    %954 = vmatprep.subr.mxu0 0.0
    %955 = vmatpush1.msra.mxu0 0.0
    %956 = vmatprep.subr.mxu0 0.0
    %957 = vmatpush1.msra.mxu0 0.0
    %958 = vmatprep.subr.mxu0 0.0
    %959 = vmatpush1.msra.mxu0 0.0
    %960 = vmatprep.subr.mxu0 0.0
    %961 = vmatpush1.msra.mxu0 0.0
    %962 = vmatprep.subr.mxu0 0.0
    %963 = vmatpush1.msra.mxu0 0.0
    %964 = vmatprep.subr.mxu0 0.0
    %965 = vmatpush1.msra.mxu0 0.0
    %966 = vmatprep.subr.mxu0 0.0
    %967 = vmatpush1.msra.mxu0 0.0
    %968 = vmatprep.subr.mxu0 0.0
    %969 = vmatpush1.msra.mxu0 0.0
    %970 = vmatprep.subr.mxu0 0.0
    %971 = vmatpush1.msra.mxu0 0.0
    %972 = vmatprep.subr.mxu0 0.0
    %973 = vmatpush1.msra.mxu0 0.0
    %974 = vmatprep.subr.mxu0 0.0
    %975 = vmatpush1.msra.mxu0 0.0
    %976 = vmatprep.subr.mxu0 0.0
    %977 = vmatpush1.msra.mxu0 0.0
    %978 = vmatprep.subr.mxu0 0.0
    %979 = vmatpush1.msra.mxu0 0.0
    %980 = vmatprep.subr.mxu0 0.0
    %981 = vmatpush1.msra.mxu0 0.0
    %982 = vmatprep.subr.mxu0 0.0
    %983 = vmatpush1.msra.mxu0 0.0
    %984 = vmatprep.subr.mxu0 0.0
    %985 = vmatpush1.msra.mxu0 0.0
    %986 = vmatprep.subr.mxu0 0.0
    %987 = vmatpush1.msra.mxu0 0.0
    %988 = vmatprep.subr.mxu0 0.0
    %989 = vmatpush1.msra.mxu0 0.0
    %990 = vmatprep.subr.mxu0 0.0
    %991 = vmatpush1.msra.mxu0 0.0
    %992 = vmatprep.subr.mxu0 0.0
    %993 = vmatpush1.msra.mxu0 0.0
    %994 = vmatprep.subr.mxu0 0.0
    %995 = vmatpush1.msra.mxu0 0.0
    %996 = vmatprep.subr.mxu0 0.0
    %997 = vmatpush1.msra.mxu0 0.0
    %998 = vmatprep.subr.mxu0 0.0
    %999 = vmatpush1.msra.mxu0 0.0
    %1000 = vmatprep.subr.mxu0 0.0
    %1001 = vmatpush1.msra.mxu0 0.0
    %1002 = vmatprep.subr.mxu0 0.0
    %1003 = vmatpush1.msra.mxu0 0.0
    %1004 = vmatprep.subr.mxu0 0.0
    %1005 = vmatpush1.msra.mxu0 0.0
    %1006 = vmatprep.subr.mxu0 0.0
    %1007 = vmatpush1.msra.mxu0 0.0
    %1008 = vmatprep.subr.mxu0 0.0
    %1009 = vmatpush1.msra.mxu0 0.0
    %1010 = vmatprep.subr.mxu0 0.0
    %1011 = vmatpush1.msra.mxu0 0.0
    %1012 = vmatprep.mubr.f32.mxu0 0.0
    %1013 = vmatmul.mubr.f32.gmra.mrb[0].mxu0 %v940
    %v1014 = vpop.f32.mrb[0].mxu0
    %v1015 = vadd.f32 0.0, %v1014
    %v1016 = vpop.f32.mrb[0].mxu0
    %1017 = vmatprep.mubr.f32.mxu0 0.0
    %1018 = vmatmul.mubr.f32.gmra.mrb[0].mxu0 %v943
    %v1019 = vpop.f32.mrb[0].mxu0
    %v1020 = vadd.f32 0.0, %v1019
    %v1021 = vpop.f32.mrb[0].mxu0
    %1022 = vmatprep.mubr.f32.mxu0 0.0
    %1023 = vmatmul.mubr.f32.gmra.mrb[0].mxu0 %v946
    %v1024 = vpop.f32.mrb[0].mxu0
    %v1025 = vadd.f32 0.0, %v1024
    %v1026 = vpop.f32.mrb[0].mxu0
    %1027 = vdwg.mxu0
    %vm1028 = vcmp.eq.s32.totalorder %v161, %v645
    %vm1029 = vcmp.eq.s32.totalorder %v162, %v645
    %vm1030 = vcmp.eq.s32.totalorder %v163, %v645
    %v1031 = vsel %vm1028, 1, 0
    %v1032 = vsel %vm1029, 1, 0
    %v1033 = vsel %vm1030, 1, 0
    %v1034 = vcvt.s32.f32 %v1031
    %v1035 = vcvt.s32.f32 %v1032
    %v1036 = vcvt.s32.f32 %v1033
    %v1038 = vsel %vm274, %v1015, 0
    %v1041 = vsel %vm274, %v1020, 0
    %v1044 = vsel %vm274, %v1025, 0
    %1046 = vmatprep.subr.mxu0 0.0
    %1047 = vmatpush1.msra.mxu0 %v1034
    %1048 = vmatprep.subr.mxu0 0.0
    %1049 = vmatpush1.msra.mxu0 %v1035
    %1050 = vmatprep.subr.mxu0 0.0
    %1051 = vmatpush1.msra.mxu0 %v1036
    %1052 = vmatprep.subr.mxu0 0.0
    %1053 = vmatpush1.msra.mxu0 0.0
    %1054 = vmatprep.subr.mxu0 0.0
    %1055 = vmatpush1.msra.mxu0 0.0
    %1056 = vmatprep.subr.mxu0 0.0
    %1057 = vmatpush1.msra.mxu0 0.0
    %1058 = vmatprep.subr.mxu0 0.0
    %1059 = vmatpush1.msra.mxu0 0.0
    %1060 = vmatprep.subr.mxu0 0.0
    %1061 = vmatpush1.msra.mxu0 0.0
    %1062 = vmatprep.subr.mxu0 0.0
    %1063 = vmatpush1.msra.mxu0 0.0
    %1064 = vmatprep.subr.mxu0 0.0
    %1065 = vmatpush1.msra.mxu0 0.0
    %1066 = vmatprep.subr.mxu0 0.0
    %1067 = vmatpush1.msra.mxu0 0.0
    %1068 = vmatprep.subr.mxu0 0.0
    %1069 = vmatpush1.msra.mxu0 0.0
    %1070 = vmatprep.subr.mxu0 0.0
    %1071 = vmatpush1.msra.mxu0 0.0
    %1072 = vmatprep.subr.mxu0 0.0
    %1073 = vmatpush1.msra.mxu0 0.0
    %1074 = vmatprep.subr.mxu0 0.0
    %1075 = vmatpush1.msra.mxu0 0.0
    %1076 = vmatprep.subr.mxu0 0.0
    %1077 = vmatpush1.msra.mxu0 0.0
    %1078 = vmatprep.subr.mxu0 0.0
    %1079 = vmatpush1.msra.mxu0 0.0
    %1080 = vmatprep.subr.mxu0 0.0
    %1081 = vmatpush1.msra.mxu0 0.0
    %1082 = vmatprep.subr.mxu0 0.0
    %1083 = vmatpush1.msra.mxu0 0.0
    %1084 = vmatprep.subr.mxu0 0.0
    %1085 = vmatpush1.msra.mxu0 0.0
    %1086 = vmatprep.subr.mxu0 0.0
    %1087 = vmatpush1.msra.mxu0 0.0
    %1088 = vmatprep.subr.mxu0 0.0
    %1089 = vmatpush1.msra.mxu0 0.0
    %1090 = vmatprep.subr.mxu0 0.0
    %1091 = vmatpush1.msra.mxu0 0.0
    %1092 = vmatprep.subr.mxu0 0.0
    %1093 = vmatpush1.msra.mxu0 0.0
    %1094 = vmatprep.subr.mxu0 0.0
    %1095 = vmatpush1.msra.mxu0 0.0
    %1096 = vmatprep.subr.mxu0 0.0
    %1097 = vmatpush1.msra.mxu0 0.0
    %1098 = vmatprep.subr.mxu0 0.0
    %1099 = vmatpush1.msra.mxu0 0.0
    %1100 = vmatprep.subr.mxu0 0.0
    %1101 = vmatpush1.msra.mxu0 0.0
    %1102 = vmatprep.subr.mxu0 0.0
    %1103 = vmatpush1.msra.mxu0 0.0
    %1104 = vmatprep.subr.mxu0 0.0
    %1105 = vmatpush1.msra.mxu0 0.0
    %1106 = vmatprep.subr.mxu0 0.0
    %1107 = vmatpush1.msra.mxu0 0.0
    %1108 = vmatprep.subr.mxu0 0.0
    %1109 = vmatpush1.msra.mxu0 0.0
    %1110 = vmatprep.mubr.f32.mxu0 0.0
    %1111 = vmatmul.mubr.f32.gmra.mrb[0].mxu0 %v1038
    %v1112 = vpop.f32.mrb[0].mxu0
    %v1113 = vadd.f32 0.0, %v1112
    %v1114 = vpop.f32.mrb[0].mxu0
    %1115 = vmatprep.mubr.f32.mxu0 0.0
    %1116 = vmatmul.mubr.f32.gmra.mrb[0].mxu0 %v1041
    %v1117 = vpop.f32.mrb[0].mxu0
    %v1118 = vadd.f32 0.0, %v1117
    %v1119 = vpop.f32.mrb[0].mxu0
    %1120 = vmatprep.mubr.f32.mxu0 0.0
    %1121 = vmatmul.mubr.f32.gmra.mrb[0].mxu0 %v1044
    %v1122 = vpop.f32.mrb[0].mxu0
    %v1123 = vadd.f32 0.0, %v1122
    %v1124 = vpop.f32.mrb[0].mxu0
    %1125 = vdwg.mxu0
    %v1126 = vadd.f32 %v922, %v1113
    %v1127 = vadd.f32 %v927, %v1118
    %v1128 = vadd.f32 %v932, %v1123
    %v1129 = vld [vmem:[%s4] sm:$0xff]
    %v1130 = vld [vmem:[%s4 + $0x8] sm:$0xff]
    %v1131 = vld [vmem:[%s4 + $0x10] sm:$0xff]
    %1133 = vset.pattern.permute.xlu0 0
    %1134 = vperm.xlu0 %1133, %v1129
    %v1135 = vpop.permute.xlu0 %1134
    %1138 = vset.pattern.permute.xlu0 0
    %1139 = vperm.xlu0 %1138, %v1130
    %v1140 = vpop.permute.xlu0 %1139
    %1143 = vset.pattern.permute.xlu0 0
    %1144 = vperm.xlu0 %1143, %v1131
    %v1145 = vpop.permute.xlu0 %1144
    %v1147 = vmul.f32 %v1126, %v1135
    %v1148 = vmul.f32 %v1127, %v1140
    %v1149 = vmul.f32 %v1128, %v1145
    %s1150 = scalar_lea.vmem %s4, 24
    %v1151 = vld [vmem:[%s1150] sm:$0xff]
    %v1152 = vld [vmem:[%s1150 + $0x8] sm:$0xff]
    %v1153 = vld [vmem:[%s1150 + $0x10] sm:$0xff]
    %1155 = vset.pattern.permute.xlu0 0
    %1156 = vperm.xlu0 %1155, %v1151
    %v1157 = vpop.permute.xlu0 %1156
    %1160 = vset.pattern.permute.xlu0 0
    %1161 = vperm.xlu0 %1160, %v1152
    %v1162 = vpop.permute.xlu0 %1161
    %1165 = vset.pattern.permute.xlu0 0
    %1166 = vperm.xlu0 %1165, %v1153
    %v1167 = vpop.permute.xlu0 %1166
    %v1169 = vadd.f32 %v1147, %v1157
    %v1170 = vadd.f32 %v1148, %v1162
    %v1171 = vadd.f32 %v1149, %v1167
    %v1172 = vmax.f32 %v1169, 0.0
    %v1173 = vmax.f32 %v1170, 0.0
    %v1174 = vmax.f32 %v1171, 0.0
    %v1175 = vld [vmem:[%s5] sm:$0xff]
    %v1176 = vld [vmem:[%s5 + $0x8] sm:$0xff]
    %v1177 = vld [vmem:[%s5 + $0x10] sm:$0xff]
    %v1179 = vsel %vm555, %v1175, 0
    %v1182 = vsel %vm555, %v1176, 0
    %v1185 = vsel %vm555, %v1177, 0
    %1187 = vmatprep.subr.mxu0 0.0
    %1188 = vmatpush1.msra.mxu0 %v550
    %1189 = vmatprep.subr.mxu0 0.0
    %1190 = vmatpush1.msra.mxu0 %v551
    %1191 = vmatprep.subr.mxu0 0.0
    %1192 = vmatpush1.msra.mxu0 0.0
    %1193 = vmatprep.subr.mxu0 0.0
    %1194 = vmatpush1.msra.mxu0 0.0
    %1195 = vmatprep.subr.mxu0 0.0
    %1196 = vmatpush1.msra.mxu0 0.0
    %1197 = vmatprep.subr.mxu0 0.0
    %1198 = vmatpush1.msra.mxu0 0.0
    %1199 = vmatprep.subr.mxu0 0.0
    %1200 = vmatpush1.msra.mxu0 0.0
    %1201 = vmatprep.subr.mxu0 0.0
    %1202 = vmatpush1.msra.mxu0 0.0
    %1203 = vmatprep.subr.mxu0 0.0
    %1204 = vmatpush1.msra.mxu0 0.0
    %1205 = vmatprep.subr.mxu0 0.0
    %1206 = vmatpush1.msra.mxu0 0.0
    %1207 = vmatprep.subr.mxu0 0.0
    %1208 = vmatpush1.msra.mxu0 0.0
    %1209 = vmatprep.subr.mxu0 0.0
    %1210 = vmatpush1.msra.mxu0 0.0
    %1211 = vmatprep.subr.mxu0 0.0
    %1212 = vmatpush1.msra.mxu0 0.0
    %1213 = vmatprep.subr.mxu0 0.0
    %1214 = vmatpush1.msra.mxu0 0.0
    %1215 = vmatprep.subr.mxu0 0.0
    %1216 = vmatpush1.msra.mxu0 0.0
    %1217 = vmatprep.subr.mxu0 0.0
    %1218 = vmatpush1.msra.mxu0 0.0
    %1219 = vmatprep.subr.mxu0 0.0
    %1220 = vmatpush1.msra.mxu0 0.0
    %1221 = vmatprep.subr.mxu0 0.0
    %1222 = vmatpush1.msra.mxu0 0.0
    %1223 = vmatprep.subr.mxu0 0.0
    %1224 = vmatpush1.msra.mxu0 0.0
    %1225 = vmatprep.subr.mxu0 0.0
    %1226 = vmatpush1.msra.mxu0 0.0
    %1227 = vmatprep.subr.mxu0 0.0
    %1228 = vmatpush1.msra.mxu0 0.0
    %1229 = vmatprep.subr.mxu0 0.0
    %1230 = vmatpush1.msra.mxu0 0.0
    %1231 = vmatprep.subr.mxu0 0.0
    %1232 = vmatpush1.msra.mxu0 0.0
    %1233 = vmatprep.subr.mxu0 0.0
    %1234 = vmatpush1.msra.mxu0 0.0
    %1235 = vmatprep.subr.mxu0 0.0
    %1236 = vmatpush1.msra.mxu0 0.0
    %1237 = vmatprep.subr.mxu0 0.0
    %1238 = vmatpush1.msra.mxu0 0.0
    %1239 = vmatprep.subr.mxu0 0.0
    %1240 = vmatpush1.msra.mxu0 0.0
    %1241 = vmatprep.subr.mxu0 0.0
    %1242 = vmatpush1.msra.mxu0 0.0
    %1243 = vmatprep.subr.mxu0 0.0
    %1244 = vmatpush1.msra.mxu0 0.0
    %1245 = vmatprep.subr.mxu0 0.0
    %1246 = vmatpush1.msra.mxu0 0.0
    %1247 = vmatprep.subr.mxu0 0.0
    %1248 = vmatpush1.msra.mxu0 0.0
    %1249 = vmatprep.subr.mxu0 0.0
    %1250 = vmatpush1.msra.mxu0 0.0
    %1251 = vmatprep.mubr.f32.mxu0 0.0
    %1252 = vmatmul.mubr.f32.gmra.mrb[0].mxu0 %v1179
    %v1253 = vpop.f32.mrb[0].mxu0
    %v1254 = vadd.f32 0.0, %v1253
    %v1255 = vpop.f32.mrb[0].mxu0
    %1256 = vmatprep.mubr.f32.mxu0 0.0
    %1257 = vmatmul.mubr.f32.gmra.mrb[0].mxu0 %v1182
    %v1258 = vpop.f32.mrb[0].mxu0
    %v1259 = vadd.f32 0.0, %v1258
    %v1260 = vpop.f32.mrb[0].mxu0
    %1261 = vmatprep.mubr.f32.mxu0 0.0
    %1262 = vmatmul.mubr.f32.gmra.mrb[0].mxu0 %v1185
    %v1263 = vpop.f32.mrb[0].mxu0
    %v1264 = vadd.f32 0.0, %v1263
    %v1265 = vpop.f32.mrb[0].mxu0
    %1266 = vdwg.mxu0
    %v1268 = vsel %vm274, %v1254, 0
    %v1271 = vsel %vm274, %v1259, 0
    %v1274 = vsel %vm274, %v1264, 0
    %1276 = vmatprep.subr.mxu0 0.0
    %1277 = vmatpush1.msra.mxu0 %v1034
    %1278 = vmatprep.subr.mxu0 0.0
    %1279 = vmatpush1.msra.mxu0 %v1035
    %1280 = vmatprep.subr.mxu0 0.0
    %1281 = vmatpush1.msra.mxu0 %v1036
    %1282 = vmatprep.subr.mxu0 0.0
    %1283 = vmatpush1.msra.mxu0 0.0
    %1284 = vmatprep.subr.mxu0 0.0
    %1285 = vmatpush1.msra.mxu0 0.0
    %1286 = vmatprep.subr.mxu0 0.0
    %1287 = vmatpush1.msra.mxu0 0.0
    %1288 = vmatprep.subr.mxu0 0.0
    %1289 = vmatpush1.msra.mxu0 0.0
    %1290 = vmatprep.subr.mxu0 0.0
    %1291 = vmatpush1.msra.mxu0 0.0
    %1292 = vmatprep.subr.mxu0 0.0
    %1293 = vmatpush1.msra.mxu0 0.0
    %1294 = vmatprep.subr.mxu0 0.0
    %1295 = vmatpush1.msra.mxu0 0.0
    %1296 = vmatprep.subr.mxu0 0.0
    %1297 = vmatpush1.msra.mxu0 0.0
    %1298 = vmatprep.subr.mxu0 0.0
    %1299 = vmatpush1.msra.mxu0 0.0
    %1300 = vmatprep.subr.mxu0 0.0
    %1301 = vmatpush1.msra.mxu0 0.0
    %1302 = vmatprep.subr.mxu0 0.0
    %1303 = vmatpush1.msra.mxu0 0.0
    %1304 = vmatprep.subr.mxu0 0.0
    %1305 = vmatpush1.msra.mxu0 0.0
    %1306 = vmatprep.subr.mxu0 0.0
    %1307 = vmatpush1.msra.mxu0 0.0
    %1308 = vmatprep.subr.mxu0 0.0
    %1309 = vmatpush1.msra.mxu0 0.0
    %1310 = vmatprep.subr.mxu0 0.0
    %1311 = vmatpush1.msra.mxu0 0.0
    %1312 = vmatprep.subr.mxu0 0.0
    %1313 = vmatpush1.msra.mxu0 0.0
    %1314 = vmatprep.subr.mxu0 0.0
    %1315 = vmatpush1.msra.mxu0 0.0
    %1316 = vmatprep.subr.mxu0 0.0
    %1317 = vmatpush1.msra.mxu0 0.0
    %1318 = vmatprep.subr.mxu0 0.0
    %1319 = vmatpush1.msra.mxu0 0.0
    %1320 = vmatprep.subr.mxu0 0.0
    %1321 = vmatpush1.msra.mxu0 0.0
    %1322 = vmatprep.subr.mxu0 0.0
    %1323 = vmatpush1.msra.mxu0 0.0
    %1324 = vmatprep.subr.mxu0 0.0
    %1325 = vmatpush1.msra.mxu0 0.0
    %1326 = vmatprep.subr.mxu0 0.0
    %1327 = vmatpush1.msra.mxu0 0.0
    %1328 = vmatprep.subr.mxu0 0.0
    %1329 = vmatpush1.msra.mxu0 0.0
    %1330 = vmatprep.subr.mxu0 0.0
    %1331 = vmatpush1.msra.mxu0 0.0
    %1332 = vmatprep.subr.mxu0 0.0
    %1333 = vmatpush1.msra.mxu0 0.0
    %1334 = vmatprep.subr.mxu0 0.0
    %1335 = vmatpush1.msra.mxu0 0.0
    %1336 = vmatprep.subr.mxu0 0.0
    %1337 = vmatpush1.msra.mxu0 0.0
    %1338 = vmatprep.subr.mxu0 0.0
    %1339 = vmatpush1.msra.mxu0 0.0
    %1340 = vmatprep.mubr.f32.mxu0 0.0
    %1341 = vmatmul.mubr.f32.gmra.mrb[0].mxu0 %v1268
    %v1342 = vpop.f32.mrb[0].mxu0
    %v1343 = vadd.f32 0.0, %v1342
    %v1344 = vpop.f32.mrb[0].mxu0
    %1345 = vmatprep.mubr.f32.mxu0 0.0
    %1346 = vmatmul.mubr.f32.gmra.mrb[0].mxu0 %v1271
    %v1347 = vpop.f32.mrb[0].mxu0
    %v1348 = vadd.f32 0.0, %v1347
    %v1349 = vpop.f32.mrb[0].mxu0
    %1350 = vmatprep.mubr.f32.mxu0 0.0
    %1351 = vmatmul.mubr.f32.gmra.mrb[0].mxu0 %v1274
    %v1352 = vpop.f32.mrb[0].mxu0
    %v1353 = vadd.f32 0.0, %v1352
    %v1354 = vpop.f32.mrb[0].mxu0
    %1355 = vdwg.mxu0
    %v1356 = vld [vmem:[%s6] sm:$0xff]
    %v1357 = vld [vmem:[%s6 + $0x8] sm:$0xff]
    %v1358 = vld [vmem:[%s6 + $0x10] sm:$0xff]
    %1360 = vset.pattern.permute.xlu0 0
    %1361 = vperm.xlu0 %1360, %v1356
    %v1362 = vpop.permute.xlu0 %1361
    %1365 = vset.pattern.permute.xlu0 0
    %1366 = vperm.xlu0 %1365, %v1357
    %v1367 = vpop.permute.xlu0 %1366
    %1370 = vset.pattern.permute.xlu0 0
    %1371 = vperm.xlu0 %1370, %v1358
    %v1372 = vpop.permute.xlu0 %1371
    %v1374 = vmul.f32 %v1343, %v1362
    %v1375 = vmul.f32 %v1348, %v1367
    %v1376 = vmul.f32 %v1353, %v1372
    %s1377 = scalar_lea.vmem %s6, 24
    %v1378 = vld [vmem:[%s1377] sm:$0xff]
    %v1379 = vld [vmem:[%s1377 + $0x8] sm:$0xff]
    %v1380 = vld [vmem:[%s1377 + $0x10] sm:$0xff]
    %1382 = vset.pattern.permute.xlu0 0
    %1383 = vperm.xlu0 %1382, %v1378
    %v1384 = vpop.permute.xlu0 %1383
    %1387 = vset.pattern.permute.xlu0 0
    %1388 = vperm.xlu0 %1387, %v1379
    %v1389 = vpop.permute.xlu0 %1388
    %1392 = vset.pattern.permute.xlu0 0
    %1393 = vperm.xlu0 %1392, %v1380
    %v1394 = vpop.permute.xlu0 %1393
    %v1396 = vadd.f32 %v1374, %v1384
    %v1397 = vadd.f32 %v1375, %v1389
    %v1398 = vadd.f32 %v1376, %v1394
    %v1399 = vmax.f32 %v1396, 0.0
    %v1400 = vmax.f32 %v1397, 0.0
    %v1401 = vmax.f32 %v1398, 0.0
    %v1402 = vld [vmem:[%s7] sm:$0xff]
    %v1403 = vld [vmem:[%s7 + $0x8] sm:$0xff]
    %v1404 = vld [vmem:[%s7 + $0x10] sm:$0xff]
    %v1406 = vsel %vm274, %v1402, 0
    %v1409 = vsel %vm274, %v1403, 0
    %v1412 = vsel %vm274, %v1404, 0
    %1414 = vmatprep.subr.mxu0 0.0
    %1415 = vmatpush1.msra.mxu0 %v1172
    %1416 = vmatprep.subr.mxu0 0.0
    %1417 = vmatpush1.msra.mxu0 %v1173
    %1418 = vmatprep.subr.mxu0 0.0
    %1419 = vmatpush1.msra.mxu0 %v1174
    %1420 = vmatprep.subr.mxu0 0.0
    %1421 = vmatpush1.msra.mxu0 0.0
    %1422 = vmatprep.subr.mxu0 0.0
    %1423 = vmatpush1.msra.mxu0 0.0
    %1424 = vmatprep.subr.mxu0 0.0
    %1425 = vmatpush1.msra.mxu0 0.0
    %1426 = vmatprep.subr.mxu0 0.0
    %1427 = vmatpush1.msra.mxu0 0.0
    %1428 = vmatprep.subr.mxu0 0.0
    %1429 = vmatpush1.msra.mxu0 0.0
    %1430 = vmatprep.subr.mxu0 0.0
    %1431 = vmatpush1.msra.mxu0 0.0
    %1432 = vmatprep.subr.mxu0 0.0
    %1433 = vmatpush1.msra.mxu0 0.0
    %1434 = vmatprep.subr.mxu0 0.0
    %1435 = vmatpush1.msra.mxu0 0.0
    %1436 = vmatprep.subr.mxu0 0.0
    %1437 = vmatpush1.msra.mxu0 0.0
    %1438 = vmatprep.subr.mxu0 0.0
    %1439 = vmatpush1.msra.mxu0 0.0
    %1440 = vmatprep.subr.mxu0 0.0
    %1441 = vmatpush1.msra.mxu0 0.0
    %1442 = vmatprep.subr.mxu0 0.0
    %1443 = vmatpush1.msra.mxu0 0.0
    %1444 = vmatprep.subr.mxu0 0.0
    %1445 = vmatpush1.msra.mxu0 0.0
    %1446 = vmatprep.subr.mxu0 0.0
    %1447 = vmatpush1.msra.mxu0 0.0
    %1448 = vmatprep.subr.mxu0 0.0
    %1449 = vmatpush1.msra.mxu0 0.0
    %1450 = vmatprep.subr.mxu0 0.0
    %1451 = vmatpush1.msra.mxu0 0.0
    %1452 = vmatprep.subr.mxu0 0.0
    %1453 = vmatpush1.msra.mxu0 0.0
    %1454 = vmatprep.subr.mxu0 0.0
    %1455 = vmatpush1.msra.mxu0 0.0
    %1456 = vmatprep.subr.mxu0 0.0
    %1457 = vmatpush1.msra.mxu0 0.0
    %1458 = vmatprep.subr.mxu0 0.0
    %1459 = vmatpush1.msra.mxu0 0.0
    %1460 = vmatprep.subr.mxu0 0.0
    %1461 = vmatpush1.msra.mxu0 0.0
    %1462 = vmatprep.subr.mxu0 0.0
    %1463 = vmatpush1.msra.mxu0 0.0
    %1464 = vmatprep.subr.mxu0 0.0
    %1465 = vmatpush1.msra.mxu0 0.0
    %1466 = vmatprep.subr.mxu0 0.0
    %1467 = vmatpush1.msra.mxu0 0.0
    %1468 = vmatprep.subr.mxu0 0.0
    %1469 = vmatpush1.msra.mxu0 0.0
    %1470 = vmatprep.subr.mxu0 0.0
    %1471 = vmatpush1.msra.mxu0 0.0
    %1472 = vmatprep.subr.mxu0 0.0
    %1473 = vmatpush1.msra.mxu0 0.0
    %1474 = vmatprep.subr.mxu0 0.0
    %1475 = vmatpush1.msra.mxu0 0.0
    %1476 = vmatprep.subr.mxu0 0.0
    %1477 = vmatpush1.msra.mxu0 0.0
    %1478 = vmatprep.mubr.f32.mxu0 0.0
    %1479 = vmatmul.mubr.f32.gmra.mrb[0].mxu0 %v1406
    %v1480 = vpop.f32.mrb[0].mxu0
    %v1481 = vadd.f32 0.0, %v1480
    %v1482 = vpop.f32.mrb[0].mxu0
    %1483 = vmatprep.mubr.f32.mxu0 0.0
    %1484 = vmatmul.mubr.f32.gmra.mrb[0].mxu0 %v1409
    %v1485 = vpop.f32.mrb[0].mxu0
    %v1486 = vadd.f32 0.0, %v1485
    %v1487 = vpop.f32.mrb[0].mxu0
    %1488 = vmatprep.mubr.f32.mxu0 0.0
    %1489 = vmatmul.mubr.f32.gmra.mrb[0].mxu0 %v1412
    %v1490 = vpop.f32.mrb[0].mxu0
    %v1491 = vadd.f32 0.0, %v1490
    %v1492 = vpop.f32.mrb[0].mxu0
    %1493 = vdwg.mxu0
    %s1494 = scalar_lea.vmem %s7, 24
    %v1495 = vld [vmem:[%s1494] sm:$0xff]
    %v1496 = vld [vmem:[%s1494 + $0x8] sm:$0xff]
    %v1497 = vld [vmem:[%s1494 + $0x10] sm:$0xff]
    %v1499 = vsel %vm274, %v1495, 0
    %v1502 = vsel %vm274, %v1496, 0
    %v1505 = vsel %vm274, %v1497, 0
    %1507 = vmatprep.subr.mxu0 0.0
    %1508 = vmatpush1.msra.mxu0 %v1172
    %1509 = vmatprep.subr.mxu0 0.0
    %1510 = vmatpush1.msra.mxu0 %v1173
    %1511 = vmatprep.subr.mxu0 0.0
    %1512 = vmatpush1.msra.mxu0 %v1174
    %1513 = vmatprep.subr.mxu0 0.0
    %1514 = vmatpush1.msra.mxu0 0.0
    %1515 = vmatprep.subr.mxu0 0.0
    %1516 = vmatpush1.msra.mxu0 0.0
    %1517 = vmatprep.subr.mxu0 0.0
    %1518 = vmatpush1.msra.mxu0 0.0
    %1519 = vmatprep.subr.mxu0 0.0
    %1520 = vmatpush1.msra.mxu0 0.0
    %1521 = vmatprep.subr.mxu0 0.0
    %1522 = vmatpush1.msra.mxu0 0.0
    %1523 = vmatprep.subr.mxu0 0.0
    %1524 = vmatpush1.msra.mxu0 0.0
    %1525 = vmatprep.subr.mxu0 0.0
    %1526 = vmatpush1.msra.mxu0 0.0
    %1527 = vmatprep.subr.mxu0 0.0
    %1528 = vmatpush1.msra.mxu0 0.0
    %1529 = vmatprep.subr.mxu0 0.0
    %1530 = vmatpush1.msra.mxu0 0.0
    %1531 = vmatprep.subr.mxu0 0.0
    %1532 = vmatpush1.msra.mxu0 0.0
    %1533 = vmatprep.subr.mxu0 0.0
    %1534 = vmatpush1.msra.mxu0 0.0
    %1535 = vmatprep.subr.mxu0 0.0
    %1536 = vmatpush1.msra.mxu0 0.0
    %1537 = vmatprep.subr.mxu0 0.0
    %1538 = vmatpush1.msra.mxu0 0.0
    %1539 = vmatprep.subr.mxu0 0.0
    %1540 = vmatpush1.msra.mxu0 0.0
    %1541 = vmatprep.subr.mxu0 0.0
    %1542 = vmatpush1.msra.mxu0 0.0
    %1543 = vmatprep.subr.mxu0 0.0
    %1544 = vmatpush1.msra.mxu0 0.0
    %1545 = vmatprep.subr.mxu0 0.0
    %1546 = vmatpush1.msra.mxu0 0.0
    %1547 = vmatprep.subr.mxu0 0.0
    %1548 = vmatpush1.msra.mxu0 0.0
    %1549 = vmatprep.subr.mxu0 0.0
    %1550 = vmatpush1.msra.mxu0 0.0
    %1551 = vmatprep.subr.mxu0 0.0
    %1552 = vmatpush1.msra.mxu0 0.0
    %1553 = vmatprep.subr.mxu0 0.0
    %1554 = vmatpush1.msra.mxu0 0.0
    %1555 = vmatprep.subr.mxu0 0.0
    %1556 = vmatpush1.msra.mxu0 0.0
    %1557 = vmatprep.subr.mxu0 0.0
    %1558 = vmatpush1.msra.mxu0 0.0
    %1559 = vmatprep.subr.mxu0 0.0
    %1560 = vmatpush1.msra.mxu0 0.0
    %1561 = vmatprep.subr.mxu0 0.0
    %1562 = vmatpush1.msra.mxu0 0.0
    %1563 = vmatprep.subr.mxu0 0.0
    %1564 = vmatpush1.msra.mxu0 0.0
    %1565 = vmatprep.subr.mxu0 0.0
    %1566 = vmatpush1.msra.mxu0 0.0
    %1567 = vmatprep.subr.mxu0 0.0
    %1568 = vmatpush1.msra.mxu0 0.0
    %1569 = vmatprep.subr.mxu0 0.0
    %1570 = vmatpush1.msra.mxu0 0.0
    %1571 = vmatprep.mubr.f32.mxu0 0.0
    %1572 = vmatmul.mubr.f32.gmra.mrb[0].mxu0 %v1499
    %v1573 = vpop.f32.mrb[0].mxu0
    %v1574 = vadd.f32 0.0, %v1573
    %v1575 = vpop.f32.mrb[0].mxu0
    %1576 = vmatprep.mubr.f32.mxu0 0.0
    %1577 = vmatmul.mubr.f32.gmra.mrb[0].mxu0 %v1502
    %v1578 = vpop.f32.mrb[0].mxu0
    %v1579 = vadd.f32 0.0, %v1578
    %v1580 = vpop.f32.mrb[0].mxu0
    %1581 = vmatprep.mubr.f32.mxu0 0.0
    %1582 = vmatmul.mubr.f32.gmra.mrb[0].mxu0 %v1505
    %v1583 = vpop.f32.mrb[0].mxu0
    %v1584 = vadd.f32 0.0, %v1583
    %v1585 = vpop.f32.mrb[0].mxu0
    %1586 = vdwg.mxu0
    %vm1587 = vcmask 97280
    %v1589 = vsel %vm1587, %v1574, 0
    %v1592 = vsel %vm1587, %v1579, 0
    %v1595 = vsel %vm1587, %v1584, 0
    %vm1597 = vcmask 1043456
    %v1599 = vsel %vm1597, %v272, 0
    %1601 = vmatprep.subr.mxu0 0.0
    %1602 = vmatpush1.msra.mxu0 %v271
    %1603 = vmatprep.subr.mxu0 0.0
    %1604 = vmatpush1.msra.mxu0 %v1599
    %1605 = vmatprep.subr.mxu0 0.0
    %1606 = vmatpush1.msra.mxu0 0.0
    %1607 = vmatprep.subr.mxu0 0.0
    %1608 = vmatpush1.msra.mxu0 0.0
    %1609 = vmatprep.subr.mxu0 0.0
    %1610 = vmatpush1.msra.mxu0 0.0
    %1611 = vmatprep.subr.mxu0 0.0
    %1612 = vmatpush1.msra.mxu0 0.0
    %1613 = vmatprep.subr.mxu0 0.0
    %1614 = vmatpush1.msra.mxu0 0.0
    %1615 = vmatprep.subr.mxu0 0.0
    %1616 = vmatpush1.msra.mxu0 0.0
    %1617 = vmatprep.subr.mxu0 0.0
    %1618 = vmatpush1.msra.mxu0 0.0
    %1619 = vmatprep.subr.mxu0 0.0
    %1620 = vmatpush1.msra.mxu0 0.0
    %1621 = vmatprep.subr.mxu0 0.0
    %1622 = vmatpush1.msra.mxu0 0.0
    %1623 = vmatprep.subr.mxu0 0.0
    %1624 = vmatpush1.msra.mxu0 0.0
    %1625 = vmatprep.subr.mxu0 0.0
    %1626 = vmatpush1.msra.mxu0 0.0
    %1627 = vmatprep.subr.mxu0 0.0
    %1628 = vmatpush1.msra.mxu0 0.0
    %1629 = vmatprep.subr.mxu0 0.0
    %1630 = vmatpush1.msra.mxu0 0.0
    %1631 = vmatprep.subr.mxu0 0.0
    %1632 = vmatpush1.msra.mxu0 0.0
    %1633 = vmatprep.subr.mxu0 0.0
    %1634 = vmatpush1.msra.mxu0 0.0
    %1635 = vmatprep.subr.mxu0 0.0
    %1636 = vmatpush1.msra.mxu0 0.0
    %1637 = vmatprep.subr.mxu0 0.0
    %1638 = vmatpush1.msra.mxu0 0.0
    %1639 = vmatprep.subr.mxu0 0.0
    %1640 = vmatpush1.msra.mxu0 0.0
    %1641 = vmatprep.subr.mxu0 0.0
    %1642 = vmatpush1.msra.mxu0 0.0
    %1643 = vmatprep.subr.mxu0 0.0
    %1644 = vmatpush1.msra.mxu0 0.0
    %1645 = vmatprep.subr.mxu0 0.0
    %1646 = vmatpush1.msra.mxu0 0.0
    %1647 = vmatprep.subr.mxu0 0.0
    %1648 = vmatpush1.msra.mxu0 0.0
    %1649 = vmatprep.subr.mxu0 0.0
    %1650 = vmatpush1.msra.mxu0 0.0
    %1651 = vmatprep.subr.mxu0 0.0
    %1652 = vmatpush1.msra.mxu0 0.0
    %1653 = vmatprep.subr.mxu0 0.0
    %1654 = vmatpush1.msra.mxu0 0.0
    %1655 = vmatprep.subr.mxu0 0.0
    %1656 = vmatpush1.msra.mxu0 0.0
    %1657 = vmatprep.subr.mxu0 0.0
    %1658 = vmatpush1.msra.mxu0 0.0
    %1659 = vmatprep.subr.mxu0 0.0
    %1660 = vmatpush1.msra.mxu0 0.0
    %1661 = vmatprep.subr.mxu0 0.0
    %1662 = vmatpush1.msra.mxu0 0.0
    %1663 = vmatprep.subr.mxu0 0.0
    %1664 = vmatpush1.msra.mxu0 0.0
    %1665 = vmatprep.mubr.f32.mxu0 0.0
    %1666 = vmatmul.mubr.f32.gmra.mrb[0].mxu0 %v1589
    %v1667 = vpop.f32.mrb[0].mxu0
    %v1668 = vadd.f32 0.0, %v1667
    %v1669 = vpop.f32.mrb[0].mxu0
    %1670 = vmatprep.mubr.f32.mxu0 0.0
    %1671 = vmatmul.mubr.f32.gmra.mrb[0].mxu0 %v1592
    %v1672 = vpop.f32.mrb[0].mxu0
    %v1673 = vadd.f32 0.0, %v1672
    %v1674 = vpop.f32.mrb[0].mxu0
    %1675 = vmatprep.mubr.f32.mxu0 0.0
    %1676 = vmatmul.mubr.f32.gmra.mrb[0].mxu0 %v1595
    %v1677 = vpop.f32.mrb[0].mxu0
    %v1678 = vadd.f32 0.0, %v1677
    %v1679 = vpop.f32.mrb[0].mxu0
    %1680 = vdwg.mxu0
    %v1682 = vsel %vm1587, %v1481, 0
    %v1685 = vsel %vm1587, %v1486, 0
    %v1688 = vsel %vm1587, %v1491, 0
    %v1691 = vsel %vm1597, %v176, 0
    %1693 = vmatprep.subr.mxu0 0.0
    %1694 = vmatpush1.msra.mxu0 %v175
    %1695 = vmatprep.subr.mxu0 0.0
    %1696 = vmatpush1.msra.mxu0 %v1691
    %1697 = vmatprep.subr.mxu0 0.0
    %1698 = vmatpush1.msra.mxu0 0.0
    %1699 = vmatprep.subr.mxu0 0.0
    %1700 = vmatpush1.msra.mxu0 0.0
    %1701 = vmatprep.subr.mxu0 0.0
    %1702 = vmatpush1.msra.mxu0 0.0
    %1703 = vmatprep.subr.mxu0 0.0
    %1704 = vmatpush1.msra.mxu0 0.0
    %1705 = vmatprep.subr.mxu0 0.0
    %1706 = vmatpush1.msra.mxu0 0.0
    %1707 = vmatprep.subr.mxu0 0.0
    %1708 = vmatpush1.msra.mxu0 0.0
    %1709 = vmatprep.subr.mxu0 0.0
    %1710 = vmatpush1.msra.mxu0 0.0
    %1711 = vmatprep.subr.mxu0 0.0
    %1712 = vmatpush1.msra.mxu0 0.0
    %1713 = vmatprep.subr.mxu0 0.0
    %1714 = vmatpush1.msra.mxu0 0.0
    %1715 = vmatprep.subr.mxu0 0.0
    %1716 = vmatpush1.msra.mxu0 0.0
    %1717 = vmatprep.subr.mxu0 0.0
    %1718 = vmatpush1.msra.mxu0 0.0
    %1719 = vmatprep.subr.mxu0 0.0
    %1720 = vmatpush1.msra.mxu0 0.0
    %1721 = vmatprep.subr.mxu0 0.0
    %1722 = vmatpush1.msra.mxu0 0.0
    %1723 = vmatprep.subr.mxu0 0.0
    %1724 = vmatpush1.msra.mxu0 0.0
    %1725 = vmatprep.subr.mxu0 0.0
    %1726 = vmatpush1.msra.mxu0 0.0
    %1727 = vmatprep.subr.mxu0 0.0
    %1728 = vmatpush1.msra.mxu0 0.0
    %1729 = vmatprep.subr.mxu0 0.0
    %1730 = vmatpush1.msra.mxu0 0.0
    %1731 = vmatprep.subr.mxu0 0.0
    %1732 = vmatpush1.msra.mxu0 0.0
    %1733 = vmatprep.subr.mxu0 0.0
    %1734 = vmatpush1.msra.mxu0 0.0
    %1735 = vmatprep.subr.mxu0 0.0
    %1736 = vmatpush1.msra.mxu0 0.0
    %1737 = vmatprep.subr.mxu0 0.0
    %1738 = vmatpush1.msra.mxu0 0.0
    %1739 = vmatprep.subr.mxu0 0.0
    %1740 = vmatpush1.msra.mxu0 0.0
    %1741 = vmatprep.subr.mxu0 0.0
    %1742 = vmatpush1.msra.mxu0 0.0
    %1743 = vmatprep.subr.mxu0 0.0
    %1744 = vmatpush1.msra.mxu0 0.0
    %1745 = vmatprep.subr.mxu0 0.0
    %1746 = vmatpush1.msra.mxu0 0.0
    %1747 = vmatprep.subr.mxu0 0.0
    %1748 = vmatpush1.msra.mxu0 0.0
    %1749 = vmatprep.subr.mxu0 0.0
    %1750 = vmatpush1.msra.mxu0 0.0
    %1751 = vmatprep.subr.mxu0 0.0
    %1752 = vmatpush1.msra.mxu0 0.0
    %1753 = vmatprep.subr.mxu0 0.0
    %1754 = vmatpush1.msra.mxu0 0.0
    %1755 = vmatprep.subr.mxu0 0.0
    %1756 = vmatpush1.msra.mxu0 0.0
    %1757 = vmatprep.mubr.f32.mxu0 0.0
    %1758 = vmatmul.mubr.f32.gmra.mrb[0].mxu0 %v1682
    %v1759 = vpop.f32.mrb[0].mxu0
    %v1760 = vadd.f32 %v1668, %v1759
    %v1761 = vpop.f32.mrb[0].mxu0
    %1762 = vmatprep.mubr.f32.mxu0 0.0
    %1763 = vmatmul.mubr.f32.gmra.mrb[0].mxu0 %v1685
    %v1764 = vpop.f32.mrb[0].mxu0
    %v1765 = vadd.f32 %v1673, %v1764
    %v1766 = vpop.f32.mrb[0].mxu0
    %1767 = vmatprep.mubr.f32.mxu0 0.0
    %1768 = vmatmul.mubr.f32.gmra.mrb[0].mxu0 %v1688
    %v1769 = vpop.f32.mrb[0].mxu0
    %v1770 = vadd.f32 %v1678, %v1769
    %v1771 = vpop.f32.mrb[0].mxu0
    %1772 = vdwg.mxu0
    %s1773 = scalar_lea.vmem %s7, 48
    %v1774 = vld [vmem:[%s1773] sm:$0xff]
    %v1775 = vld [vmem:[%s1773 + $0x8] sm:$0xff]
    %v1776 = vld [vmem:[%s1773 + $0x10] sm:$0xff]
    %v1778 = vsel %vm274, %v1774, 0
    %v1781 = vsel %vm274, %v1775, 0
    %v1784 = vsel %vm274, %v1776, 0
    %1786 = vmatprep.subr.mxu0 0.0
    %1787 = vmatpush1.msra.mxu0 %v1172
    %1788 = vmatprep.subr.mxu0 0.0
    %1789 = vmatpush1.msra.mxu0 %v1173
    %1790 = vmatprep.subr.mxu0 0.0
    %1791 = vmatpush1.msra.mxu0 %v1174
    %1792 = vmatprep.subr.mxu0 0.0
    %1793 = vmatpush1.msra.mxu0 0.0
    %1794 = vmatprep.subr.mxu0 0.0
    %1795 = vmatpush1.msra.mxu0 0.0
    %1796 = vmatprep.subr.mxu0 0.0
    %1797 = vmatpush1.msra.mxu0 0.0
    %1798 = vmatprep.subr.mxu0 0.0
    %1799 = vmatpush1.msra.mxu0 0.0
    %1800 = vmatprep.subr.mxu0 0.0
    %1801 = vmatpush1.msra.mxu0 0.0
    %1802 = vmatprep.subr.mxu0 0.0
    %1803 = vmatpush1.msra.mxu0 0.0
    %1804 = vmatprep.subr.mxu0 0.0
    %1805 = vmatpush1.msra.mxu0 0.0
    %1806 = vmatprep.subr.mxu0 0.0
    %1807 = vmatpush1.msra.mxu0 0.0
    %1808 = vmatprep.subr.mxu0 0.0
    %1809 = vmatpush1.msra.mxu0 0.0
    %1810 = vmatprep.subr.mxu0 0.0
    %1811 = vmatpush1.msra.mxu0 0.0
    %1812 = vmatprep.subr.mxu0 0.0
    %1813 = vmatpush1.msra.mxu0 0.0
    %1814 = vmatprep.subr.mxu0 0.0
    %1815 = vmatpush1.msra.mxu0 0.0
    %1816 = vmatprep.subr.mxu0 0.0
    %1817 = vmatpush1.msra.mxu0 0.0
    %1818 = vmatprep.subr.mxu0 0.0
    %1819 = vmatpush1.msra.mxu0 0.0
    %1820 = vmatprep.subr.mxu0 0.0
    %1821 = vmatpush1.msra.mxu0 0.0
    %1822 = vmatprep.subr.mxu0 0.0
    %1823 = vmatpush1.msra.mxu0 0.0
    %1824 = vmatprep.subr.mxu0 0.0
    %1825 = vmatpush1.msra.mxu0 0.0
    %1826 = vmatprep.subr.mxu0 0.0
    %1827 = vmatpush1.msra.mxu0 0.0
    %1828 = vmatprep.subr.mxu0 0.0
    %1829 = vmatpush1.msra.mxu0 0.0
    %1830 = vmatprep.subr.mxu0 0.0
    %1831 = vmatpush1.msra.mxu0 0.0
    %1832 = vmatprep.subr.mxu0 0.0
    %1833 = vmatpush1.msra.mxu0 0.0
    %1834 = vmatprep.subr.mxu0 0.0
    %1835 = vmatpush1.msra.mxu0 0.0
    %1836 = vmatprep.subr.mxu0 0.0
    %1837 = vmatpush1.msra.mxu0 0.0
    %1838 = vmatprep.subr.mxu0 0.0
    %1839 = vmatpush1.msra.mxu0 0.0
    %1840 = vmatprep.subr.mxu0 0.0
    %1841 = vmatpush1.msra.mxu0 0.0
    %1842 = vmatprep.subr.mxu0 0.0
    %1843 = vmatpush1.msra.mxu0 0.0
    %1844 = vmatprep.subr.mxu0 0.0
    %1845 = vmatpush1.msra.mxu0 0.0
    %1846 = vmatprep.subr.mxu0 0.0
    %1847 = vmatpush1.msra.mxu0 0.0
    %1848 = vmatprep.subr.mxu0 0.0
    %1849 = vmatpush1.msra.mxu0 0.0
    %1850 = vmatprep.mubr.f32.mxu0 0.0
    %1851 = vmatmul.mubr.f32.gmra.mrb[0].mxu0 %v1778
    %v1852 = vpop.f32.mrb[0].mxu0
    %v1853 = vadd.f32 0.0, %v1852
    %v1854 = vpop.f32.mrb[0].mxu0
    %1855 = vmatprep.mubr.f32.mxu0 0.0
    %1856 = vmatmul.mubr.f32.gmra.mrb[0].mxu0 %v1781
    %v1857 = vpop.f32.mrb[0].mxu0
    %v1858 = vadd.f32 0.0, %v1857
    %v1859 = vpop.f32.mrb[0].mxu0
    %1860 = vmatprep.mubr.f32.mxu0 0.0
    %1861 = vmatmul.mubr.f32.gmra.mrb[0].mxu0 %v1784
    %v1862 = vpop.f32.mrb[0].mxu0
    %v1863 = vadd.f32 0.0, %v1862
    %v1864 = vpop.f32.mrb[0].mxu0
    %1865 = vdwg.mxu0
    %v1866 = vadd.f32 %v1760, %v1853
    %v1867 = vadd.f32 %v1765, %v1858
    %v1868 = vadd.f32 %v1770, %v1863
    %v1869 = vld [vmem:[%s8] sm:$0xff]
    %v1870 = vld [vmem:[%s8 + $0x8] sm:$0xff]
    %v1871 = vld [vmem:[%s8 + $0x10] sm:$0xff]
    %1873 = vset.pattern.permute.xlu0 0
    %1874 = vperm.xlu0 %1873, %v1869
    %v1875 = vpop.permute.xlu0 %1874
    %1878 = vset.pattern.permute.xlu0 0
    %1879 = vperm.xlu0 %1878, %v1870
    %v1880 = vpop.permute.xlu0 %1879
    %1883 = vset.pattern.permute.xlu0 0
    %1884 = vperm.xlu0 %1883, %v1871
    %v1885 = vpop.permute.xlu0 %1884
    %v1887 = vmul.f32 %v1866, %v1875
    %v1888 = vmul.f32 %v1867, %v1880
    %v1889 = vmul.f32 %v1868, %v1885
    %s1890 = scalar_lea.vmem %s8, 24
    %v1891 = vld [vmem:[%s1890] sm:$0xff]
    %v1892 = vld [vmem:[%s1890 + $0x8] sm:$0xff]
    %v1893 = vld [vmem:[%s1890 + $0x10] sm:$0xff]
    %1895 = vset.pattern.permute.xlu0 0
    %1896 = vperm.xlu0 %1895, %v1891
    %v1897 = vpop.permute.xlu0 %1896
    %1900 = vset.pattern.permute.xlu0 0
    %1901 = vperm.xlu0 %1900, %v1892
    %v1902 = vpop.permute.xlu0 %1901
    %1905 = vset.pattern.permute.xlu0 0
    %1906 = vperm.xlu0 %1905, %v1893
    %v1907 = vpop.permute.xlu0 %1906
    %v1909 = vadd.f32 %v1887, %v1897
    %v1910 = vadd.f32 %v1888, %v1902
    %v1911 = vadd.f32 %v1889, %v1907
    %v1912 = vadd.f32 %v1909, %v1399
    %v1913 = vadd.f32 %v1910, %v1400
    %v1914 = vadd.f32 %v1911, %v1401
    %v1915 = vmax.f32 %v1912, 0.0
    %v1916 = vmax.f32 %v1913, 0.0
    %v1917 = vmax.f32 %v1914, 0.0
    %v1918 = vld [vmem:[%s9] sm:$0xff]
    %v1919 = vld [vmem:[%s9 + $0x8] sm:$0xff]
    %v1920 = vld [vmem:[%s9 + $0x10] sm:$0xff]
    %v1922 = vsel %vm274, %v1918, 0
    %v1925 = vsel %vm274, %v1919, 0
    %v1928 = vsel %vm274, %v1920, 0
    %1930 = vmatprep.subr.mxu0 0.0
    %1931 = vmatpush1.msra.mxu0 %v1915
    %1932 = vmatprep.subr.mxu0 0.0
    %1933 = vmatpush1.msra.mxu0 %v1916
    %1934 = vmatprep.subr.mxu0 0.0
    %1935 = vmatpush1.msra.mxu0 %v1917
    %1936 = vmatprep.subr.mxu0 0.0
    %1937 = vmatpush1.msra.mxu0 0.0
    %1938 = vmatprep.subr.mxu0 0.0
    %1939 = vmatpush1.msra.mxu0 0.0
    %1940 = vmatprep.subr.mxu0 0.0
    %1941 = vmatpush1.msra.mxu0 0.0
    %1942 = vmatprep.subr.mxu0 0.0
    %1943 = vmatpush1.msra.mxu0 0.0
    %1944 = vmatprep.subr.mxu0 0.0
    %1945 = vmatpush1.msra.mxu0 0.0
    %1946 = vmatprep.subr.mxu0 0.0
    %1947 = vmatpush1.msra.mxu0 0.0
    %1948 = vmatprep.subr.mxu0 0.0
    %1949 = vmatpush1.msra.mxu0 0.0
    %1950 = vmatprep.subr.mxu0 0.0
    %1951 = vmatpush1.msra.mxu0 0.0
    %1952 = vmatprep.subr.mxu0 0.0
    %1953 = vmatpush1.msra.mxu0 0.0
    %1954 = vmatprep.subr.mxu0 0.0
    %1955 = vmatpush1.msra.mxu0 0.0
    %1956 = vmatprep.subr.mxu0 0.0
    %1957 = vmatpush1.msra.mxu0 0.0
    %1958 = vmatprep.subr.mxu0 0.0
    %1959 = vmatpush1.msra.mxu0 0.0
    %1960 = vmatprep.subr.mxu0 0.0
    %1961 = vmatpush1.msra.mxu0 0.0
    %1962 = vmatprep.subr.mxu0 0.0
    %1963 = vmatpush1.msra.mxu0 0.0
    %1964 = vmatprep.subr.mxu0 0.0
    %1965 = vmatpush1.msra.mxu0 0.0
    %1966 = vmatprep.subr.mxu0 0.0
    %1967 = vmatpush1.msra.mxu0 0.0
    %1968 = vmatprep.subr.mxu0 0.0
    %1969 = vmatpush1.msra.mxu0 0.0
    %1970 = vmatprep.subr.mxu0 0.0
    %1971 = vmatpush1.msra.mxu0 0.0
    %1972 = vmatprep.subr.mxu0 0.0
    %1973 = vmatpush1.msra.mxu0 0.0
    %1974 = vmatprep.subr.mxu0 0.0
    %1975 = vmatpush1.msra.mxu0 0.0
    %1976 = vmatprep.subr.mxu0 0.0
    %1977 = vmatpush1.msra.mxu0 0.0
    %1978 = vmatprep.subr.mxu0 0.0
    %1979 = vmatpush1.msra.mxu0 0.0
    %1980 = vmatprep.subr.mxu0 0.0
    %1981 = vmatpush1.msra.mxu0 0.0
    %1982 = vmatprep.subr.mxu0 0.0
    %1983 = vmatpush1.msra.mxu0 0.0
    %1984 = vmatprep.subr.mxu0 0.0
    %1985 = vmatpush1.msra.mxu0 0.0
    %1986 = vmatprep.subr.mxu0 0.0
    %1987 = vmatpush1.msra.mxu0 0.0
    %1988 = vmatprep.subr.mxu0 0.0
    %1989 = vmatpush1.msra.mxu0 0.0
    %1990 = vmatprep.subr.mxu0 0.0
    %1991 = vmatpush1.msra.mxu0 0.0
    %1992 = vmatprep.subr.mxu0 0.0
    %1993 = vmatpush1.msra.mxu0 0.0
    %1994 = vmatprep.mubr.f32.mxu0 0.0
    %1995 = vmatmul.mubr.f32.gmra.mrb[0].mxu0 %v1922
    %v1996 = vpop.f32.mrb[0].mxu0
    %v1997 = vadd.f32 0.0, %v1996
    %v1998 = vpop.f32.mrb[0].mxu0
    %1999 = vmatprep.mubr.f32.mxu0 0.0
    %2000 = vmatmul.mubr.f32.gmra.mrb[0].mxu0 %v1925
    %v2001 = vpop.f32.mrb[0].mxu0
    %v2002 = vadd.f32 0.0, %v2001
    %v2003 = vpop.f32.mrb[0].mxu0
    %2004 = vmatprep.mubr.f32.mxu0 0.0
    %2005 = vmatmul.mubr.f32.gmra.mrb[0].mxu0 %v1928
    %v2006 = vpop.f32.mrb[0].mxu0
    %v2007 = vadd.f32 0.0, %v2006
    %v2008 = vpop.f32.mrb[0].mxu0
    %2009 = vdwg.mxu0
    %v2010 = vadd.s32 %v161, 4
    %v2011 = vadd.s32 %v162, 4
    %vm2012 = vcmp.eq.s32.totalorder %v2010, %v165
    %vm2013 = vcmp.eq.s32.totalorder %v2011, %v165
    %v2014 = vsel %vm2012, 1, 0
    %v2015 = vsel %vm2013, 1, 0
    %v2016 = vcvt.s32.f32 %v2014
    %v2017 = vcvt.s32.f32 %v2015
    %s2018 = scalar_lea.vmem %s9, 24
    %v2019 = vld [vmem:[%s2018] sm:$0xff]
    %v2020 = vld [vmem:[%s2018 + $0x8] sm:$0xff]
    %v2021 = vld [vmem:[%s2018 + $0x10] sm:$0xff]
    %v2023 = vsel %vm274, %v2019, 0
    %v2026 = vsel %vm274, %v2020, 0
    %v2029 = vsel %vm274, %v2021, 0
    %2031 = vmatprep.subr.mxu0 0.0
    %2032 = vmatpush1.msra.mxu0 %v1915
    %2033 = vmatprep.subr.mxu0 0.0
    %2034 = vmatpush1.msra.mxu0 %v1916
    %2035 = vmatprep.subr.mxu0 0.0
    %2036 = vmatpush1.msra.mxu0 %v1917
    %2037 = vmatprep.subr.mxu0 0.0
    %2038 = vmatpush1.msra.mxu0 0.0
    %2039 = vmatprep.subr.mxu0 0.0
    %2040 = vmatpush1.msra.mxu0 0.0
    %2041 = vmatprep.subr.mxu0 0.0
    %2042 = vmatpush1.msra.mxu0 0.0
    %2043 = vmatprep.subr.mxu0 0.0
    %2044 = vmatpush1.msra.mxu0 0.0
    %2045 = vmatprep.subr.mxu0 0.0
    %2046 = vmatpush1.msra.mxu0 0.0
    %2047 = vmatprep.subr.mxu0 0.0
    %2048 = vmatpush1.msra.mxu0 0.0
    %2049 = vmatprep.subr.mxu0 0.0
    %2050 = vmatpush1.msra.mxu0 0.0
    %2051 = vmatprep.subr.mxu0 0.0
    %2052 = vmatpush1.msra.mxu0 0.0
    %2053 = vmatprep.subr.mxu0 0.0
    %2054 = vmatpush1.msra.mxu0 0.0
    %2055 = vmatprep.subr.mxu0 0.0
    %2056 = vmatpush1.msra.mxu0 0.0
    %2057 = vmatprep.subr.mxu0 0.0
    %2058 = vmatpush1.msra.mxu0 0.0
    %2059 = vmatprep.subr.mxu0 0.0
    %2060 = vmatpush1.msra.mxu0 0.0
    %2061 = vmatprep.subr.mxu0 0.0
    %2062 = vmatpush1.msra.mxu0 0.0
    %2063 = vmatprep.subr.mxu0 0.0
    %2064 = vmatpush1.msra.mxu0 0.0
    %2065 = vmatprep.subr.mxu0 0.0
    %2066 = vmatpush1.msra.mxu0 0.0
    %2067 = vmatprep.subr.mxu0 0.0
    %2068 = vmatpush1.msra.mxu0 0.0
    %2069 = vmatprep.subr.mxu0 0.0
    %2070 = vmatpush1.msra.mxu0 0.0
    %2071 = vmatprep.subr.mxu0 0.0
    %2072 = vmatpush1.msra.mxu0 0.0
    %2073 = vmatprep.subr.mxu0 0.0
    %2074 = vmatpush1.msra.mxu0 0.0
    %2075 = vmatprep.subr.mxu0 0.0
    %2076 = vmatpush1.msra.mxu0 0.0
    %2077 = vmatprep.subr.mxu0 0.0
    %2078 = vmatpush1.msra.mxu0 0.0
    %2079 = vmatprep.subr.mxu0 0.0
    %2080 = vmatpush1.msra.mxu0 0.0
    %2081 = vmatprep.subr.mxu0 0.0
    %2082 = vmatpush1.msra.mxu0 0.0
    %2083 = vmatprep.subr.mxu0 0.0
    %2084 = vmatpush1.msra.mxu0 0.0
    %2085 = vmatprep.subr.mxu0 0.0
    %2086 = vmatpush1.msra.mxu0 0.0
    %2087 = vmatprep.subr.mxu0 0.0
    %2088 = vmatpush1.msra.mxu0 0.0
    %2089 = vmatprep.subr.mxu0 0.0
    %2090 = vmatpush1.msra.mxu0 0.0
    %2091 = vmatprep.subr.mxu0 0.0
    %2092 = vmatpush1.msra.mxu0 0.0
    %2093 = vmatprep.subr.mxu0 0.0
    %2094 = vmatpush1.msra.mxu0 0.0
    %2095 = vmatprep.mubr.f32.mxu0 0.0
    %2096 = vmatmul.mubr.f32.gmra.mrb[0].mxu0 %v2023
    %v2097 = vpop.f32.mrb[0].mxu0
    %v2098 = vadd.f32 0.0, %v2097
    %v2099 = vpop.f32.mrb[0].mxu0
    %2100 = vmatprep.mubr.f32.mxu0 0.0
    %2101 = vmatmul.mubr.f32.gmra.mrb[0].mxu0 %v2026
    %v2102 = vpop.f32.mrb[0].mxu0
    %v2103 = vadd.f32 0.0, %v2102
    %v2104 = vpop.f32.mrb[0].mxu0
    %2105 = vmatprep.mubr.f32.mxu0 0.0
    %2106 = vmatmul.mubr.f32.gmra.mrb[0].mxu0 %v2029
    %v2107 = vpop.f32.mrb[0].mxu0
    %v2108 = vadd.f32 0.0, %v2107
    %v2109 = vpop.f32.mrb[0].mxu0
    %2110 = vdwg.mxu0
    %v2112 = vsel %vm1587, %v2098, 0
    %v2115 = vsel %vm1587, %v2103, 0
    %v2118 = vsel %vm1587, %v2108, 0
    %2120 = vmatprep.subr.mxu0 0.0
    %2121 = vmatpush1.msra.mxu0 %v175
    %2122 = vmatprep.subr.mxu0 0.0
    %2123 = vmatpush1.msra.mxu0 %v1691
    %2124 = vmatprep.subr.mxu0 0.0
    %2125 = vmatpush1.msra.mxu0 0.0
    %2126 = vmatprep.subr.mxu0 0.0
    %2127 = vmatpush1.msra.mxu0 0.0
    %2128 = vmatprep.subr.mxu0 0.0
    %2129 = vmatpush1.msra.mxu0 0.0
    %2130 = vmatprep.subr.mxu0 0.0
    %2131 = vmatpush1.msra.mxu0 0.0
    %2132 = vmatprep.subr.mxu0 0.0
    %2133 = vmatpush1.msra.mxu0 0.0
    %2134 = vmatprep.subr.mxu0 0.0
    %2135 = vmatpush1.msra.mxu0 0.0
    %2136 = vmatprep.subr.mxu0 0.0
    %2137 = vmatpush1.msra.mxu0 0.0
    %2138 = vmatprep.subr.mxu0 0.0
    %2139 = vmatpush1.msra.mxu0 0.0
    %2140 = vmatprep.subr.mxu0 0.0
    %2141 = vmatpush1.msra.mxu0 0.0
    %2142 = vmatprep.subr.mxu0 0.0
    %2143 = vmatpush1.msra.mxu0 0.0
    %2144 = vmatprep.subr.mxu0 0.0
    %2145 = vmatpush1.msra.mxu0 0.0
    %2146 = vmatprep.subr.mxu0 0.0
    %2147 = vmatpush1.msra.mxu0 0.0
    %2148 = vmatprep.subr.mxu0 0.0
    %2149 = vmatpush1.msra.mxu0 0.0
    %2150 = vmatprep.subr.mxu0 0.0
    %2151 = vmatpush1.msra.mxu0 0.0
    %2152 = vmatprep.subr.mxu0 0.0
    %2153 = vmatpush1.msra.mxu0 0.0
    %2154 = vmatprep.subr.mxu0 0.0
    %2155 = vmatpush1.msra.mxu0 0.0
    %2156 = vmatprep.subr.mxu0 0.0
    %2157 = vmatpush1.msra.mxu0 0.0
    %2158 = vmatprep.subr.mxu0 0.0
    %2159 = vmatpush1.msra.mxu0 0.0
    %2160 = vmatprep.subr.mxu0 0.0
    %2161 = vmatpush1.msra.mxu0 0.0
    %2162 = vmatprep.subr.mxu0 0.0
    %2163 = vmatpush1.msra.mxu0 0.0
    %2164 = vmatprep.subr.mxu0 0.0
    %2165 = vmatpush1.msra.mxu0 0.0
    %2166 = vmatprep.subr.mxu0 0.0
    %2167 = vmatpush1.msra.mxu0 0.0
    %2168 = vmatprep.subr.mxu0 0.0
    %2169 = vmatpush1.msra.mxu0 0.0
    %2170 = vmatprep.subr.mxu0 0.0
    %2171 = vmatpush1.msra.mxu0 0.0
    %2172 = vmatprep.subr.mxu0 0.0
    %2173 = vmatpush1.msra.mxu0 0.0
    %2174 = vmatprep.subr.mxu0 0.0
    %2175 = vmatpush1.msra.mxu0 0.0
    %2176 = vmatprep.subr.mxu0 0.0
    %2177 = vmatpush1.msra.mxu0 0.0
    %2178 = vmatprep.subr.mxu0 0.0
    %2179 = vmatpush1.msra.mxu0 0.0
    %2180 = vmatprep.subr.mxu0 0.0
    %2181 = vmatpush1.msra.mxu0 0.0
    %2182 = vmatprep.subr.mxu0 0.0
    %2183 = vmatpush1.msra.mxu0 0.0
    %2184 = vmatprep.mubr.f32.mxu0 0.0
    %2185 = vmatmul.mubr.f32.gmra.mrb[0].mxu0 %v2112
    %v2186 = vpop.f32.mrb[0].mxu0
    %v2187 = vadd.f32 0.0, %v2186
    %v2188 = vpop.f32.mrb[0].mxu0
    %2189 = vmatprep.mubr.f32.mxu0 0.0
    %2190 = vmatmul.mubr.f32.gmra.mrb[0].mxu0 %v2115
    %v2191 = vpop.f32.mrb[0].mxu0
    %v2192 = vadd.f32 0.0, %v2191
    %v2193 = vpop.f32.mrb[0].mxu0
    %2194 = vmatprep.mubr.f32.mxu0 0.0
    %2195 = vmatmul.mubr.f32.gmra.mrb[0].mxu0 %v2118
    %v2196 = vpop.f32.mrb[0].mxu0
    %v2197 = vadd.f32 0.0, %v2196
    %v2198 = vpop.f32.mrb[0].mxu0
    %2199 = vdwg.mxu0
    %v2201 = vsel %vm1587, %v1997, 0
    %v2204 = vsel %vm1587, %v2002, 0
    %v2207 = vsel %vm1587, %v2007, 0
    %v2210 = vsel %vm1597, %v2017, 0
    %2212 = vmatprep.subr.mxu0 0.0
    %2213 = vmatpush1.msra.mxu0 %v2016
    %2214 = vmatprep.subr.mxu0 0.0
    %2215 = vmatpush1.msra.mxu0 %v2210
    %2216 = vmatprep.subr.mxu0 0.0
    %2217 = vmatpush1.msra.mxu0 0.0
    %2218 = vmatprep.subr.mxu0 0.0
    %2219 = vmatpush1.msra.mxu0 0.0
    %2220 = vmatprep.subr.mxu0 0.0
    %2221 = vmatpush1.msra.mxu0 0.0
    %2222 = vmatprep.subr.mxu0 0.0
    %2223 = vmatpush1.msra.mxu0 0.0
    %2224 = vmatprep.subr.mxu0 0.0
    %2225 = vmatpush1.msra.mxu0 0.0
    %2226 = vmatprep.subr.mxu0 0.0
    %2227 = vmatpush1.msra.mxu0 0.0
    %2228 = vmatprep.subr.mxu0 0.0
    %2229 = vmatpush1.msra.mxu0 0.0
    %2230 = vmatprep.subr.mxu0 0.0
    %2231 = vmatpush1.msra.mxu0 0.0
    %2232 = vmatprep.subr.mxu0 0.0
    %2233 = vmatpush1.msra.mxu0 0.0
    %2234 = vmatprep.subr.mxu0 0.0
    %2235 = vmatpush1.msra.mxu0 0.0
    %2236 = vmatprep.subr.mxu0 0.0
    %2237 = vmatpush1.msra.mxu0 0.0
    %2238 = vmatprep.subr.mxu0 0.0
    %2239 = vmatpush1.msra.mxu0 0.0
    %2240 = vmatprep.subr.mxu0 0.0
    %2241 = vmatpush1.msra.mxu0 0.0
    %2242 = vmatprep.subr.mxu0 0.0
    %2243 = vmatpush1.msra.mxu0 0.0
    %2244 = vmatprep.subr.mxu0 0.0
    %2245 = vmatpush1.msra.mxu0 0.0
    %2246 = vmatprep.subr.mxu0 0.0
    %2247 = vmatpush1.msra.mxu0 0.0
    %2248 = vmatprep.subr.mxu0 0.0
    %2249 = vmatpush1.msra.mxu0 0.0
    %2250 = vmatprep.subr.mxu0 0.0
    %2251 = vmatpush1.msra.mxu0 0.0
    %2252 = vmatprep.subr.mxu0 0.0
    %2253 = vmatpush1.msra.mxu0 0.0
    %2254 = vmatprep.subr.mxu0 0.0
    %2255 = vmatpush1.msra.mxu0 0.0
    %2256 = vmatprep.subr.mxu0 0.0
    %2257 = vmatpush1.msra.mxu0 0.0
    %2258 = vmatprep.subr.mxu0 0.0
    %2259 = vmatpush1.msra.mxu0 0.0
    %2260 = vmatprep.subr.mxu0 0.0
    %2261 = vmatpush1.msra.mxu0 0.0
    %2262 = vmatprep.subr.mxu0 0.0
    %2263 = vmatpush1.msra.mxu0 0.0
    %2264 = vmatprep.subr.mxu0 0.0
    %2265 = vmatpush1.msra.mxu0 0.0
    %2266 = vmatprep.subr.mxu0 0.0
    %2267 = vmatpush1.msra.mxu0 0.0
    %2268 = vmatprep.subr.mxu0 0.0
    %2269 = vmatpush1.msra.mxu0 0.0
    %2270 = vmatprep.subr.mxu0 0.0
    %2271 = vmatpush1.msra.mxu0 0.0
    %2272 = vmatprep.subr.mxu0 0.0
    %2273 = vmatpush1.msra.mxu0 0.0
    %2274 = vmatprep.subr.mxu0 0.0
    %2275 = vmatpush1.msra.mxu0 0.0
    %2276 = vmatprep.mubr.f32.mxu0 0.0
    %2277 = vmatmul.mubr.f32.gmra.mrb[0].mxu0 %v2201
    %v2278 = vpop.f32.mrb[0].mxu0
    %v2279 = vadd.f32 %v2187, %v2278
    %v2280 = vpop.f32.mrb[0].mxu0
    %2281 = vmatprep.mubr.f32.mxu0 0.0
    %2282 = vmatmul.mubr.f32.gmra.mrb[0].mxu0 %v2204
    %v2283 = vpop.f32.mrb[0].mxu0
    %v2284 = vadd.f32 %v2192, %v2283
    %v2285 = vpop.f32.mrb[0].mxu0
    %2286 = vmatprep.mubr.f32.mxu0 0.0
    %2287 = vmatmul.mubr.f32.gmra.mrb[0].mxu0 %v2207
    %v2288 = vpop.f32.mrb[0].mxu0
    %v2289 = vadd.f32 %v2197, %v2288
    %v2290 = vpop.f32.mrb[0].mxu0
    %2291 = vdwg.mxu0
    %s2292 = scalar_lea.vmem %s9, 48
    %v2293 = vld [vmem:[%s2292] sm:$0xff]
    %v2294 = vld [vmem:[%s2292 + $0x8] sm:$0xff]
    %v2295 = vld [vmem:[%s2292 + $0x10] sm:$0xff]
    %v2297 = vsel %vm274, %v2293, 0
    %v2300 = vsel %vm274, %v2294, 0
    %v2303 = vsel %vm274, %v2295, 0
    %2305 = vmatprep.subr.mxu0 0.0
    %2306 = vmatpush1.msra.mxu0 %v1915
    %2307 = vmatprep.subr.mxu0 0.0
    %2308 = vmatpush1.msra.mxu0 %v1916
    %2309 = vmatprep.subr.mxu0 0.0
    %2310 = vmatpush1.msra.mxu0 %v1917
    %2311 = vmatprep.subr.mxu0 0.0
    %2312 = vmatpush1.msra.mxu0 0.0
    %2313 = vmatprep.subr.mxu0 0.0
    %2314 = vmatpush1.msra.mxu0 0.0
    %2315 = vmatprep.subr.mxu0 0.0
    %2316 = vmatpush1.msra.mxu0 0.0
    %2317 = vmatprep.subr.mxu0 0.0
    %2318 = vmatpush1.msra.mxu0 0.0
    %2319 = vmatprep.subr.mxu0 0.0
    %2320 = vmatpush1.msra.mxu0 0.0
    %2321 = vmatprep.subr.mxu0 0.0
    %2322 = vmatpush1.msra.mxu0 0.0
    %2323 = vmatprep.subr.mxu0 0.0
    %2324 = vmatpush1.msra.mxu0 0.0
    %2325 = vmatprep.subr.mxu0 0.0
    %2326 = vmatpush1.msra.mxu0 0.0
    %2327 = vmatprep.subr.mxu0 0.0
    %2328 = vmatpush1.msra.mxu0 0.0
    %2329 = vmatprep.subr.mxu0 0.0
    %2330 = vmatpush1.msra.mxu0 0.0
    %2331 = vmatprep.subr.mxu0 0.0
    %2332 = vmatpush1.msra.mxu0 0.0
    %2333 = vmatprep.subr.mxu0 0.0
    %2334 = vmatpush1.msra.mxu0 0.0
    %2335 = vmatprep.subr.mxu0 0.0
    %2336 = vmatpush1.msra.mxu0 0.0
    %2337 = vmatprep.subr.mxu0 0.0
    %2338 = vmatpush1.msra.mxu0 0.0
    %2339 = vmatprep.subr.mxu0 0.0
    %2340 = vmatpush1.msra.mxu0 0.0
    %2341 = vmatprep.subr.mxu0 0.0
    %2342 = vmatpush1.msra.mxu0 0.0
    %2343 = vmatprep.subr.mxu0 0.0
    %2344 = vmatpush1.msra.mxu0 0.0
    %2345 = vmatprep.subr.mxu0 0.0
    %2346 = vmatpush1.msra.mxu0 0.0
    %2347 = vmatprep.subr.mxu0 0.0
    %2348 = vmatpush1.msra.mxu0 0.0
    %2349 = vmatprep.subr.mxu0 0.0
    %2350 = vmatpush1.msra.mxu0 0.0
    %2351 = vmatprep.subr.mxu0 0.0
    %2352 = vmatpush1.msra.mxu0 0.0
    %2353 = vmatprep.subr.mxu0 0.0
    %2354 = vmatpush1.msra.mxu0 0.0
    %2355 = vmatprep.subr.mxu0 0.0
    %2356 = vmatpush1.msra.mxu0 0.0
    %2357 = vmatprep.subr.mxu0 0.0
    %2358 = vmatpush1.msra.mxu0 0.0
    %2359 = vmatprep.subr.mxu0 0.0
    %2360 = vmatpush1.msra.mxu0 0.0
    %2361 = vmatprep.subr.mxu0 0.0
    %2362 = vmatpush1.msra.mxu0 0.0
    %2363 = vmatprep.subr.mxu0 0.0
    %2364 = vmatpush1.msra.mxu0 0.0
    %2365 = vmatprep.subr.mxu0 0.0
    %2366 = vmatpush1.msra.mxu0 0.0
    %2367 = vmatprep.subr.mxu0 0.0
    %2368 = vmatpush1.msra.mxu0 0.0
    %2369 = vmatprep.mubr.f32.mxu0 0.0
    %2370 = vmatmul.mubr.f32.gmra.mrb[0].mxu0 %v2297
    %v2371 = vpop.f32.mrb[0].mxu0
    %v2372 = vadd.f32 0.0, %v2371
    %v2373 = vpop.f32.mrb[0].mxu0
    %2374 = vmatprep.mubr.f32.mxu0 0.0
    %2375 = vmatmul.mubr.f32.gmra.mrb[0].mxu0 %v2300
    %v2376 = vpop.f32.mrb[0].mxu0
    %v2377 = vadd.f32 0.0, %v2376
    %v2378 = vpop.f32.mrb[0].mxu0
    %2379 = vmatprep.mubr.f32.mxu0 0.0
    %2380 = vmatmul.mubr.f32.gmra.mrb[0].mxu0 %v2303
    %v2381 = vpop.f32.mrb[0].mxu0
    %v2382 = vadd.f32 0.0, %v2381
    %v2383 = vpop.f32.mrb[0].mxu0
    %2384 = vdwg.mxu0
    %v2385 = vadd.f32 %v2279, %v2372
    %v2386 = vadd.f32 %v2284, %v2377
    %v2387 = vadd.f32 %v2289, %v2382
    %v2388 = vld [vmem:[%s10] sm:$0xff]
    %v2389 = vld [vmem:[%s10 + $0x8] sm:$0xff]
    %v2390 = vld [vmem:[%s10 + $0x10] sm:$0xff]
    %2392 = vset.pattern.permute.xlu0 0
    %2393 = vperm.xlu0 %2392, %v2388
    %v2394 = vpop.permute.xlu0 %2393
    %2397 = vset.pattern.permute.xlu0 0
    %2398 = vperm.xlu0 %2397, %v2389
    %v2399 = vpop.permute.xlu0 %2398
    %2402 = vset.pattern.permute.xlu0 0
    %2403 = vperm.xlu0 %2402, %v2390
    %v2404 = vpop.permute.xlu0 %2403
    %v2406 = vmul.f32 %v2385, %v2394
    %v2407 = vmul.f32 %v2386, %v2399
    %v2408 = vmul.f32 %v2387, %v2404
    %s2409 = scalar_lea.vmem %s10, 24
    %v2410 = vld [vmem:[%s2409] sm:$0xff]
    %v2411 = vld [vmem:[%s2409 + $0x8] sm:$0xff]
    %v2412 = vld [vmem:[%s2409 + $0x10] sm:$0xff]
    %2414 = vset.pattern.permute.xlu0 0
    %2415 = vperm.xlu0 %2414, %v2410
    %v2416 = vpop.permute.xlu0 %2415
    %2419 = vset.pattern.permute.xlu0 0
    %2420 = vperm.xlu0 %2419, %v2411
    %v2421 = vpop.permute.xlu0 %2420
    %2424 = vset.pattern.permute.xlu0 0
    %2425 = vperm.xlu0 %2424, %v2412
    %v2426 = vpop.permute.xlu0 %2425
    %v2428 = vadd.f32 %v2406, %v2416
    %v2429 = vadd.f32 %v2407, %v2421
    %v2430 = vadd.f32 %v2408, %v2426
    %v2431 = vmax.f32 %v2428, 0.0
    %v2432 = vmax.f32 %v2429, 0.0
    %v2433 = vmax.f32 %v2430, 0.0
    %v2434 = vld [vmem:[%s11] sm:$0xff]
    %v2435 = vld [vmem:[%s11 + $0x8] sm:$0xff]
    %v2436 = vld [vmem:[%s11 + $0x10] sm:$0xff]
    %v2438 = vsel %vm274, %v2434, 0
    %v2441 = vsel %vm274, %v2435, 0
    %v2444 = vsel %vm274, %v2436, 0
    %2446 = vmatprep.subr.mxu0 0.0
    %2447 = vmatpush1.msra.mxu0 %v1915
    %2448 = vmatprep.subr.mxu0 0.0
    %2449 = vmatpush1.msra.mxu0 %v1916
    %2450 = vmatprep.subr.mxu0 0.0
    %2451 = vmatpush1.msra.mxu0 %v1917
    %2452 = vmatprep.subr.mxu0 0.0
    %2453 = vmatpush1.msra.mxu0 0.0
    %2454 = vmatprep.subr.mxu0 0.0
    %2455 = vmatpush1.msra.mxu0 0.0
    %2456 = vmatprep.subr.mxu0 0.0
    %2457 = vmatpush1.msra.mxu0 0.0
    %2458 = vmatprep.subr.mxu0 0.0
    %2459 = vmatpush1.msra.mxu0 0.0
    %2460 = vmatprep.subr.mxu0 0.0
    %2461 = vmatpush1.msra.mxu0 0.0
    %2462 = vmatprep.subr.mxu0 0.0
    %2463 = vmatpush1.msra.mxu0 0.0
    %2464 = vmatprep.subr.mxu0 0.0
    %2465 = vmatpush1.msra.mxu0 0.0
    %2466 = vmatprep.subr.mxu0 0.0
    %2467 = vmatpush1.msra.mxu0 0.0
    %2468 = vmatprep.subr.mxu0 0.0
    %2469 = vmatpush1.msra.mxu0 0.0
    %2470 = vmatprep.subr.mxu0 0.0
    %2471 = vmatpush1.msra.mxu0 0.0
    %2472 = vmatprep.subr.mxu0 0.0
    %2473 = vmatpush1.msra.mxu0 0.0
    %2474 = vmatprep.subr.mxu0 0.0
    %2475 = vmatpush1.msra.mxu0 0.0
    %2476 = vmatprep.subr.mxu0 0.0
    %2477 = vmatpush1.msra.mxu0 0.0
    %2478 = vmatprep.subr.mxu0 0.0
    %2479 = vmatpush1.msra.mxu0 0.0
    %2480 = vmatprep.subr.mxu0 0.0
    %2481 = vmatpush1.msra.mxu0 0.0
    %2482 = vmatprep.subr.mxu0 0.0
    %2483 = vmatpush1.msra.mxu0 0.0
    %2484 = vmatprep.subr.mxu0 0.0
    %2485 = vmatpush1.msra.mxu0 0.0
    %2486 = vmatprep.subr.mxu0 0.0
    %2487 = vmatpush1.msra.mxu0 0.0
    %2488 = vmatprep.subr.mxu0 0.0
    %2489 = vmatpush1.msra.mxu0 0.0
    %2490 = vmatprep.subr.mxu0 0.0
    %2491 = vmatpush1.msra.mxu0 0.0
    %2492 = vmatprep.subr.mxu0 0.0
    %2493 = vmatpush1.msra.mxu0 0.0
    %2494 = vmatprep.subr.mxu0 0.0
    %2495 = vmatpush1.msra.mxu0 0.0
    %2496 = vmatprep.subr.mxu0 0.0
    %2497 = vmatpush1.msra.mxu0 0.0
    %2498 = vmatprep.subr.mxu0 0.0
    %2499 = vmatpush1.msra.mxu0 0.0
    %2500 = vmatprep.subr.mxu0 0.0
    %2501 = vmatpush1.msra.mxu0 0.0
    %2502 = vmatprep.subr.mxu0 0.0
    %2503 = vmatpush1.msra.mxu0 0.0
    %2504 = vmatprep.subr.mxu0 0.0
    %2505 = vmatpush1.msra.mxu0 0.0
    %2506 = vmatprep.subr.mxu0 0.0
    %2507 = vmatpush1.msra.mxu0 0.0
    %2508 = vmatprep.subr.mxu0 0.0
    %2509 = vmatpush1.msra.mxu0 0.0
    %2510 = vmatprep.mubr.f32.mxu0 0.0
    %2511 = vmatmul.mubr.f32.gmra.mrb[0].mxu0 %v2438
    %v2512 = vpop.f32.mrb[0].mxu0
    %v2513 = vadd.f32 0.0, %v2512
    %v2514 = vpop.f32.mrb[0].mxu0
    %2515 = vmatprep.mubr.f32.mxu0 0.0
    %2516 = vmatmul.mubr.f32.gmra.mrb[0].mxu0 %v2441
    %v2517 = vpop.f32.mrb[0].mxu0
    %v2518 = vadd.f32 0.0, %v2517
    %v2519 = vpop.f32.mrb[0].mxu0
    %2520 = vmatprep.mubr.f32.mxu0 0.0
    %2521 = vmatmul.mubr.f32.gmra.mrb[0].mxu0 %v2444
    %v2522 = vpop.f32.mrb[0].mxu0
    %v2523 = vadd.f32 0.0, %v2522
    %v2524 = vpop.f32.mrb[0].mxu0
    %2525 = vdwg.mxu0
    %v2526 = vld [vmem:[%s12] sm:$0xff]
    %v2527 = vld [vmem:[%s12 + $0x8] sm:$0xff]
    %v2528 = vld [vmem:[%s12 + $0x10] sm:$0xff]
    %2530 = vset.pattern.permute.xlu0 0
    %2531 = vperm.xlu0 %2530, %v2526
    %v2532 = vpop.permute.xlu0 %2531
    %2535 = vset.pattern.permute.xlu0 0
    %2536 = vperm.xlu0 %2535, %v2527
    %v2537 = vpop.permute.xlu0 %2536
    %2540 = vset.pattern.permute.xlu0 0
    %2541 = vperm.xlu0 %2540, %v2528
    %v2542 = vpop.permute.xlu0 %2541
    %v2544 = vmul.f32 %v2513, %v2532
    %v2545 = vmul.f32 %v2518, %v2537
    %v2546 = vmul.f32 %v2523, %v2542
    %s2547 = scalar_lea.vmem %s12, 24
    %v2548 = vld [vmem:[%s2547] sm:$0xff]
    %v2549 = vld [vmem:[%s2547 + $0x8] sm:$0xff]
    %v2550 = vld [vmem:[%s2547 + $0x10] sm:$0xff]
    %2552 = vset.pattern.permute.xlu0 0
    %2553 = vperm.xlu0 %2552, %v2548
    %v2554 = vpop.permute.xlu0 %2553
    %2557 = vset.pattern.permute.xlu0 0
    %2558 = vperm.xlu0 %2557, %v2549
    %v2559 = vpop.permute.xlu0 %2558
    %2562 = vset.pattern.permute.xlu0 0
    %2563 = vperm.xlu0 %2562, %v2550
    %v2564 = vpop.permute.xlu0 %2563
    %v2566 = vadd.f32 %v2544, %v2554
    %v2567 = vadd.f32 %v2545, %v2559
    %v2568 = vadd.f32 %v2546, %v2564
    %v2569 = vmax.f32 %v2566, 0.0
    %v2570 = vmax.f32 %v2567, 0.0
    %v2571 = vmax.f32 %v2568, 0.0
    %v2572 = vld [vmem:[%s13] sm:$0xff]
    %v2573 = vld [vmem:[%s13 + $0x8] sm:$0xff]
    %v2574 = vld [vmem:[%s13 + $0x10] sm:$0xff]
    %v2576 = vsel %vm274, %v2572, 0
    %v2579 = vsel %vm274, %v2573, 0
    %v2582 = vsel %vm274, %v2574, 0
    %2584 = vmatprep.subr.mxu0 0.0
    %2585 = vmatpush1.msra.mxu0 %v2431
    %2586 = vmatprep.subr.mxu0 0.0
    %2587 = vmatpush1.msra.mxu0 %v2432
    %2588 = vmatprep.subr.mxu0 0.0
    %2589 = vmatpush1.msra.mxu0 %v2433
    %2590 = vmatprep.subr.mxu0 0.0
    %2591 = vmatpush1.msra.mxu0 0.0
    %2592 = vmatprep.subr.mxu0 0.0
    %2593 = vmatpush1.msra.mxu0 0.0
    %2594 = vmatprep.subr.mxu0 0.0
    %2595 = vmatpush1.msra.mxu0 0.0
    %2596 = vmatprep.subr.mxu0 0.0
    %2597 = vmatpush1.msra.mxu0 0.0
    %2598 = vmatprep.subr.mxu0 0.0
    %2599 = vmatpush1.msra.mxu0 0.0
    %2600 = vmatprep.subr.mxu0 0.0
    %2601 = vmatpush1.msra.mxu0 0.0
    %2602 = vmatprep.subr.mxu0 0.0
    %2603 = vmatpush1.msra.mxu0 0.0
    %2604 = vmatprep.subr.mxu0 0.0
    %2605 = vmatpush1.msra.mxu0 0.0
    %2606 = vmatprep.subr.mxu0 0.0
    %2607 = vmatpush1.msra.mxu0 0.0
    %2608 = vmatprep.subr.mxu0 0.0
    %2609 = vmatpush1.msra.mxu0 0.0
    %2610 = vmatprep.subr.mxu0 0.0
    %2611 = vmatpush1.msra.mxu0 0.0
    %2612 = vmatprep.subr.mxu0 0.0
    %2613 = vmatpush1.msra.mxu0 0.0
    %2614 = vmatprep.subr.mxu0 0.0
    %2615 = vmatpush1.msra.mxu0 0.0
    %2616 = vmatprep.subr.mxu0 0.0
    %2617 = vmatpush1.msra.mxu0 0.0
    %2618 = vmatprep.subr.mxu0 0.0
    %2619 = vmatpush1.msra.mxu0 0.0
    %2620 = vmatprep.subr.mxu0 0.0
    %2621 = vmatpush1.msra.mxu0 0.0
    %2622 = vmatprep.subr.mxu0 0.0
    %2623 = vmatpush1.msra.mxu0 0.0
    %2624 = vmatprep.subr.mxu0 0.0
    %2625 = vmatpush1.msra.mxu0 0.0
    %2626 = vmatprep.subr.mxu0 0.0
    %2627 = vmatpush1.msra.mxu0 0.0
    %2628 = vmatprep.subr.mxu0 0.0
    %2629 = vmatpush1.msra.mxu0 0.0
    %2630 = vmatprep.subr.mxu0 0.0
    %2631 = vmatpush1.msra.mxu0 0.0
    %2632 = vmatprep.subr.mxu0 0.0
    %2633 = vmatpush1.msra.mxu0 0.0
    %2634 = vmatprep.subr.mxu0 0.0
    %2635 = vmatpush1.msra.mxu0 0.0
    %2636 = vmatprep.subr.mxu0 0.0
    %2637 = vmatpush1.msra.mxu0 0.0
    %2638 = vmatprep.subr.mxu0 0.0
    %2639 = vmatpush1.msra.mxu0 0.0
    %2640 = vmatprep.subr.mxu0 0.0
    %2641 = vmatpush1.msra.mxu0 0.0
    %2642 = vmatprep.subr.mxu0 0.0
    %2643 = vmatpush1.msra.mxu0 0.0
    %2644 = vmatprep.subr.mxu0 0.0
    %2645 = vmatpush1.msra.mxu0 0.0
    %2646 = vmatprep.subr.mxu0 0.0
    %2647 = vmatpush1.msra.mxu0 0.0
    %2648 = vmatprep.mubr.f32.mxu0 0.0
    %2649 = vmatmul.mubr.f32.gmra.mrb[0].mxu0 %v2576
    %v2650 = vpop.f32.mrb[0].mxu0
    %v2651 = vadd.f32 0.0, %v2650
    %v2652 = vpop.f32.mrb[0].mxu0
    %2653 = vmatprep.mubr.f32.mxu0 0.0
    %2654 = vmatmul.mubr.f32.gmra.mrb[0].mxu0 %v2579
    %v2655 = vpop.f32.mrb[0].mxu0
    %v2656 = vadd.f32 0.0, %v2655
    %v2657 = vpop.f32.mrb[0].mxu0
    %2658 = vmatprep.mubr.f32.mxu0 0.0
    %2659 = vmatmul.mubr.f32.gmra.mrb[0].mxu0 %v2582
    %v2660 = vpop.f32.mrb[0].mxu0
    %v2661 = vadd.f32 0.0, %v2660
    %v2662 = vpop.f32.mrb[0].mxu0
    %2663 = vdwg.mxu0
    %s2664 = scalar_lea.vmem %s13, 24
    %v2665 = vld [vmem:[%s2664] sm:$0xff]
    %v2666 = vld [vmem:[%s2664 + $0x8] sm:$0xff]
    %v2667 = vld [vmem:[%s2664 + $0x10] sm:$0xff]
    %v2669 = vsel %vm274, %v2665, 0
    %v2672 = vsel %vm274, %v2666, 0
    %v2675 = vsel %vm274, %v2667, 0
    %2677 = vmatprep.subr.mxu0 0.0
    %2678 = vmatpush1.msra.mxu0 %v2431
    %2679 = vmatprep.subr.mxu0 0.0
    %2680 = vmatpush1.msra.mxu0 %v2432
    %2681 = vmatprep.subr.mxu0 0.0
    %2682 = vmatpush1.msra.mxu0 %v2433
    %2683 = vmatprep.subr.mxu0 0.0
    %2684 = vmatpush1.msra.mxu0 0.0
    %2685 = vmatprep.subr.mxu0 0.0
    %2686 = vmatpush1.msra.mxu0 0.0
    %2687 = vmatprep.subr.mxu0 0.0
    %2688 = vmatpush1.msra.mxu0 0.0
    %2689 = vmatprep.subr.mxu0 0.0
    %2690 = vmatpush1.msra.mxu0 0.0
    %2691 = vmatprep.subr.mxu0 0.0
    %2692 = vmatpush1.msra.mxu0 0.0
    %2693 = vmatprep.subr.mxu0 0.0
    %2694 = vmatpush1.msra.mxu0 0.0
    %2695 = vmatprep.subr.mxu0 0.0
    %2696 = vmatpush1.msra.mxu0 0.0
    %2697 = vmatprep.subr.mxu0 0.0
    %2698 = vmatpush1.msra.mxu0 0.0
    %2699 = vmatprep.subr.mxu0 0.0
    %2700 = vmatpush1.msra.mxu0 0.0
    %2701 = vmatprep.subr.mxu0 0.0
    %2702 = vmatpush1.msra.mxu0 0.0
    %2703 = vmatprep.subr.mxu0 0.0
    %2704 = vmatpush1.msra.mxu0 0.0
    %2705 = vmatprep.subr.mxu0 0.0
    %2706 = vmatpush1.msra.mxu0 0.0
    %2707 = vmatprep.subr.mxu0 0.0
    %2708 = vmatpush1.msra.mxu0 0.0
    %2709 = vmatprep.subr.mxu0 0.0
    %2710 = vmatpush1.msra.mxu0 0.0
    %2711 = vmatprep.subr.mxu0 0.0
    %2712 = vmatpush1.msra.mxu0 0.0
    %2713 = vmatprep.subr.mxu0 0.0
    %2714 = vmatpush1.msra.mxu0 0.0
    %2715 = vmatprep.subr.mxu0 0.0
    %2716 = vmatpush1.msra.mxu0 0.0
    %2717 = vmatprep.subr.mxu0 0.0
    %2718 = vmatpush1.msra.mxu0 0.0
    %2719 = vmatprep.subr.mxu0 0.0
    %2720 = vmatpush1.msra.mxu0 0.0
    %2721 = vmatprep.subr.mxu0 0.0
    %2722 = vmatpush1.msra.mxu0 0.0
    %2723 = vmatprep.subr.mxu0 0.0
    %2724 = vmatpush1.msra.mxu0 0.0
    %2725 = vmatprep.subr.mxu0 0.0
    %2726 = vmatpush1.msra.mxu0 0.0
    %2727 = vmatprep.subr.mxu0 0.0
    %2728 = vmatpush1.msra.mxu0 0.0
    %2729 = vmatprep.subr.mxu0 0.0
    %2730 = vmatpush1.msra.mxu0 0.0
    %2731 = vmatprep.subr.mxu0 0.0
    %2732 = vmatpush1.msra.mxu0 0.0
    %2733 = vmatprep.subr.mxu0 0.0
    %2734 = vmatpush1.msra.mxu0 0.0
    %2735 = vmatprep.subr.mxu0 0.0
    %2736 = vmatpush1.msra.mxu0 0.0
    %2737 = vmatprep.subr.mxu0 0.0
    %2738 = vmatpush1.msra.mxu0 0.0
    %2739 = vmatprep.subr.mxu0 0.0
    %2740 = vmatpush1.msra.mxu0 0.0
    %2741 = vmatprep.mubr.f32.mxu0 0.0
    %2742 = vmatmul.mubr.f32.gmra.mrb[0].mxu0 %v2669
    %v2743 = vpop.f32.mrb[0].mxu0
    %v2744 = vadd.f32 0.0, %v2743
    %v2745 = vpop.f32.mrb[0].mxu0
    %2746 = vmatprep.mubr.f32.mxu0 0.0
    %2747 = vmatmul.mubr.f32.gmra.mrb[0].mxu0 %v2672
    %v2748 = vpop.f32.mrb[0].mxu0
    %v2749 = vadd.f32 0.0, %v2748
    %v2750 = vpop.f32.mrb[0].mxu0
    %2751 = vmatprep.mubr.f32.mxu0 0.0
    %2752 = vmatmul.mubr.f32.gmra.mrb[0].mxu0 %v2675
    %v2753 = vpop.f32.mrb[0].mxu0
    %v2754 = vadd.f32 0.0, %v2753
    %v2755 = vpop.f32.mrb[0].mxu0
    %2756 = vdwg.mxu0
    %v2758 = vsel %vm1587, %v2744, 0
    %v2761 = vsel %vm1587, %v2749, 0
    %v2764 = vsel %vm1587, %v2754, 0
    %2766 = vmatprep.subr.mxu0 0.0
    %2767 = vmatpush1.msra.mxu0 %v175
    %2768 = vmatprep.subr.mxu0 0.0
    %2769 = vmatpush1.msra.mxu0 %v1691
    %2770 = vmatprep.subr.mxu0 0.0
    %2771 = vmatpush1.msra.mxu0 0.0
    %2772 = vmatprep.subr.mxu0 0.0
    %2773 = vmatpush1.msra.mxu0 0.0
    %2774 = vmatprep.subr.mxu0 0.0
    %2775 = vmatpush1.msra.mxu0 0.0
    %2776 = vmatprep.subr.mxu0 0.0
    %2777 = vmatpush1.msra.mxu0 0.0
    %2778 = vmatprep.subr.mxu0 0.0
    %2779 = vmatpush1.msra.mxu0 0.0
    %2780 = vmatprep.subr.mxu0 0.0
    %2781 = vmatpush1.msra.mxu0 0.0
    %2782 = vmatprep.subr.mxu0 0.0
    %2783 = vmatpush1.msra.mxu0 0.0
    %2784 = vmatprep.subr.mxu0 0.0
    %2785 = vmatpush1.msra.mxu0 0.0
    %2786 = vmatprep.subr.mxu0 0.0
    %2787 = vmatpush1.msra.mxu0 0.0
    %2788 = vmatprep.subr.mxu0 0.0
    %2789 = vmatpush1.msra.mxu0 0.0
    %2790 = vmatprep.subr.mxu0 0.0
    %2791 = vmatpush1.msra.mxu0 0.0
    %2792 = vmatprep.subr.mxu0 0.0
    %2793 = vmatpush1.msra.mxu0 0.0
    %2794 = vmatprep.subr.mxu0 0.0
    %2795 = vmatpush1.msra.mxu0 0.0
    %2796 = vmatprep.subr.mxu0 0.0
    %2797 = vmatpush1.msra.mxu0 0.0
    %2798 = vmatprep.subr.mxu0 0.0
    %2799 = vmatpush1.msra.mxu0 0.0
    %2800 = vmatprep.subr.mxu0 0.0
    %2801 = vmatpush1.msra.mxu0 0.0
    %2802 = vmatprep.subr.mxu0 0.0
    %2803 = vmatpush1.msra.mxu0 0.0
    %2804 = vmatprep.subr.mxu0 0.0
    %2805 = vmatpush1.msra.mxu0 0.0
    %2806 = vmatprep.subr.mxu0 0.0
    %2807 = vmatpush1.msra.mxu0 0.0
    %2808 = vmatprep.subr.mxu0 0.0
    %2809 = vmatpush1.msra.mxu0 0.0
    %2810 = vmatprep.subr.mxu0 0.0
    %2811 = vmatpush1.msra.mxu0 0.0
    %2812 = vmatprep.subr.mxu0 0.0
    %2813 = vmatpush1.msra.mxu0 0.0
    %2814 = vmatprep.subr.mxu0 0.0
    %2815 = vmatpush1.msra.mxu0 0.0
    %2816 = vmatprep.subr.mxu0 0.0
    %2817 = vmatpush1.msra.mxu0 0.0
    %2818 = vmatprep.subr.mxu0 0.0
    %2819 = vmatpush1.msra.mxu0 0.0
    %2820 = vmatprep.subr.mxu0 0.0
    %2821 = vmatpush1.msra.mxu0 0.0
    %2822 = vmatprep.subr.mxu0 0.0
    %2823 = vmatpush1.msra.mxu0 0.0
    %2824 = vmatprep.subr.mxu0 0.0
    %2825 = vmatpush1.msra.mxu0 0.0
    %2826 = vmatprep.subr.mxu0 0.0
    %2827 = vmatpush1.msra.mxu0 0.0
    %2828 = vmatprep.subr.mxu0 0.0
    %2829 = vmatpush1.msra.mxu0 0.0
    %2830 = vmatprep.mubr.f32.mxu0 0.0
    %2831 = vmatmul.mubr.f32.gmra.mrb[0].mxu0 %v2758
    %v2832 = vpop.f32.mrb[0].mxu0
    %v2833 = vadd.f32 0.0, %v2832
    %v2834 = vpop.f32.mrb[0].mxu0
    %2835 = vmatprep.mubr.f32.mxu0 0.0
    %2836 = vmatmul.mubr.f32.gmra.mrb[0].mxu0 %v2761
    %v2837 = vpop.f32.mrb[0].mxu0
    %v2838 = vadd.f32 0.0, %v2837
    %v2839 = vpop.f32.mrb[0].mxu0
    %2840 = vmatprep.mubr.f32.mxu0 0.0
    %2841 = vmatmul.mubr.f32.gmra.mrb[0].mxu0 %v2764
    %v2842 = vpop.f32.mrb[0].mxu0
    %v2843 = vadd.f32 0.0, %v2842
    %v2844 = vpop.f32.mrb[0].mxu0
    %2845 = vdwg.mxu0
    %v2847 = vsel %vm1587, %v2651, 0
    %v2850 = vsel %vm1587, %v2656, 0
    %v2853 = vsel %vm1587, %v2661, 0
    %2855 = vmatprep.subr.mxu0 0.0
    %2856 = vmatpush1.msra.mxu0 %v2016
    %2857 = vmatprep.subr.mxu0 0.0
    %2858 = vmatpush1.msra.mxu0 %v2210
    %2859 = vmatprep.subr.mxu0 0.0
    %2860 = vmatpush1.msra.mxu0 0.0
    %2861 = vmatprep.subr.mxu0 0.0
    %2862 = vmatpush1.msra.mxu0 0.0
    %2863 = vmatprep.subr.mxu0 0.0
    %2864 = vmatpush1.msra.mxu0 0.0
    %2865 = vmatprep.subr.mxu0 0.0
    %2866 = vmatpush1.msra.mxu0 0.0
    %2867 = vmatprep.subr.mxu0 0.0
    %2868 = vmatpush1.msra.mxu0 0.0
    %2869 = vmatprep.subr.mxu0 0.0
    %2870 = vmatpush1.msra.mxu0 0.0
    %2871 = vmatprep.subr.mxu0 0.0
    %2872 = vmatpush1.msra.mxu0 0.0
    %2873 = vmatprep.subr.mxu0 0.0
    %2874 = vmatpush1.msra.mxu0 0.0
    %2875 = vmatprep.subr.mxu0 0.0
    %2876 = vmatpush1.msra.mxu0 0.0
    %2877 = vmatprep.subr.mxu0 0.0
    %2878 = vmatpush1.msra.mxu0 0.0
    %2879 = vmatprep.subr.mxu0 0.0
    %2880 = vmatpush1.msra.mxu0 0.0
    %2881 = vmatprep.subr.mxu0 0.0
    %2882 = vmatpush1.msra.mxu0 0.0
    %2883 = vmatprep.subr.mxu0 0.0
    %2884 = vmatpush1.msra.mxu0 0.0
    %2885 = vmatprep.subr.mxu0 0.0
    %2886 = vmatpush1.msra.mxu0 0.0
    %2887 = vmatprep.subr.mxu0 0.0
    %2888 = vmatpush1.msra.mxu0 0.0
    %2889 = vmatprep.subr.mxu0 0.0
    %2890 = vmatpush1.msra.mxu0 0.0
    %2891 = vmatprep.subr.mxu0 0.0
    %2892 = vmatpush1.msra.mxu0 0.0
    %2893 = vmatprep.subr.mxu0 0.0
    %2894 = vmatpush1.msra.mxu0 0.0
    %2895 = vmatprep.subr.mxu0 0.0
    %2896 = vmatpush1.msra.mxu0 0.0
    %2897 = vmatprep.subr.mxu0 0.0
    %2898 = vmatpush1.msra.mxu0 0.0
    %2899 = vmatprep.subr.mxu0 0.0
    %2900 = vmatpush1.msra.mxu0 0.0
    %2901 = vmatprep.subr.mxu0 0.0
    %2902 = vmatpush1.msra.mxu0 0.0
    %2903 = vmatprep.subr.mxu0 0.0
    %2904 = vmatpush1.msra.mxu0 0.0
    %2905 = vmatprep.subr.mxu0 0.0
    %2906 = vmatpush1.msra.mxu0 0.0
    %2907 = vmatprep.subr.mxu0 0.0
    %2908 = vmatpush1.msra.mxu0 0.0
    %2909 = vmatprep.subr.mxu0 0.0
    %2910 = vmatpush1.msra.mxu0 0.0
    %2911 = vmatprep.subr.mxu0 0.0
    %2912 = vmatpush1.msra.mxu0 0.0
    %2913 = vmatprep.subr.mxu0 0.0
    %2914 = vmatpush1.msra.mxu0 0.0
    %2915 = vmatprep.subr.mxu0 0.0
    %2916 = vmatpush1.msra.mxu0 0.0
    %2917 = vmatprep.subr.mxu0 0.0
    %2918 = vmatpush1.msra.mxu0 0.0
    %2919 = vmatprep.mubr.f32.mxu0 0.0
    %2920 = vmatmul.mubr.f32.gmra.mrb[0].mxu0 %v2847
    %v2921 = vpop.f32.mrb[0].mxu0
    %v2922 = vadd.f32 %v2833, %v2921
    %v2923 = vpop.f32.mrb[0].mxu0
    %2924 = vmatprep.mubr.f32.mxu0 0.0
    %2925 = vmatmul.mubr.f32.gmra.mrb[0].mxu0 %v2850
    %v2926 = vpop.f32.mrb[0].mxu0
    %v2927 = vadd.f32 %v2838, %v2926
    %v2928 = vpop.f32.mrb[0].mxu0
    %2929 = vmatprep.mubr.f32.mxu0 0.0
    %2930 = vmatmul.mubr.f32.gmra.mrb[0].mxu0 %v2853
    %v2931 = vpop.f32.mrb[0].mxu0
    %v2932 = vadd.f32 %v2843, %v2931
    %v2933 = vpop.f32.mrb[0].mxu0
    %2934 = vdwg.mxu0
    %s2935 = scalar_lea.vmem %s13, 48
    %v2936 = vld [vmem:[%s2935] sm:$0xff]
    %v2937 = vld [vmem:[%s2935 + $0x8] sm:$0xff]
    %v2938 = vld [vmem:[%s2935 + $0x10] sm:$0xff]
    %v2940 = vsel %vm274, %v2936, 0
    %v2943 = vsel %vm274, %v2937, 0
    %v2946 = vsel %vm274, %v2938, 0
    %2948 = vmatprep.subr.mxu0 0.0
    %2949 = vmatpush1.msra.mxu0 %v2431
    %2950 = vmatprep.subr.mxu0 0.0
    %2951 = vmatpush1.msra.mxu0 %v2432
    %2952 = vmatprep.subr.mxu0 0.0
    %2953 = vmatpush1.msra.mxu0 %v2433
    %2954 = vmatprep.subr.mxu0 0.0
    %2955 = vmatpush1.msra.mxu0 0.0
    %2956 = vmatprep.subr.mxu0 0.0
    %2957 = vmatpush1.msra.mxu0 0.0
    %2958 = vmatprep.subr.mxu0 0.0
    %2959 = vmatpush1.msra.mxu0 0.0
    %2960 = vmatprep.subr.mxu0 0.0
    %2961 = vmatpush1.msra.mxu0 0.0
    %2962 = vmatprep.subr.mxu0 0.0
    %2963 = vmatpush1.msra.mxu0 0.0
    %2964 = vmatprep.subr.mxu0 0.0
    %2965 = vmatpush1.msra.mxu0 0.0
    %2966 = vmatprep.subr.mxu0 0.0
    %2967 = vmatpush1.msra.mxu0 0.0
    %2968 = vmatprep.subr.mxu0 0.0
    %2969 = vmatpush1.msra.mxu0 0.0
    %2970 = vmatprep.subr.mxu0 0.0
    %2971 = vmatpush1.msra.mxu0 0.0
    %2972 = vmatprep.subr.mxu0 0.0
    %2973 = vmatpush1.msra.mxu0 0.0
    %2974 = vmatprep.subr.mxu0 0.0
    %2975 = vmatpush1.msra.mxu0 0.0
    %2976 = vmatprep.subr.mxu0 0.0
    %2977 = vmatpush1.msra.mxu0 0.0
    %2978 = vmatprep.subr.mxu0 0.0
    %2979 = vmatpush1.msra.mxu0 0.0
    %2980 = vmatprep.subr.mxu0 0.0
    %2981 = vmatpush1.msra.mxu0 0.0
    %2982 = vmatprep.subr.mxu0 0.0
    %2983 = vmatpush1.msra.mxu0 0.0
    %2984 = vmatprep.subr.mxu0 0.0
    %2985 = vmatpush1.msra.mxu0 0.0
    %2986 = vmatprep.subr.mxu0 0.0
    %2987 = vmatpush1.msra.mxu0 0.0
    %2988 = vmatprep.subr.mxu0 0.0
    %2989 = vmatpush1.msra.mxu0 0.0
    %2990 = vmatprep.subr.mxu0 0.0
    %2991 = vmatpush1.msra.mxu0 0.0
    %2992 = vmatprep.subr.mxu0 0.0
    %2993 = vmatpush1.msra.mxu0 0.0
    %2994 = vmatprep.subr.mxu0 0.0
    %2995 = vmatpush1.msra.mxu0 0.0
    %2996 = vmatprep.subr.mxu0 0.0
    %2997 = vmatpush1.msra.mxu0 0.0
    %2998 = vmatprep.subr.mxu0 0.0
    %2999 = vmatpush1.msra.mxu0 0.0
    %3000 = vmatprep.subr.mxu0 0.0
    %3001 = vmatpush1.msra.mxu0 0.0
    %3002 = vmatprep.subr.mxu0 0.0
    %3003 = vmatpush1.msra.mxu0 0.0
    %3004 = vmatprep.subr.mxu0 0.0
    %3005 = vmatpush1.msra.mxu0 0.0
    %3006 = vmatprep.subr.mxu0 0.0
    %3007 = vmatpush1.msra.mxu0 0.0
    %3008 = vmatprep.subr.mxu0 0.0
    %3009 = vmatpush1.msra.mxu0 0.0
    %3010 = vmatprep.subr.mxu0 0.0
    %3011 = vmatpush1.msra.mxu0 0.0
    %3012 = vmatprep.mubr.f32.mxu0 0.0
    %3013 = vmatmul.mubr.f32.gmra.mrb[0].mxu0 %v2940
    %v3014 = vpop.f32.mrb[0].mxu0
    %v3015 = vadd.f32 0.0, %v3014
    %v3016 = vpop.f32.mrb[0].mxu0
    %3017 = vmatprep.mubr.f32.mxu0 0.0
    %3018 = vmatmul.mubr.f32.gmra.mrb[0].mxu0 %v2943
    %v3019 = vpop.f32.mrb[0].mxu0
    %v3020 = vadd.f32 0.0, %v3019
    %v3021 = vpop.f32.mrb[0].mxu0
    %3022 = vmatprep.mubr.f32.mxu0 0.0
    %3023 = vmatmul.mubr.f32.gmra.mrb[0].mxu0 %v2946
    %v3024 = vpop.f32.mrb[0].mxu0
    %v3025 = vadd.f32 0.0, %v3024
    %v3026 = vpop.f32.mrb[0].mxu0
    %3027 = vdwg.mxu0
    %v3028 = vadd.f32 %v2922, %v3015
    %v3029 = vadd.f32 %v2927, %v3020
    %v3030 = vadd.f32 %v2932, %v3025
    %v3031 = vld [vmem:[%s14] sm:$0xff]
    %v3032 = vld [vmem:[%s14 + $0x8] sm:$0xff]
    %v3033 = vld [vmem:[%s14 + $0x10] sm:$0xff]
    %3035 = vset.pattern.permute.xlu0 0
    %3036 = vperm.xlu0 %3035, %v3031
    %v3037 = vpop.permute.xlu0 %3036
    %3040 = vset.pattern.permute.xlu0 0
    %3041 = vperm.xlu0 %3040, %v3032
    %v3042 = vpop.permute.xlu0 %3041
    %3045 = vset.pattern.permute.xlu0 0
    %3046 = vperm.xlu0 %3045, %v3033
    %v3047 = vpop.permute.xlu0 %3046
    %v3049 = vmul.f32 %v3028, %v3037
    %v3050 = vmul.f32 %v3029, %v3042
    %v3051 = vmul.f32 %v3030, %v3047
    %s3052 = scalar_lea.vmem %s14, 24
    %v3053 = vld [vmem:[%s3052] sm:$0xff]
    %v3054 = vld [vmem:[%s3052 + $0x8] sm:$0xff]
    %v3055 = vld [vmem:[%s3052 + $0x10] sm:$0xff]
    %3057 = vset.pattern.permute.xlu0 0
    %3058 = vperm.xlu0 %3057, %v3053
    %v3059 = vpop.permute.xlu0 %3058
    %3062 = vset.pattern.permute.xlu0 0
    %3063 = vperm.xlu0 %3062, %v3054
    %v3064 = vpop.permute.xlu0 %3063
    %3067 = vset.pattern.permute.xlu0 0
    %3068 = vperm.xlu0 %3067, %v3055
    %v3069 = vpop.permute.xlu0 %3068
    %v3071 = vadd.f32 %v3049, %v3059
    %v3072 = vadd.f32 %v3050, %v3064
    %v3073 = vadd.f32 %v3051, %v3069
    %v3074 = vadd.f32 %v3071, %v2569
    %v3075 = vadd.f32 %v3072, %v2570
    %v3076 = vadd.f32 %v3073, %v2571
    %v3077 = vmax.f32 %v3074, 0.0
    %v3078 = vmax.f32 %v3075, 0.0
    %v3079 = vmax.f32 %v3076, 0.0
    %v3080 = vld [vmem:[%s15] sm:$0xff]
    %v3081 = vld [vmem:[%s15 + $0x8] sm:$0xff]
    %v3082 = vld [vmem:[%s15 + $0x10] sm:$0xff]
    %v3083 = vld [vmem:[%s15 + $0x18] sm:$0xff]
    %v3085 = vsel %vm274, %v3080, 0
    %v3088 = vsel %vm274, %v3081, 0
    %v3091 = vsel %vm274, %v3082, 0
    %v3094 = vsel %vm274, %v3083, 0
    %3096 = vmatprep.subr.mxu0 0.0
    %3097 = vmatpush1.msra.mxu0 %v3077
    %3098 = vmatprep.subr.mxu0 0.0
    %3099 = vmatpush1.msra.mxu0 %v3078
    %3100 = vmatprep.subr.mxu0 0.0
    %3101 = vmatpush1.msra.mxu0 %v3079
    %3102 = vmatprep.subr.mxu0 0.0
    %3103 = vmatpush1.msra.mxu0 0.0
    %3104 = vmatprep.subr.mxu0 0.0
    %3105 = vmatpush1.msra.mxu0 0.0
    %3106 = vmatprep.subr.mxu0 0.0
    %3107 = vmatpush1.msra.mxu0 0.0
    %3108 = vmatprep.subr.mxu0 0.0
    %3109 = vmatpush1.msra.mxu0 0.0
    %3110 = vmatprep.subr.mxu0 0.0
    %3111 = vmatpush1.msra.mxu0 0.0
    %3112 = vmatprep.subr.mxu0 0.0
    %3113 = vmatpush1.msra.mxu0 0.0
    %3114 = vmatprep.subr.mxu0 0.0
    %3115 = vmatpush1.msra.mxu0 0.0
    %3116 = vmatprep.subr.mxu0 0.0
    %3117 = vmatpush1.msra.mxu0 0.0
    %3118 = vmatprep.subr.mxu0 0.0
    %3119 = vmatpush1.msra.mxu0 0.0
    %3120 = vmatprep.subr.mxu0 0.0
    %3121 = vmatpush1.msra.mxu0 0.0
    %3122 = vmatprep.subr.mxu0 0.0
    %3123 = vmatpush1.msra.mxu0 0.0
    %3124 = vmatprep.subr.mxu0 0.0
    %3125 = vmatpush1.msra.mxu0 0.0
    %3126 = vmatprep.subr.mxu0 0.0
    %3127 = vmatpush1.msra.mxu0 0.0
    %3128 = vmatprep.subr.mxu0 0.0
    %3129 = vmatpush1.msra.mxu0 0.0
    %3130 = vmatprep.subr.mxu0 0.0
    %3131 = vmatpush1.msra.mxu0 0.0
    %3132 = vmatprep.subr.mxu0 0.0
    %3133 = vmatpush1.msra.mxu0 0.0
    %3134 = vmatprep.subr.mxu0 0.0
    %3135 = vmatpush1.msra.mxu0 0.0
    %3136 = vmatprep.subr.mxu0 0.0
    %3137 = vmatpush1.msra.mxu0 0.0
    %3138 = vmatprep.subr.mxu0 0.0
    %3139 = vmatpush1.msra.mxu0 0.0
    %3140 = vmatprep.subr.mxu0 0.0
    %3141 = vmatpush1.msra.mxu0 0.0
    %3142 = vmatprep.subr.mxu0 0.0
    %3143 = vmatpush1.msra.mxu0 0.0
    %3144 = vmatprep.subr.mxu0 0.0
    %3145 = vmatpush1.msra.mxu0 0.0
    %3146 = vmatprep.subr.mxu0 0.0
    %3147 = vmatpush1.msra.mxu0 0.0
    %3148 = vmatprep.subr.mxu0 0.0
    %3149 = vmatpush1.msra.mxu0 0.0
    %3150 = vmatprep.subr.mxu0 0.0
    %3151 = vmatpush1.msra.mxu0 0.0
    %3152 = vmatprep.subr.mxu0 0.0
    %3153 = vmatpush1.msra.mxu0 0.0
    %3154 = vmatprep.subr.mxu0 0.0
    %3155 = vmatpush1.msra.mxu0 0.0
    %3156 = vmatprep.subr.mxu0 0.0
    %3157 = vmatpush1.msra.mxu0 0.0
    %3158 = vmatprep.subr.mxu0 0.0
    %3159 = vmatpush1.msra.mxu0 0.0
    %3160 = vmatprep.mubr.f32.mxu0 0.0
    %3161 = vmatmul.mubr.f32.gmra.mrb[0].mxu0 %v3085
    %v3162 = vpop.f32.mrb[0].mxu0
    %v3163 = vadd.f32 0.0, %v3162
    %v3164 = vpop.f32.mrb[0].mxu0
    %3165 = vmatprep.mubr.f32.mxu0 0.0
    %3166 = vmatmul.mubr.f32.gmra.mrb[0].mxu0 %v3088
    %v3167 = vpop.f32.mrb[0].mxu0
    %v3168 = vadd.f32 0.0, %v3167
    %v3169 = vpop.f32.mrb[0].mxu0
    %3170 = vmatprep.mubr.f32.mxu0 0.0
    %3171 = vmatmul.mubr.f32.gmra.mrb[0].mxu0 %v3091
    %v3172 = vpop.f32.mrb[0].mxu0
    %v3173 = vadd.f32 0.0, %v3172
    %v3174 = vpop.f32.mrb[0].mxu0
    %3175 = vmatprep.mubr.f32.mxu0 0.0
    %3176 = vmatmul.mubr.f32.gmra.mrb[0].mxu0 %v3094
    %v3177 = vpop.f32.mrb[0].mxu0
    %v3178 = vadd.f32 0.0, %v3177
    %v3179 = vpop.f32.mrb[0].mxu0
    %3180 = vdwg.mxu0
    %s3181 = scalar_lea.vmem %s15, 32
    %v3182 = vld [vmem:[%s3181] sm:$0xff]
    %v3183 = vld [vmem:[%s3181 + $0x8] sm:$0xff]
    %v3184 = vld [vmem:[%s3181 + $0x10] sm:$0xff]
    %v3185 = vld [vmem:[%s3181 + $0x18] sm:$0xff]
    %v3187 = vsel %vm274, %v3182, 0
    %v3190 = vsel %vm274, %v3183, 0
    %v3193 = vsel %vm274, %v3184, 0
    %v3196 = vsel %vm274, %v3185, 0
    %3198 = vmatprep.subr.mxu0 0.0
    %3199 = vmatpush1.msra.mxu0 %v3077
    %3200 = vmatprep.subr.mxu0 0.0
    %3201 = vmatpush1.msra.mxu0 %v3078
    %3202 = vmatprep.subr.mxu0 0.0
    %3203 = vmatpush1.msra.mxu0 %v3079
    %3204 = vmatprep.subr.mxu0 0.0
    %3205 = vmatpush1.msra.mxu0 0.0
    %3206 = vmatprep.subr.mxu0 0.0
    %3207 = vmatpush1.msra.mxu0 0.0
    %3208 = vmatprep.subr.mxu0 0.0
    %3209 = vmatpush1.msra.mxu0 0.0
    %3210 = vmatprep.subr.mxu0 0.0
    %3211 = vmatpush1.msra.mxu0 0.0
    %3212 = vmatprep.subr.mxu0 0.0
    %3213 = vmatpush1.msra.mxu0 0.0
    %3214 = vmatprep.subr.mxu0 0.0
    %3215 = vmatpush1.msra.mxu0 0.0
    %3216 = vmatprep.subr.mxu0 0.0
    %3217 = vmatpush1.msra.mxu0 0.0
    %3218 = vmatprep.subr.mxu0 0.0
    %3219 = vmatpush1.msra.mxu0 0.0
    %3220 = vmatprep.subr.mxu0 0.0
    %3221 = vmatpush1.msra.mxu0 0.0
    %3222 = vmatprep.subr.mxu0 0.0
    %3223 = vmatpush1.msra.mxu0 0.0
    %3224 = vmatprep.subr.mxu0 0.0
    %3225 = vmatpush1.msra.mxu0 0.0
    %3226 = vmatprep.subr.mxu0 0.0
    %3227 = vmatpush1.msra.mxu0 0.0
    %3228 = vmatprep.subr.mxu0 0.0
    %3229 = vmatpush1.msra.mxu0 0.0
    %3230 = vmatprep.subr.mxu0 0.0
    %3231 = vmatpush1.msra.mxu0 0.0
    %3232 = vmatprep.subr.mxu0 0.0
    %3233 = vmatpush1.msra.mxu0 0.0
    %3234 = vmatprep.subr.mxu0 0.0
    %3235 = vmatpush1.msra.mxu0 0.0
    %3236 = vmatprep.subr.mxu0 0.0
    %3237 = vmatpush1.msra.mxu0 0.0
    %3238 = vmatprep.subr.mxu0 0.0
    %3239 = vmatpush1.msra.mxu0 0.0
    %3240 = vmatprep.subr.mxu0 0.0
    %3241 = vmatpush1.msra.mxu0 0.0
    %3242 = vmatprep.subr.mxu0 0.0
    %3243 = vmatpush1.msra.mxu0 0.0
    %3244 = vmatprep.subr.mxu0 0.0
    %3245 = vmatpush1.msra.mxu0 0.0
    %3246 = vmatprep.subr.mxu0 0.0
    %3247 = vmatpush1.msra.mxu0 0.0
    %3248 = vmatprep.subr.mxu0 0.0
    %3249 = vmatpush1.msra.mxu0 0.0
    %3250 = vmatprep.subr.mxu0 0.0
    %3251 = vmatpush1.msra.mxu0 0.0
    %3252 = vmatprep.subr.mxu0 0.0
    %3253 = vmatpush1.msra.mxu0 0.0
    %3254 = vmatprep.subr.mxu0 0.0
    %3255 = vmatpush1.msra.mxu0 0.0
    %3256 = vmatprep.subr.mxu0 0.0
    %3257 = vmatpush1.msra.mxu0 0.0
    %3258 = vmatprep.subr.mxu0 0.0
    %3259 = vmatpush1.msra.mxu0 0.0
    %3260 = vmatprep.subr.mxu0 0.0
    %3261 = vmatpush1.msra.mxu0 0.0
    %3262 = vmatprep.mubr.f32.mxu0 0.0
    %3263 = vmatmul.mubr.f32.gmra.mrb[0].mxu0 %v3187
    %v3264 = vpop.f32.mrb[0].mxu0
    %v3265 = vadd.f32 0.0, %v3264
    %v3266 = vpop.f32.mrb[0].mxu0
    %3267 = vmatprep.mubr.f32.mxu0 0.0
    %3268 = vmatmul.mubr.f32.gmra.mrb[0].mxu0 %v3190
    %v3269 = vpop.f32.mrb[0].mxu0
    %v3270 = vadd.f32 0.0, %v3269
    %v3271 = vpop.f32.mrb[0].mxu0
    %3272 = vmatprep.mubr.f32.mxu0 0.0
    %3273 = vmatmul.mubr.f32.gmra.mrb[0].mxu0 %v3193
    %v3274 = vpop.f32.mrb[0].mxu0
    %v3275 = vadd.f32 0.0, %v3274
    %v3276 = vpop.f32.mrb[0].mxu0
    %3277 = vmatprep.mubr.f32.mxu0 0.0
    %3278 = vmatmul.mubr.f32.gmra.mrb[0].mxu0 %v3196
    %v3279 = vpop.f32.mrb[0].mxu0
    %v3280 = vadd.f32 0.0, %v3279
    %v3281 = vpop.f32.mrb[0].mxu0
    %3282 = vdwg.mxu0
    %v3284 = vsel %vm1587, %v3265, 0
    %v3287 = vsel %vm1587, %v3270, 0
    %v3290 = vsel %vm1587, %v3275, 0
    %v3293 = vsel %vm1587, %v3280, 0
    %v3296 = vsel %vm1597, %v755, 0
    %3298 = vmatprep.subr.mxu0 0.0
    %3299 = vmatpush1.msra.mxu0 %v754
    %3300 = vmatprep.subr.mxu0 0.0
    %3301 = vmatpush1.msra.mxu0 %v3296
    %3302 = vmatprep.subr.mxu0 0.0
    %3303 = vmatpush1.msra.mxu0 0.0
    %3304 = vmatprep.subr.mxu0 0.0
    %3305 = vmatpush1.msra.mxu0 0.0
    %3306 = vmatprep.subr.mxu0 0.0
    %3307 = vmatpush1.msra.mxu0 0.0
    %3308 = vmatprep.subr.mxu0 0.0
    %3309 = vmatpush1.msra.mxu0 0.0
    %3310 = vmatprep.subr.mxu0 0.0
    %3311 = vmatpush1.msra.mxu0 0.0
    %3312 = vmatprep.subr.mxu0 0.0
    %3313 = vmatpush1.msra.mxu0 0.0
    %3314 = vmatprep.subr.mxu0 0.0
    %3315 = vmatpush1.msra.mxu0 0.0
    %3316 = vmatprep.subr.mxu0 0.0
    %3317 = vmatpush1.msra.mxu0 0.0
    %3318 = vmatprep.subr.mxu0 0.0
    %3319 = vmatpush1.msra.mxu0 0.0
    %3320 = vmatprep.subr.mxu0 0.0
    %3321 = vmatpush1.msra.mxu0 0.0
    %3322 = vmatprep.subr.mxu0 0.0
    %3323 = vmatpush1.msra.mxu0 0.0
    %3324 = vmatprep.subr.mxu0 0.0
    %3325 = vmatpush1.msra.mxu0 0.0
    %3326 = vmatprep.subr.mxu0 0.0
    %3327 = vmatpush1.msra.mxu0 0.0
    %3328 = vmatprep.subr.mxu0 0.0
    %3329 = vmatpush1.msra.mxu0 0.0
    %3330 = vmatprep.subr.mxu0 0.0
    %3331 = vmatpush1.msra.mxu0 0.0
    %3332 = vmatprep.subr.mxu0 0.0
    %3333 = vmatpush1.msra.mxu0 0.0
    %3334 = vmatprep.subr.mxu0 0.0
    %3335 = vmatpush1.msra.mxu0 0.0
    %3336 = vmatprep.subr.mxu0 0.0
    %3337 = vmatpush1.msra.mxu0 0.0
    %3338 = vmatprep.subr.mxu0 0.0
    %3339 = vmatpush1.msra.mxu0 0.0
    %3340 = vmatprep.subr.mxu0 0.0
    %3341 = vmatpush1.msra.mxu0 0.0
    %3342 = vmatprep.subr.mxu0 0.0
    %3343 = vmatpush1.msra.mxu0 0.0
    %3344 = vmatprep.subr.mxu0 0.0
    %3345 = vmatpush1.msra.mxu0 0.0
    %3346 = vmatprep.subr.mxu0 0.0
    %3347 = vmatpush1.msra.mxu0 0.0
    %3348 = vmatprep.subr.mxu0 0.0
    %3349 = vmatpush1.msra.mxu0 0.0
    %3350 = vmatprep.subr.mxu0 0.0
    %3351 = vmatpush1.msra.mxu0 0.0
    %3352 = vmatprep.subr.mxu0 0.0
    %3353 = vmatpush1.msra.mxu0 0.0
    %3354 = vmatprep.subr.mxu0 0.0
    %3355 = vmatpush1.msra.mxu0 0.0
    %3356 = vmatprep.subr.mxu0 0.0
    %3357 = vmatpush1.msra.mxu0 0.0
    %3358 = vmatprep.subr.mxu0 0.0
    %3359 = vmatpush1.msra.mxu0 0.0
    %3360 = vmatprep.subr.mxu0 0.0
    %3361 = vmatpush1.msra.mxu0 0.0
    %3362 = vmatprep.mubr.f32.mxu0 0.0
    %3363 = vmatmul.mubr.f32.gmra.mrb[0].mxu0 %v3284
    %v3364 = vpop.f32.mrb[0].mxu0
    %v3365 = vadd.f32 0.0, %v3364
    %v3366 = vpop.f32.mrb[0].mxu0
    %3367 = vmatprep.mubr.f32.mxu0 0.0
    %3368 = vmatmul.mubr.f32.gmra.mrb[0].mxu0 %v3287
    %v3369 = vpop.f32.mrb[0].mxu0
    %v3370 = vadd.f32 0.0, %v3369
    %v3371 = vpop.f32.mrb[0].mxu0
    %3372 = vmatprep.mubr.f32.mxu0 0.0
    %3373 = vmatmul.mubr.f32.gmra.mrb[0].mxu0 %v3290
    %v3374 = vpop.f32.mrb[0].mxu0
    %v3375 = vadd.f32 0.0, %v3374
    %v3376 = vpop.f32.mrb[0].mxu0
    %3377 = vmatprep.mubr.f32.mxu0 0.0
    %3378 = vmatmul.mubr.f32.gmra.mrb[0].mxu0 %v3293
    %v3379 = vpop.f32.mrb[0].mxu0
    %v3380 = vadd.f32 0.0, %v3379
    %v3381 = vpop.f32.mrb[0].mxu0
    %3382 = vdwg.mxu0
    %v3384 = vsel %vm1587, %v3163, 0
    %v3387 = vsel %vm1587, %v3168, 0
    %v3390 = vsel %vm1587, %v3173, 0
    %v3393 = vsel %vm1587, %v3178, 0
    %v3396 = vsel %vm1597, %v653, 0
    %3398 = vmatprep.subr.mxu0 0.0
    %3399 = vmatpush1.msra.mxu0 %v652
    %3400 = vmatprep.subr.mxu0 0.0
    %3401 = vmatpush1.msra.mxu0 %v3396
    %3402 = vmatprep.subr.mxu0 0.0
    %3403 = vmatpush1.msra.mxu0 0.0
    %3404 = vmatprep.subr.mxu0 0.0
    %3405 = vmatpush1.msra.mxu0 0.0
    %3406 = vmatprep.subr.mxu0 0.0
    %3407 = vmatpush1.msra.mxu0 0.0
    %3408 = vmatprep.subr.mxu0 0.0
    %3409 = vmatpush1.msra.mxu0 0.0
    %3410 = vmatprep.subr.mxu0 0.0
    %3411 = vmatpush1.msra.mxu0 0.0
    %3412 = vmatprep.subr.mxu0 0.0
    %3413 = vmatpush1.msra.mxu0 0.0
    %3414 = vmatprep.subr.mxu0 0.0
    %3415 = vmatpush1.msra.mxu0 0.0
    %3416 = vmatprep.subr.mxu0 0.0
    %3417 = vmatpush1.msra.mxu0 0.0
    %3418 = vmatprep.subr.mxu0 0.0
    %3419 = vmatpush1.msra.mxu0 0.0
    %3420 = vmatprep.subr.mxu0 0.0
    %3421 = vmatpush1.msra.mxu0 0.0
    %3422 = vmatprep.subr.mxu0 0.0
    %3423 = vmatpush1.msra.mxu0 0.0
    %3424 = vmatprep.subr.mxu0 0.0
    %3425 = vmatpush1.msra.mxu0 0.0
    %3426 = vmatprep.subr.mxu0 0.0
    %3427 = vmatpush1.msra.mxu0 0.0
    %3428 = vmatprep.subr.mxu0 0.0
    %3429 = vmatpush1.msra.mxu0 0.0
    %3430 = vmatprep.subr.mxu0 0.0
    %3431 = vmatpush1.msra.mxu0 0.0
    %3432 = vmatprep.subr.mxu0 0.0
    %3433 = vmatpush1.msra.mxu0 0.0
    %3434 = vmatprep.subr.mxu0 0.0
    %3435 = vmatpush1.msra.mxu0 0.0
    %3436 = vmatprep.subr.mxu0 0.0
    %3437 = vmatpush1.msra.mxu0 0.0
    %3438 = vmatprep.subr.mxu0 0.0
    %3439 = vmatpush1.msra.mxu0 0.0
    %3440 = vmatprep.subr.mxu0 0.0
    %3441 = vmatpush1.msra.mxu0 0.0
    %3442 = vmatprep.subr.mxu0 0.0
    %3443 = vmatpush1.msra.mxu0 0.0
    %3444 = vmatprep.subr.mxu0 0.0
    %3445 = vmatpush1.msra.mxu0 0.0
    %3446 = vmatprep.subr.mxu0 0.0
    %3447 = vmatpush1.msra.mxu0 0.0
    %3448 = vmatprep.subr.mxu0 0.0
    %3449 = vmatpush1.msra.mxu0 0.0
    %3450 = vmatprep.subr.mxu0 0.0
    %3451 = vmatpush1.msra.mxu0 0.0
    %3452 = vmatprep.subr.mxu0 0.0
    %3453 = vmatpush1.msra.mxu0 0.0
    %3454 = vmatprep.subr.mxu0 0.0
    %3455 = vmatpush1.msra.mxu0 0.0
    %3456 = vmatprep.subr.mxu0 0.0
    %3457 = vmatpush1.msra.mxu0 0.0
    %3458 = vmatprep.subr.mxu0 0.0
    %3459 = vmatpush1.msra.mxu0 0.0
    %3460 = vmatprep.subr.mxu0 0.0
    %3461 = vmatpush1.msra.mxu0 0.0
    %3462 = vmatprep.mubr.f32.mxu0 0.0
    %3463 = vmatmul.mubr.f32.gmra.mrb[0].mxu0 %v3384
    %v3464 = vpop.f32.mrb[0].mxu0
    %v3465 = vadd.f32 %v3365, %v3464
    %v3466 = vpop.f32.mrb[0].mxu0
    %3467 = vmatprep.mubr.f32.mxu0 0.0
    %3468 = vmatmul.mubr.f32.gmra.mrb[0].mxu0 %v3387
    %v3469 = vpop.f32.mrb[0].mxu0
    %v3470 = vadd.f32 %v3370, %v3469
    %v3471 = vpop.f32.mrb[0].mxu0
    %3472 = vmatprep.mubr.f32.mxu0 0.0
    %3473 = vmatmul.mubr.f32.gmra.mrb[0].mxu0 %v3390
    %v3474 = vpop.f32.mrb[0].mxu0
    %v3475 = vadd.f32 %v3375, %v3474
    %v3476 = vpop.f32.mrb[0].mxu0
    %3477 = vmatprep.mubr.f32.mxu0 0.0
    %3478 = vmatmul.mubr.f32.gmra.mrb[0].mxu0 %v3393
    %v3479 = vpop.f32.mrb[0].mxu0
    %v3480 = vadd.f32 %v3380, %v3479
    %v3481 = vpop.f32.mrb[0].mxu0
    %3482 = vdwg.mxu0
    %s3483 = scalar_lea.vmem %s15, 64
    %v3484 = vld [vmem:[%s3483] sm:$0xff]
    %v3485 = vld [vmem:[%s3483 + $0x8] sm:$0xff]
    %v3486 = vld [vmem:[%s3483 + $0x10] sm:$0xff]
    %v3487 = vld [vmem:[%s3483 + $0x18] sm:$0xff]
    %v3489 = vsel %vm274, %v3484, 0
    %v3492 = vsel %vm274, %v3485, 0
    %v3495 = vsel %vm274, %v3486, 0
    %v3498 = vsel %vm274, %v3487, 0
    %3500 = vmatprep.subr.mxu0 0.0
    %3501 = vmatpush1.msra.mxu0 %v3077
    %3502 = vmatprep.subr.mxu0 0.0
    %3503 = vmatpush1.msra.mxu0 %v3078
    %3504 = vmatprep.subr.mxu0 0.0
    %3505 = vmatpush1.msra.mxu0 %v3079
    %3506 = vmatprep.subr.mxu0 0.0
    %3507 = vmatpush1.msra.mxu0 0.0
    %3508 = vmatprep.subr.mxu0 0.0
    %3509 = vmatpush1.msra.mxu0 0.0
    %3510 = vmatprep.subr.mxu0 0.0
    %3511 = vmatpush1.msra.mxu0 0.0
    %3512 = vmatprep.subr.mxu0 0.0
    %3513 = vmatpush1.msra.mxu0 0.0
    %3514 = vmatprep.subr.mxu0 0.0
    %3515 = vmatpush1.msra.mxu0 0.0
    %3516 = vmatprep.subr.mxu0 0.0
    %3517 = vmatpush1.msra.mxu0 0.0
    %3518 = vmatprep.subr.mxu0 0.0
    %3519 = vmatpush1.msra.mxu0 0.0
    %3520 = vmatprep.subr.mxu0 0.0
    %3521 = vmatpush1.msra.mxu0 0.0
    %3522 = vmatprep.subr.mxu0 0.0
    %3523 = vmatpush1.msra.mxu0 0.0
    %3524 = vmatprep.subr.mxu0 0.0
    %3525 = vmatpush1.msra.mxu0 0.0
    %3526 = vmatprep.subr.mxu0 0.0
    %3527 = vmatpush1.msra.mxu0 0.0
    %3528 = vmatprep.subr.mxu0 0.0
    %3529 = vmatpush1.msra.mxu0 0.0
    %3530 = vmatprep.subr.mxu0 0.0
    %3531 = vmatpush1.msra.mxu0 0.0
    %3532 = vmatprep.subr.mxu0 0.0
    %3533 = vmatpush1.msra.mxu0 0.0
    %3534 = vmatprep.subr.mxu0 0.0
    %3535 = vmatpush1.msra.mxu0 0.0
    %3536 = vmatprep.subr.mxu0 0.0
    %3537 = vmatpush1.msra.mxu0 0.0
    %3538 = vmatprep.subr.mxu0 0.0
    %3539 = vmatpush1.msra.mxu0 0.0
    %3540 = vmatprep.subr.mxu0 0.0
    %3541 = vmatpush1.msra.mxu0 0.0
    %3542 = vmatprep.subr.mxu0 0.0
    %3543 = vmatpush1.msra.mxu0 0.0
    %3544 = vmatprep.subr.mxu0 0.0
    %3545 = vmatpush1.msra.mxu0 0.0
    %3546 = vmatprep.subr.mxu0 0.0
    %3547 = vmatpush1.msra.mxu0 0.0
    %3548 = vmatprep.subr.mxu0 0.0
    %3549 = vmatpush1.msra.mxu0 0.0
    %3550 = vmatprep.subr.mxu0 0.0
    %3551 = vmatpush1.msra.mxu0 0.0
    %3552 = vmatprep.subr.mxu0 0.0
    %3553 = vmatpush1.msra.mxu0 0.0
    %3554 = vmatprep.subr.mxu0 0.0
    %3555 = vmatpush1.msra.mxu0 0.0
    %3556 = vmatprep.subr.mxu0 0.0
    %3557 = vmatpush1.msra.mxu0 0.0
    %3558 = vmatprep.subr.mxu0 0.0
    %3559 = vmatpush1.msra.mxu0 0.0
    %3560 = vmatprep.subr.mxu0 0.0
    %3561 = vmatpush1.msra.mxu0 0.0
    %3562 = vmatprep.subr.mxu0 0.0
    %3563 = vmatpush1.msra.mxu0 0.0
    %3564 = vmatprep.mubr.f32.mxu0 0.0
    %3565 = vmatmul.mubr.f32.gmra.mrb[0].mxu0 %v3489
    %v3566 = vpop.f32.mrb[0].mxu0
    %v3567 = vadd.f32 0.0, %v3566
    %v3568 = vpop.f32.mrb[0].mxu0
    %3569 = vmatprep.mubr.f32.mxu0 0.0
    %3570 = vmatmul.mubr.f32.gmra.mrb[0].mxu0 %v3492
    %v3571 = vpop.f32.mrb[0].mxu0
    %v3572 = vadd.f32 0.0, %v3571
    %v3573 = vpop.f32.mrb[0].mxu0
    %3574 = vmatprep.mubr.f32.mxu0 0.0
    %3575 = vmatmul.mubr.f32.gmra.mrb[0].mxu0 %v3495
    %v3576 = vpop.f32.mrb[0].mxu0
    %v3577 = vadd.f32 0.0, %v3576
    %v3578 = vpop.f32.mrb[0].mxu0
    %3579 = vmatprep.mubr.f32.mxu0 0.0
    %3580 = vmatmul.mubr.f32.gmra.mrb[0].mxu0 %v3498
    %v3581 = vpop.f32.mrb[0].mxu0
    %v3582 = vadd.f32 0.0, %v3581
    %v3583 = vpop.f32.mrb[0].mxu0
    %3584 = vdwg.mxu0
    %v3586 = vsel %vm1587, %v3567, 0
    %v3589 = vsel %vm1587, %v3572, 0
    %v3592 = vsel %vm1587, %v3577, 0
    %v3595 = vsel %vm1587, %v3582, 0
    %v3598 = vsel %vm1597, %v1035, 0
    %3600 = vmatprep.subr.mxu0 0.0
    %3601 = vmatpush1.msra.mxu0 %v1034
    %3602 = vmatprep.subr.mxu0 0.0
    %3603 = vmatpush1.msra.mxu0 %v3598
    %3604 = vmatprep.subr.mxu0 0.0
    %3605 = vmatpush1.msra.mxu0 0.0
    %3606 = vmatprep.subr.mxu0 0.0
    %3607 = vmatpush1.msra.mxu0 0.0
    %3608 = vmatprep.subr.mxu0 0.0
    %3609 = vmatpush1.msra.mxu0 0.0
    %3610 = vmatprep.subr.mxu0 0.0
    %3611 = vmatpush1.msra.mxu0 0.0
    %3612 = vmatprep.subr.mxu0 0.0
    %3613 = vmatpush1.msra.mxu0 0.0
    %3614 = vmatprep.subr.mxu0 0.0
    %3615 = vmatpush1.msra.mxu0 0.0
    %3616 = vmatprep.subr.mxu0 0.0
    %3617 = vmatpush1.msra.mxu0 0.0
    %3618 = vmatprep.subr.mxu0 0.0
    %3619 = vmatpush1.msra.mxu0 0.0
    %3620 = vmatprep.subr.mxu0 0.0
    %3621 = vmatpush1.msra.mxu0 0.0
    %3622 = vmatprep.subr.mxu0 0.0
    %3623 = vmatpush1.msra.mxu0 0.0
    %3624 = vmatprep.subr.mxu0 0.0
    %3625 = vmatpush1.msra.mxu0 0.0
    %3626 = vmatprep.subr.mxu0 0.0
    %3627 = vmatpush1.msra.mxu0 0.0
    %3628 = vmatprep.subr.mxu0 0.0
    %3629 = vmatpush1.msra.mxu0 0.0
    %3630 = vmatprep.subr.mxu0 0.0
    %3631 = vmatpush1.msra.mxu0 0.0
    %3632 = vmatprep.subr.mxu0 0.0
    %3633 = vmatpush1.msra.mxu0 0.0
    %3634 = vmatprep.subr.mxu0 0.0
    %3635 = vmatpush1.msra.mxu0 0.0
    %3636 = vmatprep.subr.mxu0 0.0
    %3637 = vmatpush1.msra.mxu0 0.0
    %3638 = vmatprep.subr.mxu0 0.0
    %3639 = vmatpush1.msra.mxu0 0.0
    %3640 = vmatprep.subr.mxu0 0.0
    %3641 = vmatpush1.msra.mxu0 0.0
    %3642 = vmatprep.subr.mxu0 0.0
    %3643 = vmatpush1.msra.mxu0 0.0
    %3644 = vmatprep.subr.mxu0 0.0
    %3645 = vmatpush1.msra.mxu0 0.0
    %3646 = vmatprep.subr.mxu0 0.0
    %3647 = vmatpush1.msra.mxu0 0.0
    %3648 = vmatprep.subr.mxu0 0.0
    %3649 = vmatpush1.msra.mxu0 0.0
    %3650 = vmatprep.subr.mxu0 0.0
    %3651 = vmatpush1.msra.mxu0 0.0
    %3652 = vmatprep.subr.mxu0 0.0
    %3653 = vmatpush1.msra.mxu0 0.0
    %3654 = vmatprep.subr.mxu0 0.0
    %3655 = vmatpush1.msra.mxu0 0.0
    %3656 = vmatprep.subr.mxu0 0.0
    %3657 = vmatpush1.msra.mxu0 0.0
    %3658 = vmatprep.subr.mxu0 0.0
    %3659 = vmatpush1.msra.mxu0 0.0
    %3660 = vmatprep.subr.mxu0 0.0
    %3661 = vmatpush1.msra.mxu0 0.0
    %3662 = vmatprep.subr.mxu0 0.0
    %3663 = vmatpush1.msra.mxu0 0.0
    %3664 = vmatprep.mubr.f32.mxu0 0.0
    %3665 = vmatmul.mubr.f32.gmra.mrb[0].mxu0 %v3586
    %v3666 = vpop.f32.mrb[0].mxu0
    %v3667 = vadd.f32 0.0, %v3666
    %v3668 = vpop.f32.mrb[0].mxu0
    %3669 = vmatprep.mubr.f32.mxu0 0.0
    %3670 = vmatmul.mubr.f32.gmra.mrb[0].mxu0 %v3589
    %v3671 = vpop.f32.mrb[0].mxu0
    %v3672 = vadd.f32 0.0, %v3671
    %v3673 = vpop.f32.mrb[0].mxu0
    %3674 = vmatprep.mubr.f32.mxu0 0.0
    %3675 = vmatmul.mubr.f32.gmra.mrb[0].mxu0 %v3592
    %v3676 = vpop.f32.mrb[0].mxu0
    %v3677 = vadd.f32 0.0, %v3676
    %v3678 = vpop.f32.mrb[0].mxu0
    %3679 = vmatprep.mubr.f32.mxu0 0.0
    %3680 = vmatmul.mubr.f32.gmra.mrb[0].mxu0 %v3595
    %v3681 = vpop.f32.mrb[0].mxu0
    %v3682 = vadd.f32 0.0, %v3681
    %v3683 = vpop.f32.mrb[0].mxu0
    %3684 = vdwg.mxu0
    %v3685 = vadd.f32 %v3465, %v3667
    %v3686 = vadd.f32 %v3470, %v3672
    %v3687 = vadd.f32 %v3475, %v3677
    %v3688 = vadd.f32 %v3480, %v3682
    %v3689 = vld [vmem:[%s16] sm:$0xff]
    %v3690 = vld [vmem:[%s16 + $0x8] sm:$0xff]
    %v3691 = vld [vmem:[%s16 + $0x10] sm:$0xff]
    %v3692 = vld [vmem:[%s16 + $0x18] sm:$0xff]
    %3694 = vset.pattern.permute.xlu0 0
    %3695 = vperm.xlu0 %3694, %v3689
    %v3696 = vpop.permute.xlu0 %3695
    %3699 = vset.pattern.permute.xlu0 0
    %3700 = vperm.xlu0 %3699, %v3690
    %v3701 = vpop.permute.xlu0 %3700
    %3704 = vset.pattern.permute.xlu0 0
    %3705 = vperm.xlu0 %3704, %v3691
    %v3706 = vpop.permute.xlu0 %3705
    %3709 = vset.pattern.permute.xlu0 0
    %3710 = vperm.xlu0 %3709, %v3692
    %v3711 = vpop.permute.xlu0 %3710
    %v3713 = vmul.f32 %v3685, %v3696
    %v3714 = vmul.f32 %v3686, %v3701
    %v3715 = vmul.f32 %v3687, %v3706
    %v3716 = vmul.f32 %v3688, %v3711
    %s3717 = scalar_lea.vmem %s16, 32
    %v3718 = vld [vmem:[%s3717] sm:$0xff]
    %v3719 = vld [vmem:[%s3717 + $0x8] sm:$0xff]
    %v3720 = vld [vmem:[%s3717 + $0x10] sm:$0xff]
    %v3721 = vld [vmem:[%s3717 + $0x18] sm:$0xff]
    %3723 = vset.pattern.permute.xlu0 0
    %3724 = vperm.xlu0 %3723, %v3718
    %v3725 = vpop.permute.xlu0 %3724
    %3728 = vset.pattern.permute.xlu0 0
    %3729 = vperm.xlu0 %3728, %v3719
    %v3730 = vpop.permute.xlu0 %3729
    %3733 = vset.pattern.permute.xlu0 0
    %3734 = vperm.xlu0 %3733, %v3720
    %v3735 = vpop.permute.xlu0 %3734
    %3738 = vset.pattern.permute.xlu0 0
    %3739 = vperm.xlu0 %3738, %v3721
    %v3740 = vpop.permute.xlu0 %3739
    %v3742 = vadd.f32 %v3713, %v3725
    %v3743 = vadd.f32 %v3714, %v3730
    %v3744 = vadd.f32 %v3715, %v3735
    %v3745 = vadd.f32 %v3716, %v3740
    %v3746 = vmax.f32 %v3742, 0.0
    %v3747 = vmax.f32 %v3743, 0.0
    %v3748 = vmax.f32 %v3744, 0.0
    %v3749 = vmax.f32 %v3745, 0.0
    %v3750 = vld [vmem:[%s17] sm:$0xff]
    %v3751 = vld [vmem:[%s17 + $0x8] sm:$0xff]
    %v3752 = vld [vmem:[%s17 + $0x10] sm:$0xff]
    %v3753 = vld [vmem:[%s17 + $0x18] sm:$0xff]
    %v3755 = vsel %vm274, %v3750, 0
    %v3758 = vsel %vm274, %v3751, 0
    %v3761 = vsel %vm274, %v3752, 0
    %v3764 = vsel %vm274, %v3753, 0
    %3766 = vmatprep.subr.mxu0 0.0
    %3767 = vmatpush1.msra.mxu0 %v3077
    %3768 = vmatprep.subr.mxu0 0.0
    %3769 = vmatpush1.msra.mxu0 %v3078
    %3770 = vmatprep.subr.mxu0 0.0
    %3771 = vmatpush1.msra.mxu0 %v3079
    %3772 = vmatprep.subr.mxu0 0.0
    %3773 = vmatpush1.msra.mxu0 0.0
    %3774 = vmatprep.subr.mxu0 0.0
    %3775 = vmatpush1.msra.mxu0 0.0
    %3776 = vmatprep.subr.mxu0 0.0
    %3777 = vmatpush1.msra.mxu0 0.0
    %3778 = vmatprep.subr.mxu0 0.0
    %3779 = vmatpush1.msra.mxu0 0.0
    %3780 = vmatprep.subr.mxu0 0.0
    %3781 = vmatpush1.msra.mxu0 0.0
    %3782 = vmatprep.subr.mxu0 0.0
    %3783 = vmatpush1.msra.mxu0 0.0
    %3784 = vmatprep.subr.mxu0 0.0
    %3785 = vmatpush1.msra.mxu0 0.0
    %3786 = vmatprep.subr.mxu0 0.0
    %3787 = vmatpush1.msra.mxu0 0.0
    %3788 = vmatprep.subr.mxu0 0.0
    %3789 = vmatpush1.msra.mxu0 0.0
    %3790 = vmatprep.subr.mxu0 0.0
    %3791 = vmatpush1.msra.mxu0 0.0
    %3792 = vmatprep.subr.mxu0 0.0
    %3793 = vmatpush1.msra.mxu0 0.0
    %3794 = vmatprep.subr.mxu0 0.0
    %3795 = vmatpush1.msra.mxu0 0.0
    %3796 = vmatprep.subr.mxu0 0.0
    %3797 = vmatpush1.msra.mxu0 0.0
    %3798 = vmatprep.subr.mxu0 0.0
    %3799 = vmatpush1.msra.mxu0 0.0
    %3800 = vmatprep.subr.mxu0 0.0
    %3801 = vmatpush1.msra.mxu0 0.0
    %3802 = vmatprep.subr.mxu0 0.0
    %3803 = vmatpush1.msra.mxu0 0.0
    %3804 = vmatprep.subr.mxu0 0.0
    %3805 = vmatpush1.msra.mxu0 0.0
    %3806 = vmatprep.subr.mxu0 0.0
    %3807 = vmatpush1.msra.mxu0 0.0
    %3808 = vmatprep.subr.mxu0 0.0
    %3809 = vmatpush1.msra.mxu0 0.0
    %3810 = vmatprep.subr.mxu0 0.0
    %3811 = vmatpush1.msra.mxu0 0.0
    %3812 = vmatprep.subr.mxu0 0.0
    %3813 = vmatpush1.msra.mxu0 0.0
    %3814 = vmatprep.subr.mxu0 0.0
    %3815 = vmatpush1.msra.mxu0 0.0
    %3816 = vmatprep.subr.mxu0 0.0
    %3817 = vmatpush1.msra.mxu0 0.0
    %3818 = vmatprep.subr.mxu0 0.0
    %3819 = vmatpush1.msra.mxu0 0.0
    %3820 = vmatprep.subr.mxu0 0.0
    %3821 = vmatpush1.msra.mxu0 0.0
    %3822 = vmatprep.subr.mxu0 0.0
    %3823 = vmatpush1.msra.mxu0 0.0
    %3824 = vmatprep.subr.mxu0 0.0
    %3825 = vmatpush1.msra.mxu0 0.0
    %3826 = vmatprep.subr.mxu0 0.0
    %3827 = vmatpush1.msra.mxu0 0.0
    %3828 = vmatprep.subr.mxu0 0.0
    %3829 = vmatpush1.msra.mxu0 0.0
    %3830 = vmatprep.mubr.f32.mxu0 0.0
    %3831 = vmatmul.mubr.f32.gmra.mrb[0].mxu0 %v3755
    %v3832 = vpop.f32.mrb[0].mxu0
    %v3833 = vadd.f32 0.0, %v3832
    %v3834 = vpop.f32.mrb[0].mxu0
    %3835 = vmatprep.mubr.f32.mxu0 0.0
    %3836 = vmatmul.mubr.f32.gmra.mrb[0].mxu0 %v3758
    %v3837 = vpop.f32.mrb[0].mxu0
    %v3838 = vadd.f32 0.0, %v3837
    %v3839 = vpop.f32.mrb[0].mxu0
    %3840 = vmatprep.mubr.f32.mxu0 0.0
    %3841 = vmatmul.mubr.f32.gmra.mrb[0].mxu0 %v3761
    %v3842 = vpop.f32.mrb[0].mxu0
    %v3843 = vadd.f32 0.0, %v3842
    %v3844 = vpop.f32.mrb[0].mxu0
    %3845 = vmatprep.mubr.f32.mxu0 0.0
    %3846 = vmatmul.mubr.f32.gmra.mrb[0].mxu0 %v3764
    %v3847 = vpop.f32.mrb[0].mxu0
    %v3848 = vadd.f32 0.0, %v3847
    %v3849 = vpop.f32.mrb[0].mxu0
    %3850 = vdwg.mxu0
    %v3852 = vsel %vm1587, %v3833, 0
    %v3855 = vsel %vm1587, %v3838, 0
    %v3858 = vsel %vm1587, %v3843, 0
    %v3861 = vsel %vm1587, %v3848, 0
    %3863 = vmatprep.subr.mxu0 0.0
    %3864 = vmatpush1.msra.mxu0 %v1034
    %3865 = vmatprep.subr.mxu0 0.0
    %3866 = vmatpush1.msra.mxu0 %v3598
    %3867 = vmatprep.subr.mxu0 0.0
    %3868 = vmatpush1.msra.mxu0 0.0
    %3869 = vmatprep.subr.mxu0 0.0
    %3870 = vmatpush1.msra.mxu0 0.0
    %3871 = vmatprep.subr.mxu0 0.0
    %3872 = vmatpush1.msra.mxu0 0.0
    %3873 = vmatprep.subr.mxu0 0.0
    %3874 = vmatpush1.msra.mxu0 0.0
    %3875 = vmatprep.subr.mxu0 0.0
    %3876 = vmatpush1.msra.mxu0 0.0
    %3877 = vmatprep.subr.mxu0 0.0
    %3878 = vmatpush1.msra.mxu0 0.0
    %3879 = vmatprep.subr.mxu0 0.0
    %3880 = vmatpush1.msra.mxu0 0.0
    %3881 = vmatprep.subr.mxu0 0.0
    %3882 = vmatpush1.msra.mxu0 0.0
    %3883 = vmatprep.subr.mxu0 0.0
    %3884 = vmatpush1.msra.mxu0 0.0
    %3885 = vmatprep.subr.mxu0 0.0
    %3886 = vmatpush1.msra.mxu0 0.0
    %3887 = vmatprep.subr.mxu0 0.0
    %3888 = vmatpush1.msra.mxu0 0.0
    %3889 = vmatprep.subr.mxu0 0.0
    %3890 = vmatpush1.msra.mxu0 0.0
    %3891 = vmatprep.subr.mxu0 0.0
    %3892 = vmatpush1.msra.mxu0 0.0
    %3893 = vmatprep.subr.mxu0 0.0
    %3894 = vmatpush1.msra.mxu0 0.0
    %3895 = vmatprep.subr.mxu0 0.0
    %3896 = vmatpush1.msra.mxu0 0.0
    %3897 = vmatprep.subr.mxu0 0.0
    %3898 = vmatpush1.msra.mxu0 0.0
    %3899 = vmatprep.subr.mxu0 0.0
    %3900 = vmatpush1.msra.mxu0 0.0
    %3901 = vmatprep.subr.mxu0 0.0
    %3902 = vmatpush1.msra.mxu0 0.0
    %3903 = vmatprep.subr.mxu0 0.0
    %3904 = vmatpush1.msra.mxu0 0.0
    %3905 = vmatprep.subr.mxu0 0.0
    %3906 = vmatpush1.msra.mxu0 0.0
    %3907 = vmatprep.subr.mxu0 0.0
    %3908 = vmatpush1.msra.mxu0 0.0
    %3909 = vmatprep.subr.mxu0 0.0
    %3910 = vmatpush1.msra.mxu0 0.0
    %3911 = vmatprep.subr.mxu0 0.0
    %3912 = vmatpush1.msra.mxu0 0.0
    %3913 = vmatprep.subr.mxu0 0.0
    %3914 = vmatpush1.msra.mxu0 0.0
    %3915 = vmatprep.subr.mxu0 0.0
    %3916 = vmatpush1.msra.mxu0 0.0
    %3917 = vmatprep.subr.mxu0 0.0
    %3918 = vmatpush1.msra.mxu0 0.0
    %3919 = vmatprep.subr.mxu0 0.0
    %3920 = vmatpush1.msra.mxu0 0.0
    %3921 = vmatprep.subr.mxu0 0.0
    %3922 = vmatpush1.msra.mxu0 0.0
    %3923 = vmatprep.subr.mxu0 0.0
    %3924 = vmatpush1.msra.mxu0 0.0
    %3925 = vmatprep.subr.mxu0 0.0
    %3926 = vmatpush1.msra.mxu0 0.0
    %3927 = vmatprep.mubr.f32.mxu0 0.0
    %3928 = vmatmul.mubr.f32.gmra.mrb[0].mxu0 %v3852
    %v3929 = vpop.f32.mrb[0].mxu0
    %v3930 = vadd.f32 0.0, %v3929
    %v3931 = vpop.f32.mrb[0].mxu0
    %3932 = vmatprep.mubr.f32.mxu0 0.0
    %3933 = vmatmul.mubr.f32.gmra.mrb[0].mxu0 %v3855
    %v3934 = vpop.f32.mrb[0].mxu0
    %v3935 = vadd.f32 0.0, %v3934
    %v3936 = vpop.f32.mrb[0].mxu0
    %3937 = vmatprep.mubr.f32.mxu0 0.0
    %3938 = vmatmul.mubr.f32.gmra.mrb[0].mxu0 %v3858
    %v3939 = vpop.f32.mrb[0].mxu0
    %v3940 = vadd.f32 0.0, %v3939
    %v3941 = vpop.f32.mrb[0].mxu0
    %3942 = vmatprep.mubr.f32.mxu0 0.0
    %3943 = vmatmul.mubr.f32.gmra.mrb[0].mxu0 %v3861
    %v3944 = vpop.f32.mrb[0].mxu0
    %v3945 = vadd.f32 0.0, %v3944
    %v3946 = vpop.f32.mrb[0].mxu0
    %3947 = vdwg.mxu0
    %v3948 = vld [vmem:[%s18] sm:$0xff]
    %v3949 = vld [vmem:[%s18 + $0x8] sm:$0xff]
    %v3950 = vld [vmem:[%s18 + $0x10] sm:$0xff]
    %v3951 = vld [vmem:[%s18 + $0x18] sm:$0xff]
    %3953 = vset.pattern.permute.xlu0 0
    %3954 = vperm.xlu0 %3953, %v3948
    %v3955 = vpop.permute.xlu0 %3954
    %3958 = vset.pattern.permute.xlu0 0
    %3959 = vperm.xlu0 %3958, %v3949
    %v3960 = vpop.permute.xlu0 %3959
    %3963 = vset.pattern.permute.xlu0 0
    %3964 = vperm.xlu0 %3963, %v3950
    %v3965 = vpop.permute.xlu0 %3964
    %3968 = vset.pattern.permute.xlu0 0
    %3969 = vperm.xlu0 %3968, %v3951
    %v3970 = vpop.permute.xlu0 %3969
    %v3972 = vmul.f32 %v3930, %v3955
    %v3973 = vmul.f32 %v3935, %v3960
    %v3974 = vmul.f32 %v3940, %v3965
    %v3975 = vmul.f32 %v3945, %v3970
    %s3976 = scalar_lea.vmem %s18, 32
    %v3977 = vld [vmem:[%s3976] sm:$0xff]
    %v3978 = vld [vmem:[%s3976 + $0x8] sm:$0xff]
    %v3979 = vld [vmem:[%s3976 + $0x10] sm:$0xff]
    %v3980 = vld [vmem:[%s3976 + $0x18] sm:$0xff]
    %3982 = vset.pattern.permute.xlu0 0
    %3983 = vperm.xlu0 %3982, %v3977
    %v3984 = vpop.permute.xlu0 %3983
    %3987 = vset.pattern.permute.xlu0 0
    %3988 = vperm.xlu0 %3987, %v3978
    %v3989 = vpop.permute.xlu0 %3988
    %3992 = vset.pattern.permute.xlu0 0
    %3993 = vperm.xlu0 %3992, %v3979
    %v3994 = vpop.permute.xlu0 %3993
    %3997 = vset.pattern.permute.xlu0 0
    %3998 = vperm.xlu0 %3997, %v3980
    %v3999 = vpop.permute.xlu0 %3998
    %v4001 = vadd.f32 %v3972, %v3984
    %v4002 = vadd.f32 %v3973, %v3989
    %v4003 = vadd.f32 %v3974, %v3994
    %v4004 = vadd.f32 %v3975, %v3999
    %v4005 = vmax.f32 %v4001, 0.0
    %v4006 = vmax.f32 %v4002, 0.0
    %v4007 = vmax.f32 %v4003, 0.0
    %v4008 = vmax.f32 %v4004, 0.0
    %s4009 = scalar_lea.vmem %s19, 32
    %v4010 = vld [vmem:[%s4009] sm:$0xff]
    %v4011 = vld [vmem:[%s4009 + $0x8] sm:$0xff]
    %v4012 = vld [vmem:[%s4009 + $0x10] sm:$0xff]
    %v4013 = vld [vmem:[%s4009 + $0x18] sm:$0xff]
    %vm4014 = vcmask 261120
    %v4016 = vsel %vm4014, %v4010, 0
    %v4019 = vsel %vm4014, %v4011, 0
    %v4022 = vsel %vm4014, %v4012, 0
    %v4025 = vsel %vm4014, %v4013, 0
    %4027 = vmatprep.subr.mxu0 0.0
    %4028 = vmatpush1.msra.mxu0 %v3746
    %4029 = vmatprep.subr.mxu0 0.0
    %4030 = vmatpush1.msra.mxu0 %v3747
    %4031 = vmatprep.subr.mxu0 0.0
    %4032 = vmatpush1.msra.mxu0 %v3748
    %4033 = vmatprep.subr.mxu0 0.0
    %4034 = vmatpush1.msra.mxu0 %v3749
    %4035 = vmatprep.subr.mxu0 0.0
    %4036 = vmatpush1.msra.mxu0 0.0
    %4037 = vmatprep.subr.mxu0 0.0
    %4038 = vmatpush1.msra.mxu0 0.0
    %4039 = vmatprep.subr.mxu0 0.0
    %4040 = vmatpush1.msra.mxu0 0.0
    %4041 = vmatprep.subr.mxu0 0.0
    %4042 = vmatpush1.msra.mxu0 0.0
    %4043 = vmatprep.subr.mxu0 0.0
    %4044 = vmatpush1.msra.mxu0 0.0
    %4045 = vmatprep.subr.mxu0 0.0
    %4046 = vmatpush1.msra.mxu0 0.0
    %4047 = vmatprep.subr.mxu0 0.0
    %4048 = vmatpush1.msra.mxu0 0.0
    %4049 = vmatprep.subr.mxu0 0.0
    %4050 = vmatpush1.msra.mxu0 0.0
    %4051 = vmatprep.subr.mxu0 0.0
    %4052 = vmatpush1.msra.mxu0 0.0
    %4053 = vmatprep.subr.mxu0 0.0
    %4054 = vmatpush1.msra.mxu0 0.0
    %4055 = vmatprep.subr.mxu0 0.0
    %4056 = vmatpush1.msra.mxu0 0.0
    %4057 = vmatprep.subr.mxu0 0.0
    %4058 = vmatpush1.msra.mxu0 0.0
    %4059 = vmatprep.subr.mxu0 0.0
    %4060 = vmatpush1.msra.mxu0 0.0
    %4061 = vmatprep.subr.mxu0 0.0
    %4062 = vmatpush1.msra.mxu0 0.0
    %4063 = vmatprep.subr.mxu0 0.0
    %4064 = vmatpush1.msra.mxu0 0.0
    %4065 = vmatprep.subr.mxu0 0.0
    %4066 = vmatpush1.msra.mxu0 0.0
    %4067 = vmatprep.subr.mxu0 0.0
    %4068 = vmatpush1.msra.mxu0 0.0
    %4069 = vmatprep.subr.mxu0 0.0
    %4070 = vmatpush1.msra.mxu0 0.0
    %4071 = vmatprep.subr.mxu0 0.0
    %4072 = vmatpush1.msra.mxu0 0.0
    %4073 = vmatprep.subr.mxu0 0.0
    %4074 = vmatpush1.msra.mxu0 0.0
    %4075 = vmatprep.subr.mxu0 0.0
    %4076 = vmatpush1.msra.mxu0 0.0
    %4077 = vmatprep.subr.mxu0 0.0
    %4078 = vmatpush1.msra.mxu0 0.0
    %4079 = vmatprep.subr.mxu0 0.0
    %4080 = vmatpush1.msra.mxu0 0.0
    %4081 = vmatprep.subr.mxu0 0.0
    %4082 = vmatpush1.msra.mxu0 0.0
    %4083 = vmatprep.subr.mxu0 0.0
    %4084 = vmatpush1.msra.mxu0 0.0
    %4085 = vmatprep.subr.mxu0 0.0
    %4086 = vmatpush1.msra.mxu0 0.0
    %4087 = vmatprep.subr.mxu0 0.0
    %4088 = vmatpush1.msra.mxu0 0.0
    %4089 = vmatprep.subr.mxu0 0.0
    %4090 = vmatpush1.msra.mxu0 0.0
    %4091 = vmatprep.mubr.f32.mxu0 0.0
    %4092 = vmatmul.mubr.f32.gmra.mrb[0].mxu0 %v4016
    %v4093 = vpop.f32.mrb[0].mxu0
    %v4094 = vadd.f32 0.0, %v4093
    %v4095 = vpop.f32.mrb[0].mxu0
    %4096 = vmatprep.mubr.f32.mxu0 0.0
    %4097 = vmatmul.mubr.f32.gmra.mrb[0].mxu0 %v4019
    %v4098 = vpop.f32.mrb[0].mxu0
    %v4099 = vadd.f32 0.0, %v4098
    %v4100 = vpop.f32.mrb[0].mxu0
    %4101 = vmatprep.mubr.f32.mxu0 0.0
    %4102 = vmatmul.mubr.f32.gmra.mrb[0].mxu0 %v4022
    %v4103 = vpop.f32.mrb[0].mxu0
    %v4104 = vadd.f32 0.0, %v4103
    %v4105 = vpop.f32.mrb[0].mxu0
    %4106 = vmatprep.mubr.f32.mxu0 0.0
    %4107 = vmatmul.mubr.f32.gmra.mrb[0].mxu0 %v4025
    %v4108 = vpop.f32.mrb[0].mxu0
    %v4109 = vadd.f32 0.0, %v4108
    %v4110 = vpop.f32.mrb[0].mxu0
    %4111 = vdwg.mxu0
    %s4112 = scalar_lea.vmem %s19, 64
    %v4113 = vld [vmem:[%s4112] sm:$0xff]
    %v4114 = vld [vmem:[%s4112 + $0x8] sm:$0xff]
    %v4115 = vld [vmem:[%s4112 + $0x10] sm:$0xff]
    %v4116 = vld [vmem:[%s4112 + $0x18] sm:$0xff]
    %v4118 = vsel %vm4014, %v4113, 0
    %v4121 = vsel %vm4014, %v4114, 0
    %v4124 = vsel %vm4014, %v4115, 0
    %v4127 = vsel %vm4014, %v4116, 0
    %4129 = vmatprep.subr.mxu0 0.0
    %4130 = vmatpush1.msra.mxu0 %v3746
    %4131 = vmatprep.subr.mxu0 0.0
    %4132 = vmatpush1.msra.mxu0 %v3747
    %4133 = vmatprep.subr.mxu0 0.0
    %4134 = vmatpush1.msra.mxu0 %v3748
    %4135 = vmatprep.subr.mxu0 0.0
    %4136 = vmatpush1.msra.mxu0 %v3749
    %4137 = vmatprep.subr.mxu0 0.0
    %4138 = vmatpush1.msra.mxu0 0.0
    %4139 = vmatprep.subr.mxu0 0.0
    %4140 = vmatpush1.msra.mxu0 0.0
    %4141 = vmatprep.subr.mxu0 0.0
    %4142 = vmatpush1.msra.mxu0 0.0
    %4143 = vmatprep.subr.mxu0 0.0
    %4144 = vmatpush1.msra.mxu0 0.0
    %4145 = vmatprep.subr.mxu0 0.0
    %4146 = vmatpush1.msra.mxu0 0.0
    %4147 = vmatprep.subr.mxu0 0.0
    %4148 = vmatpush1.msra.mxu0 0.0
    %4149 = vmatprep.subr.mxu0 0.0
    %4150 = vmatpush1.msra.mxu0 0.0
    %4151 = vmatprep.subr.mxu0 0.0
    %4152 = vmatpush1.msra.mxu0 0.0
    %4153 = vmatprep.subr.mxu0 0.0
    %4154 = vmatpush1.msra.mxu0 0.0
    %4155 = vmatprep.subr.mxu0 0.0
    %4156 = vmatpush1.msra.mxu0 0.0
    %4157 = vmatprep.subr.mxu0 0.0
    %4158 = vmatpush1.msra.mxu0 0.0
    %4159 = vmatprep.subr.mxu0 0.0
    %4160 = vmatpush1.msra.mxu0 0.0
    %4161 = vmatprep.subr.mxu0 0.0
    %4162 = vmatpush1.msra.mxu0 0.0
    %4163 = vmatprep.subr.mxu0 0.0
    %4164 = vmatpush1.msra.mxu0 0.0
    %4165 = vmatprep.subr.mxu0 0.0
    %4166 = vmatpush1.msra.mxu0 0.0
    %4167 = vmatprep.subr.mxu0 0.0
    %4168 = vmatpush1.msra.mxu0 0.0
    %4169 = vmatprep.subr.mxu0 0.0
    %4170 = vmatpush1.msra.mxu0 0.0
    %4171 = vmatprep.subr.mxu0 0.0
    %4172 = vmatpush1.msra.mxu0 0.0
    %4173 = vmatprep.subr.mxu0 0.0
    %4174 = vmatpush1.msra.mxu0 0.0
    %4175 = vmatprep.subr.mxu0 0.0
    %4176 = vmatpush1.msra.mxu0 0.0
    %4177 = vmatprep.subr.mxu0 0.0
    %4178 = vmatpush1.msra.mxu0 0.0
    %4179 = vmatprep.subr.mxu0 0.0
    %4180 = vmatpush1.msra.mxu0 0.0
    %4181 = vmatprep.subr.mxu0 0.0
    %4182 = vmatpush1.msra.mxu0 0.0
    %4183 = vmatprep.subr.mxu0 0.0
    %4184 = vmatpush1.msra.mxu0 0.0
    %4185 = vmatprep.subr.mxu0 0.0
    %4186 = vmatpush1.msra.mxu0 0.0
    %4187 = vmatprep.subr.mxu0 0.0
    %4188 = vmatpush1.msra.mxu0 0.0
    %4189 = vmatprep.subr.mxu0 0.0
    %4190 = vmatpush1.msra.mxu0 0.0
    %4191 = vmatprep.subr.mxu0 0.0
    %4192 = vmatpush1.msra.mxu0 0.0
    %4193 = vmatprep.mubr.f32.mxu0 0.0
    %4194 = vmatmul.mubr.f32.gmra.mrb[0].mxu0 %v4118
    %v4195 = vpop.f32.mrb[0].mxu0
    %v4196 = vadd.f32 0.0, %v4195
    %v4197 = vpop.f32.mrb[0].mxu0
    %4198 = vmatprep.mubr.f32.mxu0 0.0
    %4199 = vmatmul.mubr.f32.gmra.mrb[0].mxu0 %v4121
    %v4200 = vpop.f32.mrb[0].mxu0
    %v4201 = vadd.f32 0.0, %v4200
    %v4202 = vpop.f32.mrb[0].mxu0
    %4203 = vmatprep.mubr.f32.mxu0 0.0
    %4204 = vmatmul.mubr.f32.gmra.mrb[0].mxu0 %v4124
    %v4205 = vpop.f32.mrb[0].mxu0
    %v4206 = vadd.f32 0.0, %v4205
    %v4207 = vpop.f32.mrb[0].mxu0
    %4208 = vmatprep.mubr.f32.mxu0 0.0
    %4209 = vmatmul.mubr.f32.gmra.mrb[0].mxu0 %v4127
    %v4210 = vpop.f32.mrb[0].mxu0
    %v4211 = vadd.f32 0.0, %v4210
    %v4212 = vpop.f32.mrb[0].mxu0
    %4213 = vdwg.mxu0
    %vm4214 = vcmask 48128
    %v4216 = vsel %vm4214, %v4094, 0
    %v4219 = vsel %vm4214, %v4099, 0
    %v4222 = vsel %vm4214, %v4104, 0
    %v4225 = vsel %vm4214, %v4109, 0
    %vm4227 = vcmask 1045504
    %v4229 = vsel %vm4227, %v2016, 0
    %4231 = vmatprep.subr.mxu0 0.0
    %4232 = vmatpush1.msra.mxu0 %v4229
    %4233 = vmatprep.subr.mxu0 0.0
    %4234 = vmatpush1.msra.mxu0 0.0
    %4235 = vmatprep.subr.mxu0 0.0
    %4236 = vmatpush1.msra.mxu0 0.0
    %4237 = vmatprep.subr.mxu0 0.0
    %4238 = vmatpush1.msra.mxu0 0.0
    %4239 = vmatprep.subr.mxu0 0.0
    %4240 = vmatpush1.msra.mxu0 0.0
    %4241 = vmatprep.subr.mxu0 0.0
    %4242 = vmatpush1.msra.mxu0 0.0
    %4243 = vmatprep.subr.mxu0 0.0
    %4244 = vmatpush1.msra.mxu0 0.0
    %4245 = vmatprep.subr.mxu0 0.0
    %4246 = vmatpush1.msra.mxu0 0.0
    %4247 = vmatprep.subr.mxu0 0.0
    %4248 = vmatpush1.msra.mxu0 0.0
    %4249 = vmatprep.subr.mxu0 0.0
    %4250 = vmatpush1.msra.mxu0 0.0
    %4251 = vmatprep.subr.mxu0 0.0
    %4252 = vmatpush1.msra.mxu0 0.0
    %4253 = vmatprep.subr.mxu0 0.0
    %4254 = vmatpush1.msra.mxu0 0.0
    %4255 = vmatprep.subr.mxu0 0.0
    %4256 = vmatpush1.msra.mxu0 0.0
    %4257 = vmatprep.subr.mxu0 0.0
    %4258 = vmatpush1.msra.mxu0 0.0
    %4259 = vmatprep.subr.mxu0 0.0
    %4260 = vmatpush1.msra.mxu0 0.0
    %4261 = vmatprep.subr.mxu0 0.0
    %4262 = vmatpush1.msra.mxu0 0.0
    %4263 = vmatprep.subr.mxu0 0.0
    %4264 = vmatpush1.msra.mxu0 0.0
    %4265 = vmatprep.subr.mxu0 0.0
    %4266 = vmatpush1.msra.mxu0 0.0
    %4267 = vmatprep.subr.mxu0 0.0
    %4268 = vmatpush1.msra.mxu0 0.0
    %4269 = vmatprep.subr.mxu0 0.0
    %4270 = vmatpush1.msra.mxu0 0.0
    %4271 = vmatprep.subr.mxu0 0.0
    %4272 = vmatpush1.msra.mxu0 0.0
    %4273 = vmatprep.subr.mxu0 0.0
    %4274 = vmatpush1.msra.mxu0 0.0
    %4275 = vmatprep.subr.mxu0 0.0
    %4276 = vmatpush1.msra.mxu0 0.0
    %4277 = vmatprep.subr.mxu0 0.0
    %4278 = vmatpush1.msra.mxu0 0.0
    %4279 = vmatprep.subr.mxu0 0.0
    %4280 = vmatpush1.msra.mxu0 0.0
    %4281 = vmatprep.subr.mxu0 0.0
    %4282 = vmatpush1.msra.mxu0 0.0
    %4283 = vmatprep.subr.mxu0 0.0
    %4284 = vmatpush1.msra.mxu0 0.0
    %4285 = vmatprep.subr.mxu0 0.0
    %4286 = vmatpush1.msra.mxu0 0.0
    %4287 = vmatprep.subr.mxu0 0.0
    %4288 = vmatpush1.msra.mxu0 0.0
    %4289 = vmatprep.subr.mxu0 0.0
    %4290 = vmatpush1.msra.mxu0 0.0
    %4291 = vmatprep.subr.mxu0 0.0
    %4292 = vmatpush1.msra.mxu0 0.0
    %4293 = vmatprep.subr.mxu0 0.0
    %4294 = vmatpush1.msra.mxu0 0.0
    %4295 = vmatprep.mubr.f32.mxu0 0.0
    %4296 = vmatmul.mubr.f32.gmra.mrb[0].mxu0 %v4216
    %v4297 = vpop.f32.mrb[0].mxu0
    %v4298 = vadd.f32 %v4196, %v4297
    %v4299 = vpop.f32.mrb[0].mxu0
    %4300 = vmatprep.mubr.f32.mxu0 0.0
    %4301 = vmatmul.mubr.f32.gmra.mrb[0].mxu0 %v4219
    %v4302 = vpop.f32.mrb[0].mxu0
    %v4303 = vadd.f32 %v4201, %v4302
    %v4304 = vpop.f32.mrb[0].mxu0
    %4305 = vmatprep.mubr.f32.mxu0 0.0
    %4306 = vmatmul.mubr.f32.gmra.mrb[0].mxu0 %v4222
    %v4307 = vpop.f32.mrb[0].mxu0
    %v4308 = vadd.f32 %v4206, %v4307
    %v4309 = vpop.f32.mrb[0].mxu0
    %4310 = vmatprep.mubr.f32.mxu0 0.0
    %4311 = vmatmul.mubr.f32.gmra.mrb[0].mxu0 %v4225
    %v4312 = vpop.f32.mrb[0].mxu0
    %v4313 = vadd.f32 %v4211, %v4312
    %v4314 = vpop.f32.mrb[0].mxu0
    %4315 = vdwg.mxu0
    %v4316 = vld [vmem:[%s20] sm:$0xff]
    %v4317 = vld [vmem:[%s20 + $0x8] sm:$0xff]
    %v4318 = vld [vmem:[%s20 + $0x10] sm:$0xff]
    %v4319 = vld [vmem:[%s20 + $0x18] sm:$0xff]
    %4321 = vset.pattern.permute.xlu0 0
    %4322 = vperm.xlu0 %4321, %v4316
    %v4323 = vpop.permute.xlu0 %4322
    %4326 = vset.pattern.permute.xlu0 0
    %4327 = vperm.xlu0 %4326, %v4317
    %v4328 = vpop.permute.xlu0 %4327
    %4331 = vset.pattern.permute.xlu0 0
    %4332 = vperm.xlu0 %4331, %v4318
    %v4333 = vpop.permute.xlu0 %4332
    %4336 = vset.pattern.permute.xlu0 0
    %4337 = vperm.xlu0 %4336, %v4319
    %v4338 = vpop.permute.xlu0 %4337
    %v4340 = vmul.f32 %v4298, %v4323
    %v4341 = vmul.f32 %v4303, %v4328
    %v4342 = vmul.f32 %v4308, %v4333
    %v4343 = vmul.f32 %v4313, %v4338
    %s4344 = scalar_lea.vmem %s20, 32
    %v4345 = vld [vmem:[%s4344] sm:$0xff]
    %v4346 = vld [vmem:[%s4344 + $0x8] sm:$0xff]
    %v4347 = vld [vmem:[%s4344 + $0x10] sm:$0xff]
    %v4348 = vld [vmem:[%s4344 + $0x18] sm:$0xff]
    %4350 = vset.pattern.permute.xlu0 0
    %4351 = vperm.xlu0 %4350, %v4345
    %v4352 = vpop.permute.xlu0 %4351
    %4355 = vset.pattern.permute.xlu0 0
    %4356 = vperm.xlu0 %4355, %v4346
    %v4357 = vpop.permute.xlu0 %4356
    %4360 = vset.pattern.permute.xlu0 0
    %4361 = vperm.xlu0 %4360, %v4347
    %v4362 = vpop.permute.xlu0 %4361
    %4365 = vset.pattern.permute.xlu0 0
    %4366 = vperm.xlu0 %4365, %v4348
    %v4367 = vpop.permute.xlu0 %4366
    %v4369 = vadd.f32 %v4340, %v4352
    %v4370 = vadd.f32 %v4341, %v4357
    %v4371 = vadd.f32 %v4342, %v4362
    %v4372 = vadd.f32 %v4343, %v4367
    %v4373 = vadd.f32 %v4369, %v4005
    %v4374 = vadd.f32 %v4370, %v4006
    %v4375 = vadd.f32 %v4371, %v4007
    %v4376 = vadd.f32 %v4372, %v4008
    %v4377 = vmax.f32 %v4373, 0.0
    %v4378 = vmax.f32 %v4374, 0.0
    %v4379 = vmax.f32 %v4375, 0.0
    %v4380 = vmax.f32 %v4376, 0.0
    %v4381 = vadd.s32 %v645, 1
    %vm4382 = vcmp.eq.s32.totalorder %v161, %v4381
    %vm4383 = vmor %vm1028, %vm4382
    %v4384 = vsel %vm4383, 0.5, 0.0
    %v4386 = vsel %vm4214, %v4377, 0
    %v4389 = vsel %vm4214, %v4378, 0
    %v4392 = vsel %vm4214, %v4379, 0
    %v4395 = vsel %vm4214, %v4380, 0
    %v4398 = vsel %vm4227, %v4384, 0
    %4400 = vmatprep.subr.mxu0 0.0
    %4401 = vmatpush1.msra.mxu0 %v4398
    %4402 = vmatprep.subr.mxu0 0.0
    %4403 = vmatpush1.msra.mxu0 0.0
    %4404 = vmatprep.subr.mxu0 0.0
    %4405 = vmatpush1.msra.mxu0 0.0
    %4406 = vmatprep.subr.mxu0 0.0
    %4407 = vmatpush1.msra.mxu0 0.0
    %4408 = vmatprep.subr.mxu0 0.0
    %4409 = vmatpush1.msra.mxu0 0.0
    %4410 = vmatprep.subr.mxu0 0.0
    %4411 = vmatpush1.msra.mxu0 0.0
    %4412 = vmatprep.subr.mxu0 0.0
    %4413 = vmatpush1.msra.mxu0 0.0
    %4414 = vmatprep.subr.mxu0 0.0
    %4415 = vmatpush1.msra.mxu0 0.0
    %4416 = vmatprep.subr.mxu0 0.0
    %4417 = vmatpush1.msra.mxu0 0.0
    %4418 = vmatprep.subr.mxu0 0.0
    %4419 = vmatpush1.msra.mxu0 0.0
    %4420 = vmatprep.subr.mxu0 0.0
    %4421 = vmatpush1.msra.mxu0 0.0
    %4422 = vmatprep.subr.mxu0 0.0
    %4423 = vmatpush1.msra.mxu0 0.0
    %4424 = vmatprep.subr.mxu0 0.0
    %4425 = vmatpush1.msra.mxu0 0.0
    %4426 = vmatprep.subr.mxu0 0.0
    %4427 = vmatpush1.msra.mxu0 0.0
    %4428 = vmatprep.subr.mxu0 0.0
    %4429 = vmatpush1.msra.mxu0 0.0
    %4430 = vmatprep.subr.mxu0 0.0
    %4431 = vmatpush1.msra.mxu0 0.0
    %4432 = vmatprep.subr.mxu0 0.0
    %4433 = vmatpush1.msra.mxu0 0.0
    %4434 = vmatprep.subr.mxu0 0.0
    %4435 = vmatpush1.msra.mxu0 0.0
    %4436 = vmatprep.subr.mxu0 0.0
    %4437 = vmatpush1.msra.mxu0 0.0
    %4438 = vmatprep.subr.mxu0 0.0
    %4439 = vmatpush1.msra.mxu0 0.0
    %4440 = vmatprep.subr.mxu0 0.0
    %4441 = vmatpush1.msra.mxu0 0.0
    %4442 = vmatprep.subr.mxu0 0.0
    %4443 = vmatpush1.msra.mxu0 0.0
    %4444 = vmatprep.subr.mxu0 0.0
    %4445 = vmatpush1.msra.mxu0 0.0
    %4446 = vmatprep.subr.mxu0 0.0
    %4447 = vmatpush1.msra.mxu0 0.0
    %4448 = vmatprep.subr.mxu0 0.0
    %4449 = vmatpush1.msra.mxu0 0.0
    %4450 = vmatprep.subr.mxu0 0.0
    %4451 = vmatpush1.msra.mxu0 0.0
    %4452 = vmatprep.subr.mxu0 0.0
    %4453 = vmatpush1.msra.mxu0 0.0
    %4454 = vmatprep.subr.mxu0 0.0
    %4455 = vmatpush1.msra.mxu0 0.0
    %4456 = vmatprep.subr.mxu0 0.0
    %4457 = vmatpush1.msra.mxu0 0.0
    %4458 = vmatprep.subr.mxu0 0.0
    %4459 = vmatpush1.msra.mxu0 0.0
    %4460 = vmatprep.subr.mxu0 0.0
    %4461 = vmatpush1.msra.mxu0 0.0
    %4462 = vmatprep.subr.mxu0 0.0
    %4463 = vmatpush1.msra.mxu0 0.0
    %4464 = vmatprep.mubr.f32.mxu0 0.0
    %4465 = vmatmul.mubr.f32.gmra.mrb[0].mxu0 %v4386
    %v4466 = vpop.f32.mrb[0].mxu0
    %v4467 = vadd.f32 0.0, %v4466
    %v4468 = vpop.f32.mrb[0].mxu0
    %4469 = vmatprep.mubr.f32.mxu0 0.0
    %4470 = vmatmul.mubr.f32.gmra.mrb[0].mxu0 %v4389
    %v4471 = vpop.f32.mrb[0].mxu0
    %v4472 = vadd.f32 0.0, %v4471
    %v4473 = vpop.f32.mrb[0].mxu0
    %4474 = vmatprep.mubr.f32.mxu0 0.0
    %4475 = vmatmul.mubr.f32.gmra.mrb[0].mxu0 %v4392
    %v4476 = vpop.f32.mrb[0].mxu0
    %v4477 = vadd.f32 0.0, %v4476
    %v4478 = vpop.f32.mrb[0].mxu0
    %4479 = vmatprep.mubr.f32.mxu0 0.0
    %4480 = vmatmul.mubr.f32.gmra.mrb[0].mxu0 %v4395
    %v4481 = vpop.f32.mrb[0].mxu0
    %v4482 = vadd.f32 0.0, %v4481
    %v4483 = vpop.f32.mrb[0].mxu0
    %4484 = vdwg.mxu0
    %v4485 = vld [vmem:[%s22] sm:$0xff]
    %v4486 = vld [vmem:[%s22 + $0x8] sm:$0xff]
    %v4487 = vld [vmem:[%s22 + $0x10] sm:$0xf]
    %v4488 = vld [vmem:[%s21] sm:$0xff]
    %v4489 = vld [vmem:[%s21 + $0x8] sm:$0xff]
    %v4490 = vld [vmem:[%s21 + $0x10] sm:$0xf]
    %v4492 = vsel %vm4014, %v4488, 0
    %v4495 = vsel %vm4014, %v4489, 0
    %v4498 = vsel %vm4014, %v4490, 0
    %4500 = vmatprep.subr.mxu0 0.0
    %4501 = vmatpush1.msra.mxu0 %v4467
    %4502 = vmatprep.subr.mxu0 0.0
    %4503 = vmatpush1.msra.mxu0 %v4472
    %4504 = vmatprep.subr.mxu0 0.0
    %4505 = vmatpush1.msra.mxu0 %v4477
    %4506 = vmatprep.subr.mxu0 0.0
    %4507 = vmatpush1.msra.mxu0 %v4482
    %4508 = vmatprep.subr.mxu0 0.0
    %4509 = vmatpush1.msra.mxu0 0.0
    %4510 = vmatprep.subr.mxu0 0.0
    %4511 = vmatpush1.msra.mxu0 0.0
    %4512 = vmatprep.subr.mxu0 0.0
    %4513 = vmatpush1.msra.mxu0 0.0
    %4514 = vmatprep.subr.mxu0 0.0
    %4515 = vmatpush1.msra.mxu0 0.0
    %4516 = vmatprep.subr.mxu0 0.0
    %4517 = vmatpush1.msra.mxu0 0.0
    %4518 = vmatprep.subr.mxu0 0.0
    %4519 = vmatpush1.msra.mxu0 0.0
    %4520 = vmatprep.subr.mxu0 0.0
    %4521 = vmatpush1.msra.mxu0 0.0
    %4522 = vmatprep.subr.mxu0 0.0
    %4523 = vmatpush1.msra.mxu0 0.0
    %4524 = vmatprep.subr.mxu0 0.0
    %4525 = vmatpush1.msra.mxu0 0.0
    %4526 = vmatprep.subr.mxu0 0.0
    %4527 = vmatpush1.msra.mxu0 0.0
    %4528 = vmatprep.subr.mxu0 0.0
    %4529 = vmatpush1.msra.mxu0 0.0
    %4530 = vmatprep.subr.mxu0 0.0
    %4531 = vmatpush1.msra.mxu0 0.0
    %4532 = vmatprep.subr.mxu0 0.0
    %4533 = vmatpush1.msra.mxu0 0.0
    %4534 = vmatprep.subr.mxu0 0.0
    %4535 = vmatpush1.msra.mxu0 0.0
    %4536 = vmatprep.subr.mxu0 0.0
    %4537 = vmatpush1.msra.mxu0 0.0
    %4538 = vmatprep.subr.mxu0 0.0
    %4539 = vmatpush1.msra.mxu0 0.0
    %4540 = vmatprep.subr.mxu0 0.0
    %4541 = vmatpush1.msra.mxu0 0.0
    %4542 = vmatprep.subr.mxu0 0.0
    %4543 = vmatpush1.msra.mxu0 0.0
    %4544 = vmatprep.subr.mxu0 0.0
    %4545 = vmatpush1.msra.mxu0 0.0
    %4546 = vmatprep.subr.mxu0 0.0
    %4547 = vmatpush1.msra.mxu0 0.0
    %4548 = vmatprep.subr.mxu0 0.0
    %4549 = vmatpush1.msra.mxu0 0.0
    %4550 = vmatprep.subr.mxu0 0.0
    %4551 = vmatpush1.msra.mxu0 0.0
    %4552 = vmatprep.subr.mxu0 0.0
    %4553 = vmatpush1.msra.mxu0 0.0
    %4554 = vmatprep.subr.mxu0 0.0
    %4555 = vmatpush1.msra.mxu0 0.0
    %4556 = vmatprep.subr.mxu0 0.0
    %4557 = vmatpush1.msra.mxu0 0.0
    %4558 = vmatprep.subr.mxu0 0.0
    %4559 = vmatpush1.msra.mxu0 0.0
    %4560 = vmatprep.subr.mxu0 0.0
    %4561 = vmatpush1.msra.mxu0 0.0
    %4562 = vmatprep.subr.mxu0 0.0
    %4563 = vmatpush1.msra.mxu0 0.0
    %4564 = vmatprep.mubr.f32.mxu0 0.0
    %4565 = vmatmul.mubr.f32.gmra.mrb[0].mxu0 %v4492
    %v4566 = vpop.f32.mrb[0].mxu0
    %v4567 = vadd.f32 0.0, %v4566
    %v4568 = vpop.f32.mrb[0].mxu0
    %4569 = vmatprep.mubr.f32.mxu0 0.0
    %4570 = vmatmul.mubr.f32.gmra.mrb[0].mxu0 %v4495
    %v4571 = vpop.f32.mrb[0].mxu0
    %v4572 = vadd.f32 0.0, %v4571
    %v4573 = vpop.f32.mrb[0].mxu0
    %4574 = vmatprep.mubr.f32.mxu0 0.0
    %4575 = vmatmul.mubr.f32.gmra.mrb[0].mxu0 %v4498
    %v4576 = vpop.f32.mrb[0].mxu0
    %v4577 = vadd.f32 0.0, %v4576
    %v4578 = vpop.f32.mrb[0].mxu0
    %4579 = vdwg.mxu0
    %v4580 = vadd.f32 %v4485, %v4567
    %v4581 = vadd.f32 %v4486, %v4572
    %v4582 = vadd.f32 %v4487, %v4577
    %s4583 = scalar_lea.vmem %s21, 24
    %v4584 = vld [vmem:[%s4583] sm:$0xff]
    %v4585 = vld [vmem:[%s4583 + $0x8] sm:$0xff]
    %v4586 = vld [vmem:[%s4583 + $0x10] sm:$0xf]
    %4591 = vrot.lane.b32.xlu0 %v4467, 127
    %v4592 = vpop.permute.xlu0 %4591
    %4593 = vrot.lane.b32.xlu0 %v4472, 127
    %v4594 = vpop.permute.xlu0 %4593
    %4595 = vrot.lane.b32.xlu0 %v4477, 127
    %v4596 = vpop.permute.xlu0 %4595
    %4597 = vrot.lane.b32.xlu0 %v4482, 127
    %v4598 = vpop.permute.xlu0 %4597
    %v4604 = vsel %vm4014, %v4584, 0
    %v4607 = vsel %vm4014, %v4585, 0
    %v4610 = vsel %vm4014, %v4586, 0
    %4612 = vmatprep.subr.mxu0 0.0
    %4613 = vmatpush1.msra.mxu0 %v4592
    %4614 = vmatprep.subr.mxu0 0.0
    %4615 = vmatpush1.msra.mxu0 %v4594
    %4616 = vmatprep.subr.mxu0 0.0
    %4617 = vmatpush1.msra.mxu0 %v4596
    %4618 = vmatprep.subr.mxu0 0.0
    %4619 = vmatpush1.msra.mxu0 %v4598
    %4620 = vmatprep.subr.mxu0 0.0
    %4621 = vmatpush1.msra.mxu0 0.0
    %4622 = vmatprep.subr.mxu0 0.0
    %4623 = vmatpush1.msra.mxu0 0.0
    %4624 = vmatprep.subr.mxu0 0.0
    %4625 = vmatpush1.msra.mxu0 0.0
    %4626 = vmatprep.subr.mxu0 0.0
    %4627 = vmatpush1.msra.mxu0 0.0
    %4628 = vmatprep.subr.mxu0 0.0
    %4629 = vmatpush1.msra.mxu0 0.0
    %4630 = vmatprep.subr.mxu0 0.0
    %4631 = vmatpush1.msra.mxu0 0.0
    %4632 = vmatprep.subr.mxu0 0.0
    %4633 = vmatpush1.msra.mxu0 0.0
    %4634 = vmatprep.subr.mxu0 0.0
    %4635 = vmatpush1.msra.mxu0 0.0
    %4636 = vmatprep.subr.mxu0 0.0
    %4637 = vmatpush1.msra.mxu0 0.0
    %4638 = vmatprep.subr.mxu0 0.0
    %4639 = vmatpush1.msra.mxu0 0.0
    %4640 = vmatprep.subr.mxu0 0.0
    %4641 = vmatpush1.msra.mxu0 0.0
    %4642 = vmatprep.subr.mxu0 0.0
    %4643 = vmatpush1.msra.mxu0 0.0
    %4644 = vmatprep.subr.mxu0 0.0
    %4645 = vmatpush1.msra.mxu0 0.0
    %4646 = vmatprep.subr.mxu0 0.0
    %4647 = vmatpush1.msra.mxu0 0.0
    %4648 = vmatprep.subr.mxu0 0.0
    %4649 = vmatpush1.msra.mxu0 0.0
    %4650 = vmatprep.subr.mxu0 0.0
    %4651 = vmatpush1.msra.mxu0 0.0
    %4652 = vmatprep.subr.mxu0 0.0
    %4653 = vmatpush1.msra.mxu0 0.0
    %4654 = vmatprep.subr.mxu0 0.0
    %4655 = vmatpush1.msra.mxu0 0.0
    %4656 = vmatprep.subr.mxu0 0.0
    %4657 = vmatpush1.msra.mxu0 0.0
    %4658 = vmatprep.subr.mxu0 0.0
    %4659 = vmatpush1.msra.mxu0 0.0
    %4660 = vmatprep.subr.mxu0 0.0
    %4661 = vmatpush1.msra.mxu0 0.0
    %4662 = vmatprep.subr.mxu0 0.0
    %4663 = vmatpush1.msra.mxu0 0.0
    %4664 = vmatprep.subr.mxu0 0.0
    %4665 = vmatpush1.msra.mxu0 0.0
    %4666 = vmatprep.subr.mxu0 0.0
    %4667 = vmatpush1.msra.mxu0 0.0
    %4668 = vmatprep.subr.mxu0 0.0
    %4669 = vmatpush1.msra.mxu0 0.0
    %4670 = vmatprep.subr.mxu0 0.0
    %4671 = vmatpush1.msra.mxu0 0.0
    %4672 = vmatprep.subr.mxu0 0.0
    %4673 = vmatpush1.msra.mxu0 0.0
    %4674 = vmatprep.subr.mxu0 0.0
    %4675 = vmatpush1.msra.mxu0 0.0
    %4676 = vmatprep.mubr.f32.mxu0 0.0
    %4677 = vmatmul.mubr.f32.gmra.mrb[0].mxu0 %v4604
    %v4678 = vpop.f32.mrb[0].mxu0
    %v4679 = vadd.f32 0.0, %v4678
    %v4680 = vpop.f32.mrb[0].mxu0
    %4681 = vmatprep.mubr.f32.mxu0 0.0
    %4682 = vmatmul.mubr.f32.gmra.mrb[0].mxu0 %v4607
    %v4683 = vpop.f32.mrb[0].mxu0
    %v4684 = vadd.f32 0.0, %v4683
    %v4685 = vpop.f32.mrb[0].mxu0
    %4686 = vmatprep.mubr.f32.mxu0 0.0
    %4687 = vmatmul.mubr.f32.gmra.mrb[0].mxu0 %v4610
    %v4688 = vpop.f32.mrb[0].mxu0
    %v4689 = vadd.f32 0.0, %v4688
    %v4690 = vpop.f32.mrb[0].mxu0
    %4691 = vdwg.mxu0
    %v4692 = vadd.f32 %v4580, %v4679
    %v4693 = vadd.f32 %v4581, %v4684
    %v4694 = vadd.f32 %v4582, %v4689
    %s4695 = scalar_lea.vmem %s21, 48
    %v4696 = vld [vmem:[%s4695] sm:$0xff]
    %v4697 = vld [vmem:[%s4695 + $0x8] sm:$0xff]
    %v4698 = vld [vmem:[%s4695 + $0x10] sm:$0xf]
    %4699 = vrot.lane.b32.xlu0 %v4467, 126
    %v4700 = vpop.permute.xlu0 %4699
    %4701 = vrot.lane.b32.xlu0 %v4472, 126
    %v4702 = vpop.permute.xlu0 %4701
    %4703 = vrot.lane.b32.xlu0 %v4477, 126
    %v4704 = vpop.permute.xlu0 %4703
    %4705 = vrot.lane.b32.xlu0 %v4482, 126
    %v4706 = vpop.permute.xlu0 %4705
    %v4712 = vsel %vm4014, %v4696, 0
    %v4715 = vsel %vm4014, %v4697, 0
    %v4718 = vsel %vm4014, %v4698, 0
    %4720 = vmatprep.subr.mxu0 0.0
    %4721 = vmatpush1.msra.mxu0 %v4700
    %4722 = vmatprep.subr.mxu0 0.0
    %4723 = vmatpush1.msra.mxu0 %v4702
    %4724 = vmatprep.subr.mxu0 0.0
    %4725 = vmatpush1.msra.mxu0 %v4704
    %4726 = vmatprep.subr.mxu0 0.0
    %4727 = vmatpush1.msra.mxu0 %v4706
    %4728 = vmatprep.subr.mxu0 0.0
    %4729 = vmatpush1.msra.mxu0 0.0
    %4730 = vmatprep.subr.mxu0 0.0
    %4731 = vmatpush1.msra.mxu0 0.0
    %4732 = vmatprep.subr.mxu0 0.0
    %4733 = vmatpush1.msra.mxu0 0.0
    %4734 = vmatprep.subr.mxu0 0.0
    %4735 = vmatpush1.msra.mxu0 0.0
    %4736 = vmatprep.subr.mxu0 0.0
    %4737 = vmatpush1.msra.mxu0 0.0
    %4738 = vmatprep.subr.mxu0 0.0
    %4739 = vmatpush1.msra.mxu0 0.0
    %4740 = vmatprep.subr.mxu0 0.0
    %4741 = vmatpush1.msra.mxu0 0.0
    %4742 = vmatprep.subr.mxu0 0.0
    %4743 = vmatpush1.msra.mxu0 0.0
    %4744 = vmatprep.subr.mxu0 0.0
    %4745 = vmatpush1.msra.mxu0 0.0
    %4746 = vmatprep.subr.mxu0 0.0
    %4747 = vmatpush1.msra.mxu0 0.0
    %4748 = vmatprep.subr.mxu0 0.0
    %4749 = vmatpush1.msra.mxu0 0.0
    %4750 = vmatprep.subr.mxu0 0.0
    %4751 = vmatpush1.msra.mxu0 0.0
    %4752 = vmatprep.subr.mxu0 0.0
    %4753 = vmatpush1.msra.mxu0 0.0
    %4754 = vmatprep.subr.mxu0 0.0
    %4755 = vmatpush1.msra.mxu0 0.0
    %4756 = vmatprep.subr.mxu0 0.0
    %4757 = vmatpush1.msra.mxu0 0.0
    %4758 = vmatprep.subr.mxu0 0.0
    %4759 = vmatpush1.msra.mxu0 0.0
    %4760 = vmatprep.subr.mxu0 0.0
    %4761 = vmatpush1.msra.mxu0 0.0
    %4762 = vmatprep.subr.mxu0 0.0
    %4763 = vmatpush1.msra.mxu0 0.0
    %4764 = vmatprep.subr.mxu0 0.0
    %4765 = vmatpush1.msra.mxu0 0.0
    %4766 = vmatprep.subr.mxu0 0.0
    %4767 = vmatpush1.msra.mxu0 0.0
    %4768 = vmatprep.subr.mxu0 0.0
    %4769 = vmatpush1.msra.mxu0 0.0
    %4770 = vmatprep.subr.mxu0 0.0
    %4771 = vmatpush1.msra.mxu0 0.0
    %4772 = vmatprep.subr.mxu0 0.0
    %4773 = vmatpush1.msra.mxu0 0.0
    %4774 = vmatprep.subr.mxu0 0.0
    %4775 = vmatpush1.msra.mxu0 0.0
    %4776 = vmatprep.subr.mxu0 0.0
    %4777 = vmatpush1.msra.mxu0 0.0
    %4778 = vmatprep.subr.mxu0 0.0
    %4779 = vmatpush1.msra.mxu0 0.0
    %4780 = vmatprep.subr.mxu0 0.0
    %4781 = vmatpush1.msra.mxu0 0.0
    %4782 = vmatprep.subr.mxu0 0.0
    %4783 = vmatpush1.msra.mxu0 0.0
    %4784 = vmatprep.mubr.f32.mxu0 0.0
    %4785 = vmatmul.mubr.f32.gmra.mrb[0].mxu0 %v4712
    %v4786 = vpop.f32.mrb[0].mxu0
    %v4787 = vadd.f32 0.0, %v4786
    %v4788 = vpop.f32.mrb[0].mxu0
    %4789 = vmatprep.mubr.f32.mxu0 0.0
    %4790 = vmatmul.mubr.f32.gmra.mrb[0].mxu0 %v4715
    %v4791 = vpop.f32.mrb[0].mxu0
    %v4792 = vadd.f32 0.0, %v4791
    %v4793 = vpop.f32.mrb[0].mxu0
    %4794 = vmatprep.mubr.f32.mxu0 0.0
    %4795 = vmatmul.mubr.f32.gmra.mrb[0].mxu0 %v4718
    %v4796 = vpop.f32.mrb[0].mxu0
    %v4797 = vadd.f32 0.0, %v4796
    %v4798 = vpop.f32.mrb[0].mxu0
    %4799 = vdwg.mxu0
    %v4800 = vadd.f32 %v4692, %v4787
    %v4801 = vadd.f32 %v4693, %v4792
    %v4802 = vadd.f32 %v4694, %v4797
    %vm4803 = vcmp.eq.s32.totalorder %v161, %v165
    %vm4804 = vcmp.eq.s32.totalorder %v162, %v165
    %vm4805 = vcmp.eq.s32.totalorder %v163, %v165
    %v4806 = vsel %vm4803, 1, 0
    %v4807 = vsel %vm4804, 1, 0
    %v4808 = vsel %vm4805, 1, 0
    %v4809 = vcvt.s32.f32 %v4806
    %v4810 = vcvt.s32.f32 %v4807
    %v4811 = vcvt.s32.f32 %v4808
    %v4812 = vadd.f32 %v4809, 0.0
    %v4813 = vadd.f32 %v4810, 0.0
    %v4814 = vadd.f32 %v4811, 0.0
    %v4815 = vadd.s32 %v165, 10
    %vm4816 = vcmp.eq.s32.totalorder %v161, %v4815
    %vm4817 = vcmp.eq.s32.totalorder %v162, %v4815
    %vm4818 = vcmp.eq.s32.totalorder %v163, %v4815
    %v4819 = vsel %vm4816, 1, 0
    %v4820 = vsel %vm4817, 1, 0
    %v4821 = vsel %vm4818, 1, 0
    %v4822 = vcvt.s32.f32 %v4819
    %v4823 = vcvt.s32.f32 %v4820
    %v4824 = vcvt.s32.f32 %v4821
    %v4825 = vadd.f32 %v4812, %v4822
    %v4826 = vadd.f32 %v4813, %v4823
    %v4827 = vadd.f32 %v4814, %v4824
    %v4828 = vmul.u32 %v161, 10
    %vm4829 = vcmp.ge.s32.totalorder %v165, %v4828
    %v4830 = vmul.u32 %v262, 10
    %vm4831 = vcmp.lt.s32.totalorder %v165, %v4830
    %vm4832 = vmand %vm4829, %vm4831
    %v4833 = vsel %vm4832, 1, 0
    %v4834 = vcvt.s32.f32 %v4833
    %4836 = vset.pattern.permute.xlu0 0
    %4837 = vperm.xlu0 %4836, %v4800
    %v4838 = vpop.permute.xlu0 %4837
    %4841 = vset.pattern.permute.xlu0 0
    %4842 = vperm.xlu0 %4841, %v4801
    %v4843 = vpop.permute.xlu0 %4842
    %4846 = vset.pattern.permute.xlu0 0
    %4847 = vperm.xlu0 %4846, %v4802
    %v4848 = vpop.permute.xlu0 %4847
    %v4850 = vmul.f32 %v4838, %v4825
    %v4851 = vmul.f32 %v4843, %v4826
    %v4852 = vmul.f32 %v4848, %v4827
    %vm4853 = vcmask 162816
    %v4855 = vsel %vm4853, %v4834, 0
    %v4858 = vsel %vm1597, %v4852, 0
    %4860 = vmatprep.subr.mxu0 0.0
    %4861 = vmatpush1.msra.mxu0 %v4850
    %4862 = vmatprep.subr.mxu0 0.0
    %4863 = vmatpush1.msra.mxu0 %v4851
    %4864 = vmatprep.subr.mxu0 0.0
    %4865 = vmatpush1.msra.mxu0 %v4858
    %4866 = vmatprep.subr.mxu0 0.0
    %4867 = vmatpush1.msra.mxu0 0.0
    %4868 = vmatprep.subr.mxu0 0.0
    %4869 = vmatpush1.msra.mxu0 0.0
    %4870 = vmatprep.subr.mxu0 0.0
    %4871 = vmatpush1.msra.mxu0 0.0
    %4872 = vmatprep.subr.mxu0 0.0
    %4873 = vmatpush1.msra.mxu0 0.0
    %4874 = vmatprep.subr.mxu0 0.0
    %4875 = vmatpush1.msra.mxu0 0.0
    %4876 = vmatprep.subr.mxu0 0.0
    %4877 = vmatpush1.msra.mxu0 0.0
    %4878 = vmatprep.subr.mxu0 0.0
    %4879 = vmatpush1.msra.mxu0 0.0
    %4880 = vmatprep.subr.mxu0 0.0
    %4881 = vmatpush1.msra.mxu0 0.0
    %4882 = vmatprep.subr.mxu0 0.0
    %4883 = vmatpush1.msra.mxu0 0.0
    %4884 = vmatprep.subr.mxu0 0.0
    %4885 = vmatpush1.msra.mxu0 0.0
    %4886 = vmatprep.subr.mxu0 0.0
    %4887 = vmatpush1.msra.mxu0 0.0
    %4888 = vmatprep.subr.mxu0 0.0
    %4889 = vmatpush1.msra.mxu0 0.0
    %4890 = vmatprep.subr.mxu0 0.0
    %4891 = vmatpush1.msra.mxu0 0.0
    %4892 = vmatprep.subr.mxu0 0.0
    %4893 = vmatpush1.msra.mxu0 0.0
    %4894 = vmatprep.subr.mxu0 0.0
    %4895 = vmatpush1.msra.mxu0 0.0
    %4896 = vmatprep.subr.mxu0 0.0
    %4897 = vmatpush1.msra.mxu0 0.0
    %4898 = vmatprep.subr.mxu0 0.0
    %4899 = vmatpush1.msra.mxu0 0.0
    %4900 = vmatprep.subr.mxu0 0.0
    %4901 = vmatpush1.msra.mxu0 0.0
    %4902 = vmatprep.subr.mxu0 0.0
    %4903 = vmatpush1.msra.mxu0 0.0
    %4904 = vmatprep.subr.mxu0 0.0
    %4905 = vmatpush1.msra.mxu0 0.0
    %4906 = vmatprep.subr.mxu0 0.0
    %4907 = vmatpush1.msra.mxu0 0.0
    %4908 = vmatprep.subr.mxu0 0.0
    %4909 = vmatpush1.msra.mxu0 0.0
    %4910 = vmatprep.subr.mxu0 0.0
    %4911 = vmatpush1.msra.mxu0 0.0
    %4912 = vmatprep.subr.mxu0 0.0
    %4913 = vmatpush1.msra.mxu0 0.0
    %4914 = vmatprep.subr.mxu0 0.0
    %4915 = vmatpush1.msra.mxu0 0.0
    %4916 = vmatprep.subr.mxu0 0.0
    %4917 = vmatpush1.msra.mxu0 0.0
    %4918 = vmatprep.subr.mxu0 0.0
    %4919 = vmatpush1.msra.mxu0 0.0
    %4920 = vmatprep.subr.mxu0 0.0
    %4921 = vmatpush1.msra.mxu0 0.0
    %4922 = vmatprep.subr.mxu0 0.0
    %4923 = vmatpush1.msra.mxu0 0.0
    %4924 = vmatprep.mubr.f32.mxu0 0.0
    %4925 = vmatmul.mubr.f32.gmra.mrb[0].mxu0 %v4855
    %v4926 = vpop.f32.mrb[0].mxu0
    %v4927 = vadd.f32 0.0, %v4926
    %v4928 = vpop.f32.mrb[0].mxu0
    %4929 = vdwg.mxu0
    %vm4930 = vcmask 74752
    %v4931 = vsel %vm4930, %v4927, -inf
    %4932 = vmax.xlane.f32.xlu0 %v4931
    %v4933 = vpop.xlane.xlu0 %4932
    %v4934 = vsub.f32 %v4927, %v4933
    %v4935 = vmul.f32 %v4934, 1.442695
    %v4936 = vpow.pop %v4935
    %v4937 = vsel %vm4930, %v4936, 0.0
    %4938 = vadd.xlane.f32.xlu0 %v4937
    %v4939 = vpop.xlane.xlu0 %4938
    %v4940 = vlog2.pop %v4939
    %v4941 = vmul.f32 %v4940, 0.6931472
    %v4942 = vadd.f32 %v4941, %v4933
    %v4943 = vsub.f32 %v4927, %v4942
    %4944 = vst.msk [vmem:[#allocation2] sm:$0x3] %vm4930, %v4943
    // Predicated region
    $region94: #{tpu_custom_call.1} parent=1 // pred_check
      _
    $region95: #{tpu_custom_call.1} parent=1 // pred_check_branch
      %4946 = sbr.rel (0) target = $region97
    $region96: #{tpu_custom_call.1} parent=1 // pred_region
      %s4948 = ssub.s32 32, 32
      %4949 = vsyncadd [#allocation3], %s4948
      %s4951 = sshll.u32 [#allocation2], 4
      %s4952 = int_to_ptr.vmem [resolvable:$true] %s4951
      %4954 = dma.vmem_to_hbm [thread:$0]  %s4952, 32, %s23, [#allocation3]
    $region97: #{tpu_custom_call.1} parent=1 // pred_fallthru
      _
    // Predicated region
    $region98: #{tpu_custom_call.1} parent=1 // pred_check
      _
    $region99: #{tpu_custom_call.1} parent=1 // pred_check_branch
      %4956 = sbr.rel (0) target = $region101
    $region100: #{tpu_custom_call.1} parent=1 // pred_region
      %4957 = dma.done [#allocation3], 32
    $region101: #{tpu_custom_call.1} parent=1 // pred_fallthru
      _
    %4958 = vsyncpa [#allocation3], 1

</llo_original>
